<compile_context>
chip_gen: v7x
topology: tpu7x:2x2x1
jax: 0.10.0
libtpu: 0.0.40
codegen_flags: <defaults>
</compile_context>

<pallas_src>
import jax
import jax.numpy as jnp
from jax.experimental import pallas as pl
from jax.experimental.pallas import tpu as pltpu


_NEG_BIG = -1e30  # finite "-inf" for padded logit lanes (avoids 0 * -inf NaN)


def _round_up(x, m):
    return (x + m - 1) // m * m


def _ymodel_head_kernel(cls_ref, wbd_ref, bcat_ref, wf_ref, bf_ref, onehot_ref,
                        logits_ref, lossrow_ref):
    """One batch tile of the YModel head.

    Inputs (VMEM):
      cls_ref    : [TB, 2304] bf16   [cls_1 | cls_2 | cls_3] concat
      wbd_ref    : [2304, 384] bf16  block-diag(W1, W2, W3)
      bcat_ref   : [1, 384]   f32    [b1 | b2 | b3]
      wf_ref     : [384, 128] bf16   final fc weight, lane-padded with zeros
      bf_ref     : [1, 128]   f32    final fc bias, pad lanes = -1e30
      onehot_ref : [TB, 128]  f32    one-hot labels (all-zero rows = batch pad)
    Outputs (VMEM):
      logits_ref  : [TB, 128] f32    lane-padded logits
      lossrow_ref : [TB, 128] f32    per-example CE, broadcast across lanes
    """
    # Fused projections: tanh([cls1|cls2|cls3] @ blockdiag(W1,W2,W3) + [b1|b2|b3])
    combined = jnp.tanh(
        jnp.dot(cls_ref[...], wbd_ref[...],
                preferred_element_type=jnp.float32) + bcat_ref[...])

    # Final classifier.  Padded lanes: 0-weight columns + (-1e30) bias.
    logits = jnp.dot(combined.astype(jnp.bfloat16), wf_ref[...],
                     preferred_element_type=jnp.float32) + bf_ref[...]
    logits_ref[...] = logits

    # Cross-entropy: logsumexp(logits) - logits[label].  Padded lanes carry
    # logits ~ -1e30 -> exp()=0, never the max, never selected by the one-hot.
    onehot = onehot_ref[...]
    m = jnp.max(logits, axis=1, keepdims=True)                          # [TB,1]
    lse = m + jnp.log(jnp.sum(jnp.exp(logits - m), axis=1, keepdims=True))
    picked = jnp.sum(onehot * logits, axis=1, keepdims=True)            # [TB,1]
    valid = jnp.sum(onehot, axis=1, keepdims=True)   # 1 real row, 0 batch pad
    per_example = valid * (lse - picked)                                # [TB,1]
    lossrow_ref[...] = jnp.broadcast_to(per_example, lossrow_ref.shape)


def pack_params(params):
    """Host-side, once: block-diagonal fc_1/2/3 weights + lane-padded final fc."""
    D = params["w1"].shape[1]                       # 128
    NL = params["wf"].shape[1]                      # num_labels
    NLP = _round_up(NL, 128)                        # lane-dense padded width
    w_bd = jax.scipy.linalg.block_diag(params["w1"], params["w2"], params["w3"])
    b_cat = jnp.concatenate([params["b1"], params["b2"], params["b3"]], axis=1)
    wf_pad = jnp.zeros((3 * D, NLP), jnp.float32).at[:, :NL].set(params["wf"])
    bf_pad = jnp.full((1, NLP), _NEG_BIG, jnp.float32).at[:, :NL].set(params["bf"])
    return {
        "w_bd": w_bd.astype(jnp.bfloat16),
        "b_cat": b_cat.astype(jnp.float32),
        "wf_pad": wf_pad.astype(jnp.bfloat16),
        "bf_pad": bf_pad,
        "num_labels": NL,
    }


def ymodel_forward(h1, h2, h3, packed, labels):
    """Mirrors YModel.forward after the BERT encoders.  Returns (loss, logits)."""
    B = h1.shape[0]
    NL = packed["num_labels"]
    CH = packed["w_bd"].shape[0]        # 3 * 768
    DH = packed["w_bd"].shape[1]        # 3 * 128
    NLP = packed["wf_pad"].shape[1]     # padded label lanes (128)

    # CLS-only extraction + concat in the wrapper: only B*2304 floats ever reach
    # the kernel (not B*S*2304); bf16 halves the DMA again.
    cls_cat = jnp.concatenate([h1[:, 0, :], h2[:, 0, :], h3[:, 0, :]], axis=1)

    TB = 128 if B >= 128 else _round_up(B, 8)
    B_pad = _round_up(B, TB)
    n_tiles = B_pad // TB

    cls_bf16 = (jnp.zeros((B_pad, CH), cls_cat.dtype).at[:B].set(cls_cat)
                .astype(jnp.bfloat16))
    onehot = jnp.zeros((B_pad, NLP), jnp.float32).at[:B].set(
        jax.nn.one_hot(labels, NLP, dtype=jnp.float32))

    logits_pad, loss_rows = pl.pallas_call(
        _ymodel_head_kernel,
        out_shape=(jax.ShapeDtypeStruct((B_pad, NLP), jnp.float32),
                   jax.ShapeDtypeStruct((B_pad, NLP), jnp.float32)),
        grid=(n_tiles,),
        in_specs=[
            pl.BlockSpec((TB, CH), lambda i: (i, 0)),     # CLS concat tile
            pl.BlockSpec((CH, DH), lambda i: (0, 0)),     # block-diag weights (resident)
            pl.BlockSpec((1, DH), lambda i: (0, 0)),      # concat biases
            pl.BlockSpec((DH, NLP), lambda i: (0, 0)),    # final fc weight (lane-padded)
            pl.BlockSpec((1, NLP), lambda i: (0, 0)),     # final fc bias (pad = -1e30)
            pl.BlockSpec((TB, NLP), lambda i: (i, 0)),    # one-hot labels tile
        ],
        out_specs=(
            pl.BlockSpec((TB, NLP), lambda i: (i, 0)),    # lane-dense logits
            pl.BlockSpec((TB, NLP), lambda i: (i, 0)),    # per-example CE rows
        ),
        compiler_params=pltpu.CompilerParams(
            dimension_semantics=("parallel",)),
    )(cls_bf16, packed["w_bd"], packed["b_cat"],
      packed["wf_pad"], packed["bf_pad"], onehot)

    logits = logits_pad[:B, :NL]
    loss = jnp.sum(loss_rows[:, 0]) / B   # batch-pad rows contribute exactly 0
    return loss, logits


def _init_linear(key, fan_in, fan_out):
    """PyTorch nn.Linear default init: U(-1/sqrt(fan_in), 1/sqrt(fan_in))."""
    kw, kb = jax.random.split(key)
    bound = 1.0 / jnp.sqrt(fan_in)
    w = jax.random.uniform(kw, (fan_in, fan_out), jnp.float32, -bound, bound)
    b = jax.random.uniform(kb, (1, fan_out), jnp.float32, -bound, bound)
    return w, b


def _reference_matched(cls_bf16, packed, labels, nl):
    """Reference mirroring the kernel's bf16/f32 mixed precision (tight check)."""
    combined = jnp.tanh(
        jnp.dot(cls_bf16, packed["w_bd"], preferred_element_type=jnp.float32)
        + packed["b_cat"])
    logits_pad = jnp.dot(combined.astype(jnp.bfloat16), packed["wf_pad"],
                         preferred_element_type=jnp.float32) + packed["bf_pad"]
    logits = logits_pad[:, :nl]
    lse = jax.scipy.special.logsumexp(logits, axis=1)
    picked = jnp.take_along_axis(logits, labels[:, None], axis=1)[:, 0]
    return jnp.mean(lse - picked), logits


def _reference_f32(h1, h2, h3, params, labels):
    """PyTorch-faithful full-f32 reference (loose semantic check)."""
    o1 = jnp.tanh(h1[:, 0, :] @ params["w1"] + params["b1"])
    o2 = jnp.tanh(h2[:, 0, :] @ params["w2"] + params["b2"])
    o3 = jnp.tanh(h3[:, 0, :] @ params["w3"] + params["b3"])
    combined = jnp.concatenate([o1, o2, o3], axis=1)
    logits = combined @ params["wf"] + params["bf"]
    lse = jax.scipy.special.logsumexp(logits, axis=1)
    picked = jnp.take_along_axis(logits, labels[:, None], axis=1)[:, 0]
    return jnp.mean(lse - picked), logits


if __name__ == "__main__":
    # Small deterministic shapes consistent with the module:
    # BERT hidden = 768 (required by fc_i in_features), seq = 8, batch = 2.
    B, S, H, D = 2, 8, 768, 128
    NUM_LABELS = 6  # len(label_map)

    key = jax.random.PRNGKey(0)
    k_h1, k_h2, k_h3, k_f1, k_f2, k_f3, k_fc, k_lab = jax.random.split(key, 8)

    # Synthetic BERT last_hidden_state outputs (stand-ins for Bert_i(...)[0]).
    h1 = jax.random.normal(k_h1, (B, S, H), jnp.float32)
    h2 = jax.random.normal(k_h2, (B, S, H), jnp.float32)
    h3 = jax.random.normal(k_h3, (B, S, H), jnp.float32)

    w1, b1 = _init_linear(k_f1, H, D)
    w2, b2 = _init_linear(k_f2, H, D)
    w3, b3 = _init_linear(k_f3, H, D)
    wf, bf = _init_linear(k_fc, 3 * D, NUM_LABELS)
    params = {"w1": w1, "b1": b1, "w2": w2, "b2": b2,
              "w3": w3, "b3": b3, "wf": wf, "bf": bf}
    packed = pack_params(params)

    labels = jax.random.randint(k_lab, (B,), 0, NUM_LABELS, jnp.int32)

    loss, logits = ymodel_forward(h1, h2, h3, packed, labels)
    jax.block_until_ready((loss, logits))
    assert logits.shape == (B, NUM_LABELS)

    # Tight check vs. a reference using identical bf16-operand / f32-accum math.
    cls_bf16 = jnp.concatenate([h1[:, 0, :], h2[:, 0, :], h3[:, 0, :]],
                               axis=1).astype(jnp.bfloat16)
    ref_loss_m, ref_logits_m = _reference_matched(cls_bf16, packed, labels,
                                                  NUM_LABELS)
    assert jnp.allclose(logits, ref_logits_m, atol=5e-3, rtol=5e-3)
    assert jnp.allclose(loss, ref_loss_m, atol=5e-3, rtol=5e-3)

    # Loose semantic check vs. the full-f32 PyTorch-equivalent math.
    ref_loss, ref_logits = _reference_f32(h1, h2, h3, params, labels)
    assert jnp.allclose(logits, ref_logits, atol=5e-2, rtol=5e-2)
    assert jnp.allclose(loss, ref_loss, atol=5e-2, rtol=5e-2)

    print("KERNEL_OK")
</pallas_src>

<mosaic_0001>
module attributes {stable_mosaic.version = 11 : i64} {
  func.func @_ymodel_head_kernel(%arg0: i32, %arg1: memref<8x2304xbf16, #tpu.memory_space<vmem>>, %arg2: memref<2304x384xbf16, #tpu.memory_space<vmem>>, %arg3: memref<1x384xf32, #tpu.memory_space<vmem>>, %arg4: memref<384x128xbf16, #tpu.memory_space<vmem>>, %arg5: memref<1x128xf32, #tpu.memory_space<vmem>>, %arg6: memref<8x128xf32, #tpu.memory_space<vmem>>, %arg7: memref<8x128xf32, #tpu.memory_space<vmem>>, %arg8: memref<8x128xf32, #tpu.memory_space<vmem>>) attributes {dimension_semantics = [#tpu.dimension_semantics<parallel>], iteration_bounds = array<i64: 1>, scalar_prefetch = 0 : i64, scratch_operands = 0 : i64, tpu.core_type = #tpu.core_type<tc>, window_params = [{transform_indices = @transform_0, window_bounds = array<i64: 8, 2304>}, {pipeline_mode = #tpu.pipeline_mode<synchronous>, transform_indices = @transform_1, window_bounds = array<i64: 2304, 384>}, {pipeline_mode = #tpu.pipeline_mode<synchronous>, transform_indices = @transform_2, window_bounds = array<i64: 1, 384>}, {pipeline_mode = #tpu.pipeline_mode<synchronous>, transform_indices = @transform_3, window_bounds = array<i64: 384, 128>}, {pipeline_mode = #tpu.pipeline_mode<synchronous>, transform_indices = @transform_4, window_bounds = array<i64: 1, 128>}, {transform_indices = @transform_5, window_bounds = array<i64: 8, 128>}, {transform_indices = @transform_6, window_bounds = array<i64: 8, 128>}, {transform_indices = @transform_7, window_bounds = array<i64: 8, 128>}]} {
    %c0 = arith.constant 0 : index
    %c0_0 = arith.constant 0 : index
    %0 = vector.load %arg1[%c0, %c0_0] : memref<8x2304xbf16, #tpu.memory_space<vmem>>, vector<8x2304xbf16>
    %c0_1 = arith.constant 0 : index
    %c0_2 = arith.constant 0 : index
    %1 = vector.load %arg2[%c0_1, %c0_2] : memref<2304x384xbf16, #tpu.memory_space<vmem>>, vector<2304x384xbf16>
    %cst = arith.constant dense<0.000000e+00> : vector<8x384xf32>
    %2 = tpu.matmul %0, %1, %cst {dimension_numbers = #tpu.dot_dimension_numbers<[1], [0], [0], [1], [0, 0, 1, 1], [], []>} : vector<8x2304xbf16>, vector<2304x384xbf16>, vector<8x384xf32> -> vector<8x384xf32>
    %c0_3 = arith.constant 0 : index
    %c0_4 = arith.constant 0 : index
    %3 = vector.load %arg3[%c0_3, %c0_4] : memref<1x384xf32, #tpu.memory_space<vmem>>, vector<1x384xf32>
    %4 = vector.broadcast %3 : vector<1x384xf32> to vector<8x384xf32>
    %5 = arith.addf %2, %4 : vector<8x384xf32>
    %6 = math.tanh %5 : vector<8x384xf32>
    %7 = arith.truncf %6 : vector<8x384xf32> to vector<8x384xbf16>
    %c0_5 = arith.constant 0 : index
    %c0_6 = arith.constant 0 : index
    %8 = vector.load %arg4[%c0_5, %c0_6] : memref<384x128xbf16, #tpu.memory_space<vmem>>, vector<384x128xbf16>
    %cst_7 = arith.constant dense<0.000000e+00> : vector<8x128xf32>
    %9 = tpu.matmul %7, %8, %cst_7 {dimension_numbers = #tpu.dot_dimension_numbers<[1], [0], [0], [1], [0, 0, 1, 1], [], []>} : vector<8x384xbf16>, vector<384x128xbf16>, vector<8x128xf32> -> vector<8x128xf32>
    %c0_8 = arith.constant 0 : index
    %c0_9 = arith.constant 0 : index
    %10 = vector.load %arg5[%c0_8, %c0_9] : memref<1x128xf32, #tpu.memory_space<vmem>>, vector<1x128xf32>
    %11 = vector.broadcast %10 : vector<1x128xf32> to vector<8x128xf32>
    %12 = arith.addf %9, %11 : vector<8x128xf32>
    %c0_10 = arith.constant 0 : index
    %c0_11 = arith.constant 0 : index
    %13 = vector.load %arg7[%c0_10, %c0_11] : memref<8x128xf32, #tpu.memory_space<vmem>>, vector<8x128xf32>
    tpu.vector_store %arg7[%c0_10, %c0_11], %12 {strides = array<i32>} : memref<8x128xf32, #tpu.memory_space<vmem>>, vector<8x128xf32>,
    %c0_12 = arith.constant 0 : index
    %c0_13 = arith.constant 0 : index
    %14 = vector.load %arg6[%c0_12, %c0_13] : memref<8x128xf32, #tpu.memory_space<vmem>>, vector<8x128xf32>
    %cst_14 = arith.constant dense<0xFF800000> : vector<8xf32>
    %15 = vector.multi_reduction <maximumf>, %12, %cst_14 [1] : vector<8x128xf32> to vector<8xf32>
    %16 = vector.shape_cast %15 : vector<8xf32> to vector<8x1xf32>
    %17 = vector.broadcast %16 : vector<8x1xf32> to vector<8x128xf32>
    %18 = arith.subf %12, %17 : vector<8x128xf32>
    %19 = math.exp %18 : vector<8x128xf32>
    %cst_15 = arith.constant dense<0.000000e+00> : vector<8xf32>
    %20 = vector.multi_reduction <add>, %19, %cst_15 [1] : vector<8x128xf32> to vector<8xf32>
    %21 = vector.shape_cast %20 : vector<8xf32> to vector<8x1xf32>
    %22 = math.log %21 : vector<8x1xf32>
    %23 = arith.addf %16, %22 : vector<8x1xf32>
    %24 = arith.mulf %14, %12 : vector<8x128xf32>
    %cst_16 = arith.constant dense<0.000000e+00> : vector<8xf32>
    %25 = vector.multi_reduction <add>, %24, %cst_16 [1] : vector<8x128xf32> to vector<8xf32>
    %26 = vector.shape_cast %25 : vector<8xf32> to vector<8x1xf32>
    %cst_17 = arith.constant dense<0.000000e+00> : vector<8xf32>
    %27 = vector.multi_reduction <add>, %14, %cst_17 [1] : vector<8x128xf32> to vector<8xf32>
    %28 = vector.shape_cast %27 : vector<8xf32> to vector<8x1xf32>
    %29 = arith.subf %23, %26 : vector<8x1xf32>
    %30 = arith.mulf %28, %29 : vector<8x1xf32>
    %31 = vector.shape_cast %30 : vector<8x1xf32> to vector<8x1xf32>
    %32 = vector.broadcast %31 : vector<8x1xf32> to vector<8x128xf32>
    %c0_18 = arith.constant 0 : index
    %c0_19 = arith.constant 0 : index
    %33 = vector.load %arg8[%c0_18, %c0_19] : memref<8x128xf32, #tpu.memory_space<vmem>>, vector<8x128xf32>
    tpu.vector_store %arg8[%c0_18, %c0_19], %32 {strides = array<i32>} : memref<8x128xf32, #tpu.memory_space<vmem>>, vector<8x128xf32>,
    return
  }
  func.func @transform_0(%arg0: i32) -> (i32, i32) {
    %c0_i32 = arith.constant 0 : i32
    %c0_i32_0 = arith.constant 0 : i32
    return %arg0, %c0_i32 : i32, i32
  }
  func.func @transform_1(%arg0: i32) -> (i32, i32) {
    %c0_i32 = arith.constant 0 : i32
    %c0_i32_0 = arith.constant 0 : i32
    %c0_i32_1 = arith.constant 0 : i32
    return %c0_i32, %c0_i32_0 : i32, i32
  }
  func.func @transform_2(%arg0: i32) -> (i32, i32) {
    %c0_i32 = arith.constant 0 : i32
    %c0_i32_0 = arith.constant 0 : i32
    %c0_i32_1 = arith.constant 0 : i32
    return %c0_i32, %c0_i32_0 : i32, i32
  }
  func.func @transform_3(%arg0: i32) -> (i32, i32) {
    %c0_i32 = arith.constant 0 : i32
    %c0_i32_0 = arith.constant 0 : i32
    %c0_i32_1 = arith.constant 0 : i32
    return %c0_i32, %c0_i32_0 : i32, i32
  }
  func.func @transform_4(%arg0: i32) -> (i32, i32) {
    %c0_i32 = arith.constant 0 : i32
    %c0_i32_0 = arith.constant 0 : i32
    %c0_i32_1 = arith.constant 0 : i32
    return %c0_i32, %c0_i32_0 : i32, i32
  }
  func.func @transform_5(%arg0: i32) -> (i32, i32) {
    %c0_i32 = arith.constant 0 : i32
    %c0_i32_0 = arith.constant 0 : i32
    return %arg0, %c0_i32 : i32, i32
  }
  func.func @transform_6(%arg0: i32) -> (i32, i32) {
    %c0_i32 = arith.constant 0 : i32
    %c0_i32_0 = arith.constant 0 : i32
    return %arg0, %c0_i32 : i32, i32
  }
  func.func @transform_7(%arg0: i32) -> (i32, i32) {
    %c0_i32 = arith.constant 0 : i32
    %c0_i32_0 = arith.constant 0 : i32
    return %arg0, %c0_i32 : i32, i32
  }
}

</mosaic_0001>

<llo_original>
// kernel: tpu_custom_call.1
$region0: #{tpu_custom_call.1}
  #allocation0 [shape = 'u32[]', space=smem, size = 0x4, offset = 0x4, fixed_abs, tag = 'smem constant byte address 0x4 - core index']
  #allocation1 [shape = 'u32[144,128]{1,0:T(1,128)}', space=vmem, size = 0x12000, scoped, tag = 'internal scratch']
  %s0 = inlined_call_operand.hbm [shape: bf16[8,2304], index: 0, kind: input, shape index: {}]
  %s1 = inlined_call_operand.hbm [shape: bf16[2304,384], index: 1, kind: input, shape index: {}]
  %s2 = inlined_call_operand.hbm [shape: f32[1,384], index: 2, kind: input, shape index: {}]
  %s3 = inlined_call_operand.hbm [shape: bf16[384,128], index: 3, kind: input, shape index: {}]
  %s4 = inlined_call_operand.hbm [shape: f32[1,128], index: 4, kind: input, shape index: {}]
  %s5 = inlined_call_operand.hbm [shape: f32[8,128], index: 5, kind: input, shape index: {}]
  %s6 = inlined_call_operand.hbm [shape: f32[8,128], index: 6, kind: output, shape index: {0}]
  %s7 = inlined_call_operand.hbm [shape: f32[8,128], index: 7, kind: output, shape index: {1}]
  %8 = xla_tuple %s6, %s7
  %s9 = sld [smem:[#allocation0]]
  $region66: #{tpu_custom_call.1} parent=0
    _
  %s11 = ssub.s32 1, %s9
  %s12 = scalar_select 0, %s11, %s9
  $region1: #{tpu_custom_call.1} parent=0
    #allocation2 [shape = 'u8[36864]{0}', space=vmem, size = 0x9000, scoped, tag = 'input window, operand 0, single buffered']
    #allocation3 [shape = 's32[1]{0}', space=sflag, size = 0x4, scoped, tag = 'scoped memory for tpu_custom_call.1']
    #allocation4 [shape = 's32[1]{0}', space=sflag, size = 0x4, scoped, tag = 'scoped memory for tpu_custom_call.1']
    #allocation5 [shape = 'u8[1769472]{0}', space=vmem, size = 0x1b0000, scoped, tag = 'input window, operand 1, single buffered']
    #allocation6 [shape = 's32[1]{0}', space=sflag, size = 0x4, scoped, tag = 'scoped memory for tpu_custom_call.1']
    #allocation7 [shape = 'u8[1536]{0}', space=vmem, size = 0x800, scoped, tag = 'input window, operand 2, single buffered']
    #allocation8 [shape = 'u8[98304]{0}', space=vmem, size = 0x18000, scoped, tag = 'input window, operand 3, single buffered']
    #allocation9 [shape = 's32[1]{0}', space=sflag, size = 0x4, scoped, tag = 'scoped memory for tpu_custom_call.1']
    #allocation10 [shape = 'u8[512]{0}', space=vmem, size = 0x400, scoped, tag = 'input window, operand 4, single buffered']
    #allocation11 [shape = 'u8[4096]{0}', space=vmem, size = 0x1000, scoped, tag = 'input window, operand 5, single buffered']
    #allocation12 [shape = 's32[1]{0}', space=sflag, size = 0x4, scoped, tag = 'scoped memory for tpu_custom_call.1']
    #allocation13 [shape = 'u8[4096]{0}', space=vmem, size = 0x1000, scoped, tag = 'output window, operand 0, single buffered']
    #allocation14 [shape = 'u8[4096]{0}', space=vmem, size = 0x1000, scoped, tag = 'output window, operand 1, single buffered']
    #allocation15 [shape = 's32[1]{0}', space=sflag, size = 0x4, scoped, tag = 'scoped memory for tpu_custom_call.1']
    %13 = vsyncpa [#allocation3], 0
    %14 = vsyncpa [#allocation6], 0
    %15 = vsyncpa [#allocation9], 0
    %16 = vsyncpa [#allocation12], 0
    %17 = vsyncpa [#allocation4], 0
    %18 = vsyncpa [#allocation15], 0
    // Predicated region
    $region2: #{tpu_custom_call.1} parent=1 // pred_check
      _
    $region3: #{tpu_custom_call.1} parent=1 // pred_check_branch
      %20 = sbr.rel (0) target = $region5
    $region4: #{tpu_custom_call.1} parent=1 // pred_region
      %s22 = ssub.s32 1152, 1152
      %23 = vsyncadd [#allocation3], %s22
      %s25 = sshll.u32 [#allocation2], 4
      %s26 = int_to_ptr.vmem [resolvable:$true] %s25
      %28 = dma.hbm_to_vmem [thread:$0]  %s0, 1152, %s26, [#allocation3]
    $region5: #{tpu_custom_call.1} parent=1 // pred_fallthru
      _
    // Predicated region
    $region6: #{tpu_custom_call.1} parent=1 // pred_check
      _
    $region7: #{tpu_custom_call.1} parent=1 // pred_check_branch
      %30 = sbr.rel (0) target = $region9
    $region8: #{tpu_custom_call.1} parent=1 // pred_region
      %s32 = ssub.s32 55296, 55296
      %33 = vsyncadd [#allocation6], %s32
      %s34 = sshll.u32 [#allocation5], 4
      %s35 = int_to_ptr.vmem [resolvable:$true] %s34
      %40 = dma.hbm_to_vmem [thread:$0]  %s1, 55296, %s35, [#allocation6], 192, 192, 12
    $region9: #{tpu_custom_call.1} parent=1 // pred_fallthru
      _
    // Predicated region
    $region10: #{tpu_custom_call.1} parent=1 // pred_check
      _
    $region11: #{tpu_custom_call.1} parent=1 // pred_check_branch
      %42 = sbr.rel (0) target = $region13
    $region12: #{tpu_custom_call.1} parent=1 // pred_region
      %s44 = ssub.s32 48, 48
      %45 = vsyncadd [#allocation6], %s44
      %s47 = sshll.u32 [#allocation7], 4
      %s48 = int_to_ptr.vmem [resolvable:$true] %s47
      %50 = dma.hbm_to_vmem [thread:$0]  %s2, 48, %s48, [#allocation6]
    $region13: #{tpu_custom_call.1} parent=1 // pred_fallthru
      _
    // Predicated region
    $region14: #{tpu_custom_call.1} parent=1 // pred_check
      _
    $region15: #{tpu_custom_call.1} parent=1 // pred_check_branch
      %52 = sbr.rel (0) target = $region17
    $region16: #{tpu_custom_call.1} parent=1 // pred_region
      %s54 = ssub.s32 3072, 3072
      %55 = vsyncadd [#allocation9], %s54
      %s56 = sshll.u32 [#allocation8], 4
      %s57 = int_to_ptr.vmem [resolvable:$true] %s56
      %62 = dma.hbm_to_vmem [thread:$0]  %s3, 3072, %s57, [#allocation9], 64, 64, 4
    $region17: #{tpu_custom_call.1} parent=1 // pred_fallthru
      _
    // Predicated region
    $region18: #{tpu_custom_call.1} parent=1 // pred_check
      _
    $region19: #{tpu_custom_call.1} parent=1 // pred_check_branch
      %64 = sbr.rel (0) target = $region21
    $region20: #{tpu_custom_call.1} parent=1 // pred_region
      %s66 = ssub.s32 16, 16
      %67 = vsyncadd [#allocation9], %s66
      %s69 = sshll.u32 [#allocation10], 4
      %s70 = int_to_ptr.vmem [resolvable:$true] %s69
      %72 = dma.hbm_to_vmem [thread:$0]  %s4, 16, %s70, [#allocation9]
    $region21: #{tpu_custom_call.1} parent=1 // pred_fallthru
      _
    // Predicated region
    $region22: #{tpu_custom_call.1} parent=1 // pred_check
      _
    $region23: #{tpu_custom_call.1} parent=1 // pred_check_branch
      %74 = sbr.rel (0) target = $region25
    $region24: #{tpu_custom_call.1} parent=1 // pred_region
      %s76 = ssub.s32 128, 128
      %77 = vsyncadd [#allocation12], %s76
      %s79 = sshll.u32 [#allocation11], 4
      %s80 = int_to_ptr.vmem [resolvable:$true] %s79
      %82 = dma.hbm_to_vmem [thread:$0]  %s5, 128, %s80, [#allocation12]
    $region25: #{tpu_custom_call.1} parent=1 // pred_fallthru
      _
    // Predicated region
    $region26: #{tpu_custom_call.1} parent=1 // pred_check
      _
    $region27: #{tpu_custom_call.1} parent=1 // pred_check_branch
      %84 = sbr.rel (0) target = $region29
    $region28: #{tpu_custom_call.1} parent=1 // pred_region
      %85 = dma.done [#allocation3], 1152
    $region29: #{tpu_custom_call.1} parent=1 // pred_fallthru
      _
    // Predicated region
    $region30: #{tpu_custom_call.1} parent=1 // pred_check
      _
    $region31: #{tpu_custom_call.1} parent=1 // pred_check_branch
      %87 = sbr.rel (0) target = $region33
    $region32: #{tpu_custom_call.1} parent=1 // pred_region
      %88 = dma.done [#allocation6], 55296
    $region33: #{tpu_custom_call.1} parent=1 // pred_fallthru
      _
    // Predicated region
    $region34: #{tpu_custom_call.1} parent=1 // pred_check
      _
    $region35: #{tpu_custom_call.1} parent=1 // pred_check_branch
      %90 = sbr.rel (0) target = $region37
    $region36: #{tpu_custom_call.1} parent=1 // pred_region
      %91 = dma.done [#allocation6], 48
    $region37: #{tpu_custom_call.1} parent=1 // pred_fallthru
      _
    // Predicated region
    $region38: #{tpu_custom_call.1} parent=1 // pred_check
      _
    $region39: #{tpu_custom_call.1} parent=1 // pred_check_branch
      %93 = sbr.rel (0) target = $region41
    $region40: #{tpu_custom_call.1} parent=1 // pred_region
      %94 = dma.done [#allocation9], 3072
    $region41: #{tpu_custom_call.1} parent=1 // pred_fallthru
      _
    // Predicated region
    $region42: #{tpu_custom_call.1} parent=1 // pred_check
      _
    $region43: #{tpu_custom_call.1} parent=1 // pred_check_branch
      %96 = sbr.rel (0) target = $region45
    $region44: #{tpu_custom_call.1} parent=1 // pred_region
      %97 = dma.done [#allocation9], 16
    $region45: #{tpu_custom_call.1} parent=1 // pred_fallthru
      _
    // Predicated region
    $region46: #{tpu_custom_call.1} parent=1 // pred_check
      _
    $region47: #{tpu_custom_call.1} parent=1 // pred_check_branch
      %99 = sbr.rel (0) target = $region49
    $region48: #{tpu_custom_call.1} parent=1 // pred_region
      %100 = dma.done [#allocation12], 128
    $region49: #{tpu_custom_call.1} parent=1 // pred_fallthru
      _
    %v102 = vld [vmem:[#allocation2] sm:$0xff]
    %v103 = vld [vmem:[#allocation2 + $0x8] sm:$0xff]
    %v104 = vld [vmem:[#allocation2 + $0x10] sm:$0xff]
    %v105 = vld [vmem:[#allocation2 + $0x18] sm:$0xff]
    %v106 = vld [vmem:[#allocation2 + $0x20] sm:$0xff]
    %v107 = vld [vmem:[#allocation2 + $0x28] sm:$0xff]
    %v108 = vld [vmem:[#allocation2 + $0x30] sm:$0xff]
    %v109 = vld [vmem:[#allocation2 + $0x38] sm:$0xff]
    %v110 = vld [vmem:[#allocation2 + $0x40] sm:$0xff]
    %v111 = vld [vmem:[#allocation5] sm:$0xff]
    %v112 = vld [vmem:[#allocation5 + $0x8] sm:$0xf]
    %v113 = vld [vmem:[#allocation5 + $0xc] sm:$0xff]
    %v114 = vld [vmem:[#allocation5 + $0x14] sm:$0xf]
    %v115 = vld [vmem:[#allocation5 + $0x18] sm:$0xff]
    %v116 = vld [vmem:[#allocation5 + $0x20] sm:$0xf]
    %v117 = vld [vmem:[#allocation5 + $0x24] sm:$0xff]
    %v118 = vld [vmem:[#allocation5 + $0x2c] sm:$0xf]
    %v119 = vld [vmem:[#allocation5 + $0x30] sm:$0xff]
    %v120 = vld [vmem:[#allocation5 + $0x38] sm:$0xf]
    %v121 = vld [vmem:[#allocation5 + $0x3c] sm:$0xff]
    %v122 = vld [vmem:[#allocation5 + $0x44] sm:$0xf]
    %v123 = vld [vmem:[#allocation5 + $0x48] sm:$0xff]
    %v124 = vld [vmem:[#allocation5 + $0x50] sm:$0xf]
    %v125 = vld [vmem:[#allocation5 + $0x54] sm:$0xff]
    %v126 = vld [vmem:[#allocation5 + $0x5c] sm:$0xf]
    %v127 = vld [vmem:[#allocation5 + $0x60] sm:$0xff]
    %v128 = vld [vmem:[#allocation5 + $0x68] sm:$0xf]
    %v129 = vld [vmem:[#allocation5 + $0x6c] sm:$0xff]
    %v130 = vld [vmem:[#allocation5 + $0x74] sm:$0xf]
    %v131 = vld [vmem:[#allocation5 + $0x78] sm:$0xff]
    %v132 = vld [vmem:[#allocation5 + $0x80] sm:$0xf]
    %v133 = vld [vmem:[#allocation5 + $0x84] sm:$0xff]
    %v134 = vld [vmem:[#allocation5 + $0x8c] sm:$0xf]
    %v135 = vld [vmem:[#allocation5 + $0x90] sm:$0xff]
    %v136 = vld [vmem:[#allocation5 + $0x98] sm:$0xf]
    %v137 = vld [vmem:[#allocation5 + $0x9c] sm:$0xff]
    %v138 = vld [vmem:[#allocation5 + $0xa4] sm:$0xf]
    %v139 = vld [vmem:[#allocation5 + $0xa8] sm:$0xff]
    %v140 = vld [vmem:[#allocation5 + $0xb0] sm:$0xf]
    %v141 = vld [vmem:[#allocation5 + $0xb4] sm:$0xff]
    %v142 = vld [vmem:[#allocation5 + $0xbc] sm:$0xf]
    %v143 = vld [vmem:[#allocation5 + $0xc0] sm:$0xff]
    %v144 = vld [vmem:[#allocation5 + $0xc8] sm:$0xf]
    %v145 = vld [vmem:[#allocation5 + $0xcc] sm:$0xff]
    %v146 = vld [vmem:[#allocation5 + $0xd4] sm:$0xf]
    %v147 = vld [vmem:[#allocation5 + $0xd8] sm:$0xff]
    %v148 = vld [vmem:[#allocation5 + $0xe0] sm:$0xf]
    %v149 = vld [vmem:[#allocation5 + $0xe4] sm:$0xff]
    %v150 = vld [vmem:[#allocation5 + $0xec] sm:$0xf]
    %v151 = vld [vmem:[#allocation5 + $0xf0] sm:$0xff]
    %v152 = vld [vmem:[#allocation5 + $0xf8] sm:$0xf]
    %v153 = vld [vmem:[#allocation5 + $0xfc] sm:$0xff]
    %v154 = vld [vmem:[#allocation5 + $0x104] sm:$0xf]
    %v155 = vld [vmem:[#allocation5 + $0x108] sm:$0xff]
    %v156 = vld [vmem:[#allocation5 + $0x110] sm:$0xf]
    %v157 = vld [vmem:[#allocation5 + $0x114] sm:$0xff]
    %v158 = vld [vmem:[#allocation5 + $0x11c] sm:$0xf]
    %v159 = vld [vmem:[#allocation5 + $0x120] sm:$0xff]
    %v160 = vld [vmem:[#allocation5 + $0x128] sm:$0xf]
    %v161 = vld [vmem:[#allocation5 + $0x12c] sm:$0xff]
    %v162 = vld [vmem:[#allocation5 + $0x134] sm:$0xf]
    %v163 = vld [vmem:[#allocation5 + $0x138] sm:$0xff]
    %v164 = vld [vmem:[#allocation5 + $0x140] sm:$0xf]
    %v165 = vld [vmem:[#allocation5 + $0x144] sm:$0xff]
    %v166 = vld [vmem:[#allocation5 + $0x14c] sm:$0xf]
    %v167 = vld [vmem:[#allocation5 + $0x150] sm:$0xff]
    %v168 = vld [vmem:[#allocation5 + $0x158] sm:$0xf]
    %v169 = vld [vmem:[#allocation5 + $0x15c] sm:$0xff]
    %v170 = vld [vmem:[#allocation5 + $0x164] sm:$0xf]
    %v171 = vld [vmem:[#allocation5 + $0x168] sm:$0xff]
    %v172 = vld [vmem:[#allocation5 + $0x170] sm:$0xf]
    %v173 = vld [vmem:[#allocation5 + $0x174] sm:$0xff]
    %v174 = vld [vmem:[#allocation5 + $0x17c] sm:$0xf]
    %v175 = vld [vmem:[#allocation5 + $0x180] sm:$0xff]
    %v176 = vld [vmem:[#allocation5 + $0x188] sm:$0xf]
    %v177 = vld [vmem:[#allocation5 + $0x18c] sm:$0xff]
    %v178 = vld [vmem:[#allocation5 + $0x194] sm:$0xf]
    %v179 = vld [vmem:[#allocation5 + $0x198] sm:$0xff]
    %v180 = vld [vmem:[#allocation5 + $0x1a0] sm:$0xf]
    %v181 = vld [vmem:[#allocation5 + $0x1a4] sm:$0xff]
    %v182 = vld [vmem:[#allocation5 + $0x1ac] sm:$0xf]
    %v183 = vld [vmem:[#allocation5 + $0x1b0] sm:$0xff]
    %v184 = vld [vmem:[#allocation5 + $0x1b8] sm:$0xf]
    %v185 = vld [vmem:[#allocation5 + $0x1bc] sm:$0xff]
    %v186 = vld [vmem:[#allocation5 + $0x1c4] sm:$0xf]
    %v187 = vld [vmem:[#allocation5 + $0x1c8] sm:$0xff]
    %v188 = vld [vmem:[#allocation5 + $0x1d0] sm:$0xf]
    %v189 = vld [vmem:[#allocation5 + $0x1d4] sm:$0xff]
    %v190 = vld [vmem:[#allocation5 + $0x1dc] sm:$0xf]
    %v191 = vld [vmem:[#allocation5 + $0x1e0] sm:$0xff]
    %v192 = vld [vmem:[#allocation5 + $0x1e8] sm:$0xf]
    %v193 = vld [vmem:[#allocation5 + $0x1ec] sm:$0xff]
    %v194 = vld [vmem:[#allocation5 + $0x1f4] sm:$0xf]
    %v195 = vld [vmem:[#allocation5 + $0x1f8] sm:$0xff]
    %v196 = vld [vmem:[#allocation5 + $0x200] sm:$0xf]
    %v197 = vld [vmem:[#allocation5 + $0x204] sm:$0xff]
    %v198 = vld [vmem:[#allocation5 + $0x20c] sm:$0xf]
    %v199 = vld [vmem:[#allocation5 + $0x210] sm:$0xff]
    %v200 = vld [vmem:[#allocation5 + $0x218] sm:$0xf]
    %v201 = vld [vmem:[#allocation5 + $0x21c] sm:$0xff]
    %v202 = vld [vmem:[#allocation5 + $0x224] sm:$0xf]
    %v203 = vld [vmem:[#allocation5 + $0x228] sm:$0xff]
    %v204 = vld [vmem:[#allocation5 + $0x230] sm:$0xf]
    %v205 = vld [vmem:[#allocation5 + $0x234] sm:$0xff]
    %v206 = vld [vmem:[#allocation5 + $0x23c] sm:$0xf]
    %v207 = vld [vmem:[#allocation5 + $0x240] sm:$0xff]
    %v208 = vld [vmem:[#allocation5 + $0x248] sm:$0xf]
    %v209 = vld [vmem:[#allocation5 + $0x24c] sm:$0xff]
    %v210 = vld [vmem:[#allocation5 + $0x254] sm:$0xf]
    %v211 = vld [vmem:[#allocation5 + $0x258] sm:$0xff]
    %v212 = vld [vmem:[#allocation5 + $0x260] sm:$0xf]
    %v213 = vld [vmem:[#allocation5 + $0x264] sm:$0xff]
    %v214 = vld [vmem:[#allocation5 + $0x26c] sm:$0xf]
    %v215 = vld [vmem:[#allocation5 + $0x270] sm:$0xff]
    %v216 = vld [vmem:[#allocation5 + $0x278] sm:$0xf]
    %v217 = vld [vmem:[#allocation5 + $0x27c] sm:$0xff]
    %v218 = vld [vmem:[#allocation5 + $0x284] sm:$0xf]
    %v219 = vld [vmem:[#allocation5 + $0x288] sm:$0xff]
    %v220 = vld [vmem:[#allocation5 + $0x290] sm:$0xf]
    %v221 = vld [vmem:[#allocation5 + $0x294] sm:$0xff]
    %v222 = vld [vmem:[#allocation5 + $0x29c] sm:$0xf]
    %v223 = vld [vmem:[#allocation5 + $0x2a0] sm:$0xff]
    %v224 = vld [vmem:[#allocation5 + $0x2a8] sm:$0xf]
    %v225 = vld [vmem:[#allocation5 + $0x2ac] sm:$0xff]
    %v226 = vld [vmem:[#allocation5 + $0x2b4] sm:$0xf]
    %v227 = vld [vmem:[#allocation5 + $0x2b8] sm:$0xff]
    %v228 = vld [vmem:[#allocation5 + $0x2c0] sm:$0xf]
    %v229 = vld [vmem:[#allocation5 + $0x2c4] sm:$0xff]
    %v230 = vld [vmem:[#allocation5 + $0x2cc] sm:$0xf]
    %v231 = vld [vmem:[#allocation5 + $0x2d0] sm:$0xff]
    %v232 = vld [vmem:[#allocation5 + $0x2d8] sm:$0xf]
    %v233 = vld [vmem:[#allocation5 + $0x2dc] sm:$0xff]
    %v234 = vld [vmem:[#allocation5 + $0x2e4] sm:$0xf]
    %v235 = vld [vmem:[#allocation5 + $0x2e8] sm:$0xff]
    %v236 = vld [vmem:[#allocation5 + $0x2f0] sm:$0xf]
    %v237 = vld [vmem:[#allocation5 + $0x2f4] sm:$0xff]
    %v238 = vld [vmem:[#allocation5 + $0x2fc] sm:$0xf]
    %v239 = vld [vmem:[#allocation5 + $0x300] sm:$0xff]
    %v240 = vld [vmem:[#allocation5 + $0x308] sm:$0xf]
    %v241 = vld [vmem:[#allocation5 + $0x30c] sm:$0xff]
    %v242 = vld [vmem:[#allocation5 + $0x314] sm:$0xf]
    %v243 = vld [vmem:[#allocation5 + $0x318] sm:$0xff]
    %v244 = vld [vmem:[#allocation5 + $0x320] sm:$0xf]
    %v245 = vld [vmem:[#allocation5 + $0x324] sm:$0xff]
    %v246 = vld [vmem:[#allocation5 + $0x32c] sm:$0xf]
    %v247 = vld [vmem:[#allocation5 + $0x330] sm:$0xff]
    %v248 = vld [vmem:[#allocation5 + $0x338] sm:$0xf]
    %v249 = vld [vmem:[#allocation5 + $0x33c] sm:$0xff]
    %v250 = vld [vmem:[#allocation5 + $0x344] sm:$0xf]
    %v251 = vld [vmem:[#allocation5 + $0x348] sm:$0xff]
    %v252 = vld [vmem:[#allocation5 + $0x350] sm:$0xf]
    %v253 = vld [vmem:[#allocation5 + $0x354] sm:$0xff]
    %v254 = vld [vmem:[#allocation5 + $0x35c] sm:$0xf]
    %v255 = vld [vmem:[#allocation5 + $0x360] sm:$0xff]
    %v256 = vld [vmem:[#allocation5 + $0x368] sm:$0xf]
    %v257 = vld [vmem:[#allocation5 + $0x36c] sm:$0xff]
    %v258 = vld [vmem:[#allocation5 + $0x374] sm:$0xf]
    %v259 = vld [vmem:[#allocation5 + $0x378] sm:$0xff]
    %v260 = vld [vmem:[#allocation5 + $0x380] sm:$0xf]
    %v261 = vld [vmem:[#allocation5 + $0x384] sm:$0xff]
    %v262 = vld [vmem:[#allocation5 + $0x38c] sm:$0xf]
    %v263 = vld [vmem:[#allocation5 + $0x390] sm:$0xff]
    %v264 = vld [vmem:[#allocation5 + $0x398] sm:$0xf]
    %v265 = vld [vmem:[#allocation5 + $0x39c] sm:$0xff]
    %v266 = vld [vmem:[#allocation5 + $0x3a4] sm:$0xf]
    %v267 = vld [vmem:[#allocation5 + $0x3a8] sm:$0xff]
    %v268 = vld [vmem:[#allocation5 + $0x3b0] sm:$0xf]
    %v269 = vld [vmem:[#allocation5 + $0x3b4] sm:$0xff]
    %v270 = vld [vmem:[#allocation5 + $0x3bc] sm:$0xf]
    %v271 = vld [vmem:[#allocation5 + $0x3c0] sm:$0xff]
    %v272 = vld [vmem:[#allocation5 + $0x3c8] sm:$0xf]
    %v273 = vld [vmem:[#allocation5 + $0x3cc] sm:$0xff]
    %v274 = vld [vmem:[#allocation5 + $0x3d4] sm:$0xf]
    %v275 = vld [vmem:[#allocation5 + $0x3d8] sm:$0xff]
    %v276 = vld [vmem:[#allocation5 + $0x3e0] sm:$0xf]
    %v277 = vld [vmem:[#allocation5 + $0x3e4] sm:$0xff]
    %v278 = vld [vmem:[#allocation5 + $0x3ec] sm:$0xf]
    %v279 = vld [vmem:[#allocation5 + $0x3f0] sm:$0xff]
    %v280 = vld [vmem:[#allocation5 + $0x3f8] sm:$0xf]
    %v281 = vld [vmem:[#allocation5 + $0x3fc] sm:$0xff]
    %v282 = vld [vmem:[#allocation5 + $0x404] sm:$0xf]
    %v283 = vld [vmem:[#allocation5 + $0x408] sm:$0xff]
    %v284 = vld [vmem:[#allocation5 + $0x410] sm:$0xf]
    %v285 = vld [vmem:[#allocation5 + $0x414] sm:$0xff]
    %v286 = vld [vmem:[#allocation5 + $0x41c] sm:$0xf]
    %v287 = vld [vmem:[#allocation5 + $0x420] sm:$0xff]
    %v288 = vld [vmem:[#allocation5 + $0x428] sm:$0xf]
    %v289 = vld [vmem:[#allocation5 + $0x42c] sm:$0xff]
    %v290 = vld [vmem:[#allocation5 + $0x434] sm:$0xf]
    %v291 = vld [vmem:[#allocation5 + $0x438] sm:$0xff]
    %v292 = vld [vmem:[#allocation5 + $0x440] sm:$0xf]
    %v293 = vld [vmem:[#allocation5 + $0x444] sm:$0xff]
    %v294 = vld [vmem:[#allocation5 + $0x44c] sm:$0xf]
    %v295 = vld [vmem:[#allocation5 + $0x450] sm:$0xff]
    %v296 = vld [vmem:[#allocation5 + $0x458] sm:$0xf]
    %v297 = vld [vmem:[#allocation5 + $0x45c] sm:$0xff]
    %v298 = vld [vmem:[#allocation5 + $0x464] sm:$0xf]
    %v299 = vld [vmem:[#allocation5 + $0x468] sm:$0xff]
    %v300 = vld [vmem:[#allocation5 + $0x470] sm:$0xf]
    %v301 = vld [vmem:[#allocation5 + $0x474] sm:$0xff]
    %v302 = vld [vmem:[#allocation5 + $0x47c] sm:$0xf]
    %v303 = vld [vmem:[#allocation5 + $0x480] sm:$0xff]
    %v304 = vld [vmem:[#allocation5 + $0x488] sm:$0xf]
    %v305 = vld [vmem:[#allocation5 + $0x48c] sm:$0xff]
    %v306 = vld [vmem:[#allocation5 + $0x494] sm:$0xf]
    %v307 = vld [vmem:[#allocation5 + $0x498] sm:$0xff]
    %v308 = vld [vmem:[#allocation5 + $0x4a0] sm:$0xf]
    %v309 = vld [vmem:[#allocation5 + $0x4a4] sm:$0xff]
    %v310 = vld [vmem:[#allocation5 + $0x4ac] sm:$0xf]
    %v311 = vld [vmem:[#allocation5 + $0x4b0] sm:$0xff]
    %v312 = vld [vmem:[#allocation5 + $0x4b8] sm:$0xf]
    %v313 = vld [vmem:[#allocation5 + $0x4bc] sm:$0xff]
    %v314 = vld [vmem:[#allocation5 + $0x4c4] sm:$0xf]
    %v315 = vld [vmem:[#allocation5 + $0x4c8] sm:$0xff]
    %v316 = vld [vmem:[#allocation5 + $0x4d0] sm:$0xf]
    %v317 = vld [vmem:[#allocation5 + $0x4d4] sm:$0xff]
    %v318 = vld [vmem:[#allocation5 + $0x4dc] sm:$0xf]
    %v319 = vld [vmem:[#allocation5 + $0x4e0] sm:$0xff]
    %v320 = vld [vmem:[#allocation5 + $0x4e8] sm:$0xf]
    %v321 = vld [vmem:[#allocation5 + $0x4ec] sm:$0xff]
    %v322 = vld [vmem:[#allocation5 + $0x4f4] sm:$0xf]
    %v323 = vld [vmem:[#allocation5 + $0x4f8] sm:$0xff]
    %v324 = vld [vmem:[#allocation5 + $0x500] sm:$0xf]
    %v325 = vld [vmem:[#allocation5 + $0x504] sm:$0xff]
    %v326 = vld [vmem:[#allocation5 + $0x50c] sm:$0xf]
    %v327 = vld [vmem:[#allocation5 + $0x510] sm:$0xff]
    %v328 = vld [vmem:[#allocation5 + $0x518] sm:$0xf]
    %v329 = vld [vmem:[#allocation5 + $0x51c] sm:$0xff]
    %v330 = vld [vmem:[#allocation5 + $0x524] sm:$0xf]
    %v331 = vld [vmem:[#allocation5 + $0x528] sm:$0xff]
    %v332 = vld [vmem:[#allocation5 + $0x530] sm:$0xf]
    %v333 = vld [vmem:[#allocation5 + $0x534] sm:$0xff]
    %v334 = vld [vmem:[#allocation5 + $0x53c] sm:$0xf]
    %v335 = vld [vmem:[#allocation5 + $0x540] sm:$0xff]
    %v336 = vld [vmem:[#allocation5 + $0x548] sm:$0xf]
    %v337 = vld [vmem:[#allocation5 + $0x54c] sm:$0xff]
    %v338 = vld [vmem:[#allocation5 + $0x554] sm:$0xf]
    %v339 = vld [vmem:[#allocation5 + $0x558] sm:$0xff]
    %v340 = vld [vmem:[#allocation5 + $0x560] sm:$0xf]
    %v341 = vld [vmem:[#allocation5 + $0x564] sm:$0xff]
    %v342 = vld [vmem:[#allocation5 + $0x56c] sm:$0xf]
    %v343 = vld [vmem:[#allocation5 + $0x570] sm:$0xff]
    %v344 = vld [vmem:[#allocation5 + $0x578] sm:$0xf]
    %v345 = vld [vmem:[#allocation5 + $0x57c] sm:$0xff]
    %v346 = vld [vmem:[#allocation5 + $0x584] sm:$0xf]
    %v347 = vld [vmem:[#allocation5 + $0x588] sm:$0xff]
    %v348 = vld [vmem:[#allocation5 + $0x590] sm:$0xf]
    %v349 = vld [vmem:[#allocation5 + $0x594] sm:$0xff]
    %v350 = vld [vmem:[#allocation5 + $0x59c] sm:$0xf]
    %v351 = vld [vmem:[#allocation5 + $0x5a0] sm:$0xff]
    %v352 = vld [vmem:[#allocation5 + $0x5a8] sm:$0xf]
    %v353 = vld [vmem:[#allocation5 + $0x5ac] sm:$0xff]
    %v354 = vld [vmem:[#allocation5 + $0x5b4] sm:$0xf]
    %v355 = vld [vmem:[#allocation5 + $0x5b8] sm:$0xff]
    %v356 = vld [vmem:[#allocation5 + $0x5c0] sm:$0xf]
    %v357 = vld [vmem:[#allocation5 + $0x5c4] sm:$0xff]
    %v358 = vld [vmem:[#allocation5 + $0x5cc] sm:$0xf]
    %v359 = vld [vmem:[#allocation5 + $0x5d0] sm:$0xff]
    %v360 = vld [vmem:[#allocation5 + $0x5d8] sm:$0xf]
    %v361 = vld [vmem:[#allocation5 + $0x5dc] sm:$0xff]
    %v362 = vld [vmem:[#allocation5 + $0x5e4] sm:$0xf]
    %v363 = vld [vmem:[#allocation5 + $0x5e8] sm:$0xff]
    %v364 = vld [vmem:[#allocation5 + $0x5f0] sm:$0xf]
    %v365 = vld [vmem:[#allocation5 + $0x5f4] sm:$0xff]
    %v366 = vld [vmem:[#allocation5 + $0x5fc] sm:$0xf]
    %v367 = vld [vmem:[#allocation5 + $0x600] sm:$0xff]
    %v368 = vld [vmem:[#allocation5 + $0x608] sm:$0xf]
    %v369 = vld [vmem:[#allocation5 + $0x60c] sm:$0xff]
    %v370 = vld [vmem:[#allocation5 + $0x614] sm:$0xf]
    %v371 = vld [vmem:[#allocation5 + $0x618] sm:$0xff]
    %v372 = vld [vmem:[#allocation5 + $0x620] sm:$0xf]
    %v373 = vld [vmem:[#allocation5 + $0x624] sm:$0xff]
    %v374 = vld [vmem:[#allocation5 + $0x62c] sm:$0xf]
    %v375 = vld [vmem:[#allocation5 + $0x630] sm:$0xff]
    %v376 = vld [vmem:[#allocation5 + $0x638] sm:$0xf]
    %v377 = vld [vmem:[#allocation5 + $0x63c] sm:$0xff]
    %v378 = vld [vmem:[#allocation5 + $0x644] sm:$0xf]
    %v379 = vld [vmem:[#allocation5 + $0x648] sm:$0xff]
    %v380 = vld [vmem:[#allocation5 + $0x650] sm:$0xf]
    %v381 = vld [vmem:[#allocation5 + $0x654] sm:$0xff]
    %v382 = vld [vmem:[#allocation5 + $0x65c] sm:$0xf]
    %v383 = vld [vmem:[#allocation5 + $0x660] sm:$0xff]
    %v384 = vld [vmem:[#allocation5 + $0x668] sm:$0xf]
    %v385 = vld [vmem:[#allocation5 + $0x66c] sm:$0xff]
    %v386 = vld [vmem:[#allocation5 + $0x674] sm:$0xf]
    %v387 = vld [vmem:[#allocation5 + $0x678] sm:$0xff]
    %v388 = vld [vmem:[#allocation5 + $0x680] sm:$0xf]
    %v389 = vld [vmem:[#allocation5 + $0x684] sm:$0xff]
    %v390 = vld [vmem:[#allocation5 + $0x68c] sm:$0xf]
    %v391 = vld [vmem:[#allocation5 + $0x690] sm:$0xff]
    %v392 = vld [vmem:[#allocation5 + $0x698] sm:$0xf]
    %v393 = vld [vmem:[#allocation5 + $0x69c] sm:$0xff]
    %v394 = vld [vmem:[#allocation5 + $0x6a4] sm:$0xf]
    %v395 = vld [vmem:[#allocation5 + $0x6a8] sm:$0xff]
    %v396 = vld [vmem:[#allocation5 + $0x6b0] sm:$0xf]
    %v397 = vld [vmem:[#allocation5 + $0x6b4] sm:$0xff]
    %v398 = vld [vmem:[#allocation5 + $0x6bc] sm:$0xf]
    %v399 = vld [vmem:[#allocation5 + $0x6c0] sm:$0xff]
    %v400 = vld [vmem:[#allocation5 + $0x6c8] sm:$0xf]
    %v401 = vld [vmem:[#allocation5 + $0x6cc] sm:$0xff]
    %v402 = vld [vmem:[#allocation5 + $0x6d4] sm:$0xf]
    %v403 = vld [vmem:[#allocation5 + $0x6d8] sm:$0xff]
    %v404 = vld [vmem:[#allocation5 + $0x6e0] sm:$0xf]
    %v405 = vld [vmem:[#allocation5 + $0x6e4] sm:$0xff]
    %v406 = vld [vmem:[#allocation5 + $0x6ec] sm:$0xf]
    %v407 = vld [vmem:[#allocation5 + $0x6f0] sm:$0xff]
    %v408 = vld [vmem:[#allocation5 + $0x6f8] sm:$0xf]
    %v409 = vld [vmem:[#allocation5 + $0x6fc] sm:$0xff]
    %v410 = vld [vmem:[#allocation5 + $0x704] sm:$0xf]
    %v411 = vld [vmem:[#allocation5 + $0x708] sm:$0xff]
    %v412 = vld [vmem:[#allocation5 + $0x710] sm:$0xf]
    %v413 = vld [vmem:[#allocation5 + $0x714] sm:$0xff]
    %v414 = vld [vmem:[#allocation5 + $0x71c] sm:$0xf]
    %v415 = vld [vmem:[#allocation5 + $0x720] sm:$0xff]
    %v416 = vld [vmem:[#allocation5 + $0x728] sm:$0xf]
    %v417 = vld [vmem:[#allocation5 + $0x72c] sm:$0xff]
    %v418 = vld [vmem:[#allocation5 + $0x734] sm:$0xf]
    %v419 = vld [vmem:[#allocation5 + $0x738] sm:$0xff]
    %v420 = vld [vmem:[#allocation5 + $0x740] sm:$0xf]
    %v421 = vld [vmem:[#allocation5 + $0x744] sm:$0xff]
    %v422 = vld [vmem:[#allocation5 + $0x74c] sm:$0xf]
    %v423 = vld [vmem:[#allocation5 + $0x750] sm:$0xff]
    %v424 = vld [vmem:[#allocation5 + $0x758] sm:$0xf]
    %v425 = vld [vmem:[#allocation5 + $0x75c] sm:$0xff]
    %v426 = vld [vmem:[#allocation5 + $0x764] sm:$0xf]
    %v427 = vld [vmem:[#allocation5 + $0x768] sm:$0xff]
    %v428 = vld [vmem:[#allocation5 + $0x770] sm:$0xf]
    %v429 = vld [vmem:[#allocation5 + $0x774] sm:$0xff]
    %v430 = vld [vmem:[#allocation5 + $0x77c] sm:$0xf]
    %v431 = vld [vmem:[#allocation5 + $0x780] sm:$0xff]
    %v432 = vld [vmem:[#allocation5 + $0x788] sm:$0xf]
    %v433 = vld [vmem:[#allocation5 + $0x78c] sm:$0xff]
    %v434 = vld [vmem:[#allocation5 + $0x794] sm:$0xf]
    %v435 = vld [vmem:[#allocation5 + $0x798] sm:$0xff]
    %v436 = vld [vmem:[#allocation5 + $0x7a0] sm:$0xf]
    %v437 = vld [vmem:[#allocation5 + $0x7a4] sm:$0xff]
    %v438 = vld [vmem:[#allocation5 + $0x7ac] sm:$0xf]
    %v439 = vld [vmem:[#allocation5 + $0x7b0] sm:$0xff]
    %v440 = vld [vmem:[#allocation5 + $0x7b8] sm:$0xf]
    %v441 = vld [vmem:[#allocation5 + $0x7bc] sm:$0xff]
    %v442 = vld [vmem:[#allocation5 + $0x7c4] sm:$0xf]
    %v443 = vld [vmem:[#allocation5 + $0x7c8] sm:$0xff]
    %v444 = vld [vmem:[#allocation5 + $0x7d0] sm:$0xf]
    %v445 = vld [vmem:[#allocation5 + $0x7d4] sm:$0xff]
    %v446 = vld [vmem:[#allocation5 + $0x7dc] sm:$0xf]
    %v447 = vld [vmem:[#allocation5 + $0x7e0] sm:$0xff]
    %v448 = vld [vmem:[#allocation5 + $0x7e8] sm:$0xf]
    %v449 = vld [vmem:[#allocation5 + $0x7ec] sm:$0xff]
    %v450 = vld [vmem:[#allocation5 + $0x7f4] sm:$0xf]
    %v451 = vld [vmem:[#allocation5 + $0x7f8] sm:$0xff]
    %v452 = vld [vmem:[#allocation5 + $0x800] sm:$0xf]
    %v453 = vld [vmem:[#allocation5 + $0x804] sm:$0xff]
    %v454 = vld [vmem:[#allocation5 + $0x80c] sm:$0xf]
    %v455 = vld [vmem:[#allocation5 + $0x810] sm:$0xff]
    %v456 = vld [vmem:[#allocation5 + $0x818] sm:$0xf]
    %v457 = vld [vmem:[#allocation5 + $0x81c] sm:$0xff]
    %v458 = vld [vmem:[#allocation5 + $0x824] sm:$0xf]
    %v459 = vld [vmem:[#allocation5 + $0x828] sm:$0xff]
    %v460 = vld [vmem:[#allocation5 + $0x830] sm:$0xf]
    %v461 = vld [vmem:[#allocation5 + $0x834] sm:$0xff]
    %v462 = vld [vmem:[#allocation5 + $0x83c] sm:$0xf]
    %v463 = vld [vmem:[#allocation5 + $0x840] sm:$0xff]
    %v464 = vld [vmem:[#allocation5 + $0x848] sm:$0xf]
    %v465 = vld [vmem:[#allocation5 + $0x84c] sm:$0xff]
    %v466 = vld [vmem:[#allocation5 + $0x854] sm:$0xf]
    %v467 = vld [vmem:[#allocation5 + $0x858] sm:$0xff]
    %v468 = vld [vmem:[#allocation5 + $0x860] sm:$0xf]
    %v469 = vld [vmem:[#allocation5 + $0x864] sm:$0xff]
    %v470 = vld [vmem:[#allocation5 + $0x86c] sm:$0xf]
    %v471 = vld [vmem:[#allocation5 + $0x870] sm:$0xff]
    %v472 = vld [vmem:[#allocation5 + $0x878] sm:$0xf]
    %v473 = vld [vmem:[#allocation5 + $0x87c] sm:$0xff]
    %v474 = vld [vmem:[#allocation5 + $0x884] sm:$0xf]
    %v475 = vld [vmem:[#allocation5 + $0x888] sm:$0xff]
    %v476 = vld [vmem:[#allocation5 + $0x890] sm:$0xf]
    %v477 = vld [vmem:[#allocation5 + $0x894] sm:$0xff]
    %v478 = vld [vmem:[#allocation5 + $0x89c] sm:$0xf]
    %v479 = vld [vmem:[#allocation5 + $0x8a0] sm:$0xff]
    %v480 = vld [vmem:[#allocation5 + $0x8a8] sm:$0xf]
    %v481 = vld [vmem:[#allocation5 + $0x8ac] sm:$0xff]
    %v482 = vld [vmem:[#allocation5 + $0x8b4] sm:$0xf]
    %v483 = vld [vmem:[#allocation5 + $0x8b8] sm:$0xff]
    %v484 = vld [vmem:[#allocation5 + $0x8c0] sm:$0xf]
    %v485 = vld [vmem:[#allocation5 + $0x8c4] sm:$0xff]
    %v486 = vld [vmem:[#allocation5 + $0x8cc] sm:$0xf]
    %v487 = vld [vmem:[#allocation5 + $0x8d0] sm:$0xff]
    %v488 = vld [vmem:[#allocation5 + $0x8d8] sm:$0xf]
    %v489 = vld [vmem:[#allocation5 + $0x8dc] sm:$0xff]
    %v490 = vld [vmem:[#allocation5 + $0x8e4] sm:$0xf]
    %v491 = vld [vmem:[#allocation5 + $0x8e8] sm:$0xff]
    %v492 = vld [vmem:[#allocation5 + $0x8f0] sm:$0xf]
    %v493 = vld [vmem:[#allocation5 + $0x8f4] sm:$0xff]
    %v494 = vld [vmem:[#allocation5 + $0x8fc] sm:$0xf]
    %v495 = vld [vmem:[#allocation5 + $0x900] sm:$0xff]
    %v496 = vld [vmem:[#allocation5 + $0x908] sm:$0xf]
    %v497 = vld [vmem:[#allocation5 + $0x90c] sm:$0xff]
    %v498 = vld [vmem:[#allocation5 + $0x914] sm:$0xf]
    %v499 = vld [vmem:[#allocation5 + $0x918] sm:$0xff]
    %v500 = vld [vmem:[#allocation5 + $0x920] sm:$0xf]
    %v501 = vld [vmem:[#allocation5 + $0x924] sm:$0xff]
    %v502 = vld [vmem:[#allocation5 + $0x92c] sm:$0xf]
    %v503 = vld [vmem:[#allocation5 + $0x930] sm:$0xff]
    %v504 = vld [vmem:[#allocation5 + $0x938] sm:$0xf]
    %v505 = vld [vmem:[#allocation5 + $0x93c] sm:$0xff]
    %v506 = vld [vmem:[#allocation5 + $0x944] sm:$0xf]
    %v507 = vld [vmem:[#allocation5 + $0x948] sm:$0xff]
    %v508 = vld [vmem:[#allocation5 + $0x950] sm:$0xf]
    %v509 = vld [vmem:[#allocation5 + $0x954] sm:$0xff]
    %v510 = vld [vmem:[#allocation5 + $0x95c] sm:$0xf]
    %v511 = vld [vmem:[#allocation5 + $0x960] sm:$0xff]
    %v512 = vld [vmem:[#allocation5 + $0x968] sm:$0xf]
    %v513 = vld [vmem:[#allocation5 + $0x96c] sm:$0xff]
    %v514 = vld [vmem:[#allocation5 + $0x974] sm:$0xf]
    %v515 = vld [vmem:[#allocation5 + $0x978] sm:$0xff]
    %v516 = vld [vmem:[#allocation5 + $0x980] sm:$0xf]
    %v517 = vld [vmem:[#allocation5 + $0x984] sm:$0xff]
    %v518 = vld [vmem:[#allocation5 + $0x98c] sm:$0xf]
    %v519 = vld [vmem:[#allocation5 + $0x990] sm:$0xff]
    %v520 = vld [vmem:[#allocation5 + $0x998] sm:$0xf]
    %v521 = vld [vmem:[#allocation5 + $0x99c] sm:$0xff]
    %v522 = vld [vmem:[#allocation5 + $0x9a4] sm:$0xf]
    %v523 = vld [vmem:[#allocation5 + $0x9a8] sm:$0xff]
    %v524 = vld [vmem:[#allocation5 + $0x9b0] sm:$0xf]
    %v525 = vld [vmem:[#allocation5 + $0x9b4] sm:$0xff]
    %v526 = vld [vmem:[#allocation5 + $0x9bc] sm:$0xf]
    %v527 = vld [vmem:[#allocation5 + $0x9c0] sm:$0xff]
    %v528 = vld [vmem:[#allocation5 + $0x9c8] sm:$0xf]
    %v529 = vld [vmem:[#allocation5 + $0x9cc] sm:$0xff]
    %v530 = vld [vmem:[#allocation5 + $0x9d4] sm:$0xf]
    %v531 = vld [vmem:[#allocation5 + $0x9d8] sm:$0xff]
    %v532 = vld [vmem:[#allocation5 + $0x9e0] sm:$0xf]
    %v533 = vld [vmem:[#allocation5 + $0x9e4] sm:$0xff]
    %v534 = vld [vmem:[#allocation5 + $0x9ec] sm:$0xf]
    %v535 = vld [vmem:[#allocation5 + $0x9f0] sm:$0xff]
    %v536 = vld [vmem:[#allocation5 + $0x9f8] sm:$0xf]
    %v537 = vld [vmem:[#allocation5 + $0x9fc] sm:$0xff]
    %v538 = vld [vmem:[#allocation5 + $0xa04] sm:$0xf]
    %v539 = vld [vmem:[#allocation5 + $0xa08] sm:$0xff]
    %v540 = vld [vmem:[#allocation5 + $0xa10] sm:$0xf]
    %v541 = vld [vmem:[#allocation5 + $0xa14] sm:$0xff]
    %v542 = vld [vmem:[#allocation5 + $0xa1c] sm:$0xf]
    %v543 = vld [vmem:[#allocation5 + $0xa20] sm:$0xff]
    %v544 = vld [vmem:[#allocation5 + $0xa28] sm:$0xf]
    %v545 = vld [vmem:[#allocation5 + $0xa2c] sm:$0xff]
    %v546 = vld [vmem:[#allocation5 + $0xa34] sm:$0xf]
    %v547 = vld [vmem:[#allocation5 + $0xa38] sm:$0xff]
    %v548 = vld [vmem:[#allocation5 + $0xa40] sm:$0xf]
    %v549 = vld [vmem:[#allocation5 + $0xa44] sm:$0xff]
    %v550 = vld [vmem:[#allocation5 + $0xa4c] sm:$0xf]
    %v551 = vld [vmem:[#allocation5 + $0xa50] sm:$0xff]
    %v552 = vld [vmem:[#allocation5 + $0xa58] sm:$0xf]
    %v553 = vld [vmem:[#allocation5 + $0xa5c] sm:$0xff]
    %v554 = vld [vmem:[#allocation5 + $0xa64] sm:$0xf]
    %v555 = vld [vmem:[#allocation5 + $0xa68] sm:$0xff]
    %v556 = vld [vmem:[#allocation5 + $0xa70] sm:$0xf]
    %v557 = vld [vmem:[#allocation5 + $0xa74] sm:$0xff]
    %v558 = vld [vmem:[#allocation5 + $0xa7c] sm:$0xf]
    %v559 = vld [vmem:[#allocation5 + $0xa80] sm:$0xff]
    %v560 = vld [vmem:[#allocation5 + $0xa88] sm:$0xf]
    %v561 = vld [vmem:[#allocation5 + $0xa8c] sm:$0xff]
    %v562 = vld [vmem:[#allocation5 + $0xa94] sm:$0xf]
    %v563 = vld [vmem:[#allocation5 + $0xa98] sm:$0xff]
    %v564 = vld [vmem:[#allocation5 + $0xaa0] sm:$0xf]
    %v565 = vld [vmem:[#allocation5 + $0xaa4] sm:$0xff]
    %v566 = vld [vmem:[#allocation5 + $0xaac] sm:$0xf]
    %v567 = vld [vmem:[#allocation5 + $0xab0] sm:$0xff]
    %v568 = vld [vmem:[#allocation5 + $0xab8] sm:$0xf]
    %v569 = vld [vmem:[#allocation5 + $0xabc] sm:$0xff]
    %v570 = vld [vmem:[#allocation5 + $0xac4] sm:$0xf]
    %v571 = vld [vmem:[#allocation5 + $0xac8] sm:$0xff]
    %v572 = vld [vmem:[#allocation5 + $0xad0] sm:$0xf]
    %v573 = vld [vmem:[#allocation5 + $0xad4] sm:$0xff]
    %v574 = vld [vmem:[#allocation5 + $0xadc] sm:$0xf]
    %v575 = vld [vmem:[#allocation5 + $0xae0] sm:$0xff]
    %v576 = vld [vmem:[#allocation5 + $0xae8] sm:$0xf]
    %v577 = vld [vmem:[#allocation5 + $0xaec] sm:$0xff]
    %v578 = vld [vmem:[#allocation5 + $0xaf4] sm:$0xf]
    %v579 = vld [vmem:[#allocation5 + $0xaf8] sm:$0xff]
    %v580 = vld [vmem:[#allocation5 + $0xb00] sm:$0xf]
    %v581 = vld [vmem:[#allocation5 + $0xb04] sm:$0xff]
    %v582 = vld [vmem:[#allocation5 + $0xb0c] sm:$0xf]
    %v583 = vld [vmem:[#allocation5 + $0xb10] sm:$0xff]
    %v584 = vld [vmem:[#allocation5 + $0xb18] sm:$0xf]
    %v585 = vld [vmem:[#allocation5 + $0xb1c] sm:$0xff]
    %v586 = vld [vmem:[#allocation5 + $0xb24] sm:$0xf]
    %v587 = vld [vmem:[#allocation5 + $0xb28] sm:$0xff]
    %v588 = vld [vmem:[#allocation5 + $0xb30] sm:$0xf]
    %v589 = vld [vmem:[#allocation5 + $0xb34] sm:$0xff]
    %v590 = vld [vmem:[#allocation5 + $0xb3c] sm:$0xf]
    %v591 = vld [vmem:[#allocation5 + $0xb40] sm:$0xff]
    %v592 = vld [vmem:[#allocation5 + $0xb48] sm:$0xf]
    %v593 = vld [vmem:[#allocation5 + $0xb4c] sm:$0xff]
    %v594 = vld [vmem:[#allocation5 + $0xb54] sm:$0xf]
    %v595 = vld [vmem:[#allocation5 + $0xb58] sm:$0xff]
    %v596 = vld [vmem:[#allocation5 + $0xb60] sm:$0xf]
    %v597 = vld [vmem:[#allocation5 + $0xb64] sm:$0xff]
    %v598 = vld [vmem:[#allocation5 + $0xb6c] sm:$0xf]
    %v599 = vld [vmem:[#allocation5 + $0xb70] sm:$0xff]
    %v600 = vld [vmem:[#allocation5 + $0xb78] sm:$0xf]
    %v601 = vld [vmem:[#allocation5 + $0xb7c] sm:$0xff]
    %v602 = vld [vmem:[#allocation5 + $0xb84] sm:$0xf]
    %v603 = vld [vmem:[#allocation5 + $0xb88] sm:$0xff]
    %v604 = vld [vmem:[#allocation5 + $0xb90] sm:$0xf]
    %v605 = vld [vmem:[#allocation5 + $0xb94] sm:$0xff]
    %v606 = vld [vmem:[#allocation5 + $0xb9c] sm:$0xf]
    %v607 = vld [vmem:[#allocation5 + $0xba0] sm:$0xff]
    %v608 = vld [vmem:[#allocation5 + $0xba8] sm:$0xf]
    %v609 = vld [vmem:[#allocation5 + $0xbac] sm:$0xff]
    %v610 = vld [vmem:[#allocation5 + $0xbb4] sm:$0xf]
    %v611 = vld [vmem:[#allocation5 + $0xbb8] sm:$0xff]
    %v612 = vld [vmem:[#allocation5 + $0xbc0] sm:$0xf]
    %v613 = vld [vmem:[#allocation5 + $0xbc4] sm:$0xff]
    %v614 = vld [vmem:[#allocation5 + $0xbcc] sm:$0xf]
    %v615 = vld [vmem:[#allocation5 + $0xbd0] sm:$0xff]
    %v616 = vld [vmem:[#allocation5 + $0xbd8] sm:$0xf]
    %v617 = vld [vmem:[#allocation5 + $0xbdc] sm:$0xff]
    %v618 = vld [vmem:[#allocation5 + $0xbe4] sm:$0xf]
    %v619 = vld [vmem:[#allocation5 + $0xbe8] sm:$0xff]
    %v620 = vld [vmem:[#allocation5 + $0xbf0] sm:$0xf]
    %v621 = vld [vmem:[#allocation5 + $0xbf4] sm:$0xff]
    %v622 = vld [vmem:[#allocation5 + $0xbfc] sm:$0xf]
    %v623 = vld [vmem:[#allocation5 + $0xc00] sm:$0xff]
    %v624 = vld [vmem:[#allocation5 + $0xc08] sm:$0xf]
    %v625 = vld [vmem:[#allocation5 + $0xc0c] sm:$0xff]
    %v626 = vld [vmem:[#allocation5 + $0xc14] sm:$0xf]
    %v627 = vld [vmem:[#allocation5 + $0xc18] sm:$0xff]
    %v628 = vld [vmem:[#allocation5 + $0xc20] sm:$0xf]
    %v629 = vld [vmem:[#allocation5 + $0xc24] sm:$0xff]
    %v630 = vld [vmem:[#allocation5 + $0xc2c] sm:$0xf]
    %v631 = vld [vmem:[#allocation5 + $0xc30] sm:$0xff]
    %v632 = vld [vmem:[#allocation5 + $0xc38] sm:$0xf]
    %v633 = vld [vmem:[#allocation5 + $0xc3c] sm:$0xff]
    %v634 = vld [vmem:[#allocation5 + $0xc44] sm:$0xf]
    %v635 = vld [vmem:[#allocation5 + $0xc48] sm:$0xff]
    %v636 = vld [vmem:[#allocation5 + $0xc50] sm:$0xf]
    %v637 = vld [vmem:[#allocation5 + $0xc54] sm:$0xff]
    %v638 = vld [vmem:[#allocation5 + $0xc5c] sm:$0xf]
    %v639 = vld [vmem:[#allocation5 + $0xc60] sm:$0xff]
    %v640 = vld [vmem:[#allocation5 + $0xc68] sm:$0xf]
    %v641 = vld [vmem:[#allocation5 + $0xc6c] sm:$0xff]
    %v642 = vld [vmem:[#allocation5 + $0xc74] sm:$0xf]
    %v643 = vld [vmem:[#allocation5 + $0xc78] sm:$0xff]
    %v644 = vld [vmem:[#allocation5 + $0xc80] sm:$0xf]
    %v645 = vld [vmem:[#allocation5 + $0xc84] sm:$0xff]
    %v646 = vld [vmem:[#allocation5 + $0xc8c] sm:$0xf]
    %v647 = vld [vmem:[#allocation5 + $0xc90] sm:$0xff]
    %v648 = vld [vmem:[#allocation5 + $0xc98] sm:$0xf]
    %v649 = vld [vmem:[#allocation5 + $0xc9c] sm:$0xff]
    %v650 = vld [vmem:[#allocation5 + $0xca4] sm:$0xf]
    %v651 = vld [vmem:[#allocation5 + $0xca8] sm:$0xff]
    %v652 = vld [vmem:[#allocation5 + $0xcb0] sm:$0xf]
    %v653 = vld [vmem:[#allocation5 + $0xcb4] sm:$0xff]
    %v654 = vld [vmem:[#allocation5 + $0xcbc] sm:$0xf]
    %v655 = vld [vmem:[#allocation5 + $0xcc0] sm:$0xff]
    %v656 = vld [vmem:[#allocation5 + $0xcc8] sm:$0xf]
    %v657 = vld [vmem:[#allocation5 + $0xccc] sm:$0xff]
    %v658 = vld [vmem:[#allocation5 + $0xcd4] sm:$0xf]
    %v659 = vld [vmem:[#allocation5 + $0xcd8] sm:$0xff]
    %v660 = vld [vmem:[#allocation5 + $0xce0] sm:$0xf]
    %v661 = vld [vmem:[#allocation5 + $0xce4] sm:$0xff]
    %v662 = vld [vmem:[#allocation5 + $0xcec] sm:$0xf]
    %v663 = vld [vmem:[#allocation5 + $0xcf0] sm:$0xff]
    %v664 = vld [vmem:[#allocation5 + $0xcf8] sm:$0xf]
    %v665 = vld [vmem:[#allocation5 + $0xcfc] sm:$0xff]
    %v666 = vld [vmem:[#allocation5 + $0xd04] sm:$0xf]
    %v667 = vld [vmem:[#allocation5 + $0xd08] sm:$0xff]
    %v668 = vld [vmem:[#allocation5 + $0xd10] sm:$0xf]
    %v669 = vld [vmem:[#allocation5 + $0xd14] sm:$0xff]
    %v670 = vld [vmem:[#allocation5 + $0xd1c] sm:$0xf]
    %v671 = vld [vmem:[#allocation5 + $0xd20] sm:$0xff]
    %v672 = vld [vmem:[#allocation5 + $0xd28] sm:$0xf]
    %v673 = vld [vmem:[#allocation5 + $0xd2c] sm:$0xff]
    %v674 = vld [vmem:[#allocation5 + $0xd34] sm:$0xf]
    %v675 = vld [vmem:[#allocation5 + $0xd38] sm:$0xff]
    %v676 = vld [vmem:[#allocation5 + $0xd40] sm:$0xf]
    %v677 = vld [vmem:[#allocation5 + $0xd44] sm:$0xff]
    %v678 = vld [vmem:[#allocation5 + $0xd4c] sm:$0xf]
    %v679 = vld [vmem:[#allocation5 + $0xd50] sm:$0xff]
    %v680 = vld [vmem:[#allocation5 + $0xd58] sm:$0xf]
    %v681 = vld [vmem:[#allocation5 + $0xd5c] sm:$0xff]
    %v682 = vld [vmem:[#allocation5 + $0xd64] sm:$0xf]
    %v683 = vld [vmem:[#allocation5 + $0xd68] sm:$0xff]
    %v684 = vld [vmem:[#allocation5 + $0xd70] sm:$0xf]
    %v685 = vld [vmem:[#allocation5 + $0xd74] sm:$0xff]
    %v686 = vld [vmem:[#allocation5 + $0xd7c] sm:$0xf]
    %v687 = vld [vmem:[#allocation7] sm:$0x7]
    %v689 = vlaneseq
    %v690 = vshrl.u32 %v689, 7
    %v691 = vsub.s32 0, %v690
    %v692 = vrot.slane %v687, %v691
    %v693 = vlaneseq
    %v694 = vshrl.u32 %v693, 7
    %v695 = vsub.s32 1, %v694
    %v696 = vrot.slane %v687, %v695
    %v697 = vlaneseq
    %v698 = vshrl.u32 %v697, 7
    %v699 = vsub.s32 2, %v698
    %v700 = vrot.slane %v687, %v699
    %v713 = vunpack.c.l.b16 %v102
    %v714 = vunpack.c.h.b16 %v102
    %v715 = vunpack.c.l.b16 %v103
    %v716 = vunpack.c.h.b16 %v103
    %v717 = vunpack.c.l.b16 %v104
    %v718 = vunpack.c.h.b16 %v104
    %v719 = vunpack.c.l.b16 %v105
    %v720 = vunpack.c.h.b16 %v105
    %v721 = vunpack.c.l.b16 %v106
    %v722 = vunpack.c.h.b16 %v106
    %v723 = vunpack.c.l.b16 %v107
    %v724 = vunpack.c.h.b16 %v107
    %v725 = vunpack.c.l.b16 %v108
    %v726 = vunpack.c.h.b16 %v108
    %v727 = vunpack.c.l.b16 %v109
    %v728 = vunpack.c.h.b16 %v109
    %v729 = vunpack.c.l.b16 %v110
    %v730 = vunpack.c.h.b16 %v110
    %v731 = vpack.c.b16 %v713, %v713
    %v732 = vpack.c.b16 %v714, %v714
    %v733 = vpack.c.b16 %v715, %v715
    %v734 = vpack.c.b16 %v716, %v716
    %v735 = vpack.c.b16 %v717, %v717
    %v736 = vpack.c.b16 %v718, %v718
    %v737 = vpack.c.b16 %v719, %v719
    %v738 = vpack.c.b16 %v720, %v720
    %v739 = vpack.c.b16 %v721, %v721
    %v740 = vpack.c.b16 %v722, %v722
    %v741 = vpack.c.b16 %v723, %v723
    %v742 = vpack.c.b16 %v724, %v724
    %v743 = vpack.c.b16 %v725, %v725
    %v744 = vpack.c.b16 %v726, %v726
    %v745 = vpack.c.b16 %v727, %v727
    %v746 = vpack.c.b16 %v728, %v728
    %v747 = vpack.c.b16 %v729, %v729
    %v748 = vpack.c.b16 %v730, %v730
    %v1343 = vunpack.c.l.b16 %v111
    %v1344 = vunpack.c.h.b16 %v111
    %v1345 = vunpack.c.l.b16 %v112
    %v1346 = vunpack.c.l.b16 %v113
    %v1347 = vunpack.c.h.b16 %v113
    %v1348 = vunpack.c.l.b16 %v114
    %v1349 = vunpack.c.l.b16 %v115
    %v1350 = vunpack.c.h.b16 %v115
    %v1351 = vunpack.c.l.b16 %v116
    %v1352 = vunpack.c.l.b16 %v117
    %v1353 = vunpack.c.h.b16 %v117
    %v1354 = vunpack.c.l.b16 %v118
    %v1355 = vunpack.c.l.b16 %v119
    %v1356 = vunpack.c.h.b16 %v119
    %v1357 = vunpack.c.l.b16 %v120
    %v1358 = vunpack.c.l.b16 %v121
    %v1359 = vunpack.c.h.b16 %v121
    %v1360 = vunpack.c.l.b16 %v122
    %v1361 = vunpack.c.l.b16 %v123
    %v1362 = vunpack.c.h.b16 %v123
    %v1363 = vunpack.c.l.b16 %v124
    %v1364 = vunpack.c.l.b16 %v125
    %v1365 = vunpack.c.h.b16 %v125
    %v1366 = vunpack.c.l.b16 %v126
    %v1367 = vunpack.c.l.b16 %v127
    %v1368 = vunpack.c.h.b16 %v127
    %v1369 = vunpack.c.l.b16 %v128
    %v1370 = vunpack.c.l.b16 %v129
    %v1371 = vunpack.c.h.b16 %v129
    %v1372 = vunpack.c.l.b16 %v130
    %v1373 = vunpack.c.l.b16 %v131
    %v1374 = vunpack.c.h.b16 %v131
    %v1375 = vunpack.c.l.b16 %v132
    %v1376 = vunpack.c.l.b16 %v133
    %v1377 = vunpack.c.h.b16 %v133
    %v1378 = vunpack.c.l.b16 %v134
    %v1379 = vunpack.c.l.b16 %v135
    %v1380 = vunpack.c.h.b16 %v135
    %v1381 = vunpack.c.l.b16 %v136
    %v1382 = vunpack.c.l.b16 %v137
    %v1383 = vunpack.c.h.b16 %v137
    %v1384 = vunpack.c.l.b16 %v138
    %v1385 = vunpack.c.l.b16 %v139
    %v1386 = vunpack.c.h.b16 %v139
    %v1387 = vunpack.c.l.b16 %v140
    %v1388 = vunpack.c.l.b16 %v141
    %v1389 = vunpack.c.h.b16 %v141
    %v1390 = vunpack.c.l.b16 %v142
    %v1391 = vunpack.c.l.b16 %v143
    %v1392 = vunpack.c.h.b16 %v143
    %v1393 = vunpack.c.l.b16 %v144
    %v1394 = vunpack.c.l.b16 %v145
    %v1395 = vunpack.c.h.b16 %v145
    %v1396 = vunpack.c.l.b16 %v146
    %v1397 = vunpack.c.l.b16 %v147
    %v1398 = vunpack.c.h.b16 %v147
    %v1399 = vunpack.c.l.b16 %v148
    %v1400 = vunpack.c.l.b16 %v149
    %v1401 = vunpack.c.h.b16 %v149
    %v1402 = vunpack.c.l.b16 %v150
    %v1403 = vunpack.c.l.b16 %v151
    %v1404 = vunpack.c.h.b16 %v151
    %v1405 = vunpack.c.l.b16 %v152
    %v1406 = vunpack.c.l.b16 %v153
    %v1407 = vunpack.c.h.b16 %v153
    %v1408 = vunpack.c.l.b16 %v154
    %v1409 = vunpack.c.l.b16 %v155
    %v1410 = vunpack.c.h.b16 %v155
    %v1411 = vunpack.c.l.b16 %v156
    %v1412 = vunpack.c.l.b16 %v157
    %v1413 = vunpack.c.h.b16 %v157
    %v1414 = vunpack.c.l.b16 %v158
    %v1415 = vunpack.c.l.b16 %v159
    %v1416 = vunpack.c.h.b16 %v159
    %v1417 = vunpack.c.l.b16 %v160
    %v1418 = vunpack.c.l.b16 %v161
    %v1419 = vunpack.c.h.b16 %v161
    %v1420 = vunpack.c.l.b16 %v162
    %v1421 = vunpack.c.l.b16 %v163
    %v1422 = vunpack.c.h.b16 %v163
    %v1423 = vunpack.c.l.b16 %v164
    %v1424 = vunpack.c.l.b16 %v165
    %v1425 = vunpack.c.h.b16 %v165
    %v1426 = vunpack.c.l.b16 %v166
    %v1427 = vunpack.c.l.b16 %v167
    %v1428 = vunpack.c.h.b16 %v167
    %v1429 = vunpack.c.l.b16 %v168
    %v1430 = vunpack.c.l.b16 %v169
    %v1431 = vunpack.c.h.b16 %v169
    %v1432 = vunpack.c.l.b16 %v170
    %v1433 = vunpack.c.l.b16 %v171
    %v1434 = vunpack.c.h.b16 %v171
    %v1435 = vunpack.c.l.b16 %v172
    %v1436 = vunpack.c.l.b16 %v173
    %v1437 = vunpack.c.h.b16 %v173
    %v1438 = vunpack.c.l.b16 %v174
    %v1439 = vunpack.c.l.b16 %v175
    %v1440 = vunpack.c.h.b16 %v175
    %v1441 = vunpack.c.l.b16 %v176
    %v1442 = vunpack.c.l.b16 %v177
    %v1443 = vunpack.c.h.b16 %v177
    %v1444 = vunpack.c.l.b16 %v178
    %v1445 = vunpack.c.l.b16 %v179
    %v1446 = vunpack.c.h.b16 %v179
    %v1447 = vunpack.c.l.b16 %v180
    %v1448 = vunpack.c.l.b16 %v181
    %v1449 = vunpack.c.h.b16 %v181
    %v1450 = vunpack.c.l.b16 %v182
    %v1451 = vunpack.c.l.b16 %v183
    %v1452 = vunpack.c.h.b16 %v183
    %v1453 = vunpack.c.l.b16 %v184
    %v1454 = vunpack.c.l.b16 %v185
    %v1455 = vunpack.c.h.b16 %v185
    %v1456 = vunpack.c.l.b16 %v186
    %v1457 = vunpack.c.l.b16 %v187
    %v1458 = vunpack.c.h.b16 %v187
    %v1459 = vunpack.c.l.b16 %v188
    %v1460 = vunpack.c.l.b16 %v189
    %v1461 = vunpack.c.h.b16 %v189
    %v1462 = vunpack.c.l.b16 %v190
    %v1463 = vunpack.c.l.b16 %v191
    %v1464 = vunpack.c.h.b16 %v191
    %v1465 = vunpack.c.l.b16 %v192
    %v1466 = vunpack.c.l.b16 %v193
    %v1467 = vunpack.c.h.b16 %v193
    %v1468 = vunpack.c.l.b16 %v194
    %v1469 = vunpack.c.l.b16 %v195
    %v1470 = vunpack.c.h.b16 %v195
    %v1471 = vunpack.c.l.b16 %v196
    %v1472 = vunpack.c.l.b16 %v197
    %v1473 = vunpack.c.h.b16 %v197
    %v1474 = vunpack.c.l.b16 %v198
    %v1475 = vunpack.c.l.b16 %v199
    %v1476 = vunpack.c.h.b16 %v199
    %v1477 = vunpack.c.l.b16 %v200
    %v1478 = vunpack.c.l.b16 %v201
    %v1479 = vunpack.c.h.b16 %v201
    %v1480 = vunpack.c.l.b16 %v202
    %v1481 = vunpack.c.l.b16 %v203
    %v1482 = vunpack.c.h.b16 %v203
    %v1483 = vunpack.c.l.b16 %v204
    %v1484 = vunpack.c.l.b16 %v205
    %v1485 = vunpack.c.h.b16 %v205
    %v1486 = vunpack.c.l.b16 %v206
    %v1487 = vunpack.c.l.b16 %v207
    %v1488 = vunpack.c.h.b16 %v207
    %v1489 = vunpack.c.l.b16 %v208
    %v1490 = vunpack.c.l.b16 %v209
    %v1491 = vunpack.c.h.b16 %v209
    %v1492 = vunpack.c.l.b16 %v210
    %v1493 = vunpack.c.l.b16 %v211
    %v1494 = vunpack.c.h.b16 %v211
    %v1495 = vunpack.c.l.b16 %v212
    %v1496 = vunpack.c.l.b16 %v213
    %v1497 = vunpack.c.h.b16 %v213
    %v1498 = vunpack.c.l.b16 %v214
    %v1499 = vunpack.c.l.b16 %v215
    %v1500 = vunpack.c.h.b16 %v215
    %v1501 = vunpack.c.l.b16 %v216
    %v1502 = vunpack.c.l.b16 %v217
    %v1503 = vunpack.c.h.b16 %v217
    %v1504 = vunpack.c.l.b16 %v218
    %v1505 = vunpack.c.l.b16 %v219
    %v1506 = vunpack.c.h.b16 %v219
    %v1507 = vunpack.c.l.b16 %v220
    %v1508 = vunpack.c.l.b16 %v221
    %v1509 = vunpack.c.h.b16 %v221
    %v1510 = vunpack.c.l.b16 %v222
    %v1511 = vunpack.c.l.b16 %v223
    %v1512 = vunpack.c.h.b16 %v223
    %v1513 = vunpack.c.l.b16 %v224
    %v1514 = vunpack.c.l.b16 %v225
    %v1515 = vunpack.c.h.b16 %v225
    %v1516 = vunpack.c.l.b16 %v226
    %v1517 = vunpack.c.l.b16 %v227
    %v1518 = vunpack.c.h.b16 %v227
    %v1519 = vunpack.c.l.b16 %v228
    %v1520 = vunpack.c.l.b16 %v229
    %v1521 = vunpack.c.h.b16 %v229
    %v1522 = vunpack.c.l.b16 %v230
    %v1523 = vunpack.c.l.b16 %v231
    %v1524 = vunpack.c.h.b16 %v231
    %v1525 = vunpack.c.l.b16 %v232
    %v1526 = vunpack.c.l.b16 %v233
    %v1527 = vunpack.c.h.b16 %v233
    %v1528 = vunpack.c.l.b16 %v234
    %v1529 = vunpack.c.l.b16 %v235
    %v1530 = vunpack.c.h.b16 %v235
    %v1531 = vunpack.c.l.b16 %v236
    %v1532 = vunpack.c.l.b16 %v237
    %v1533 = vunpack.c.h.b16 %v237
    %v1534 = vunpack.c.l.b16 %v238
    %v1535 = vunpack.c.l.b16 %v239
    %v1536 = vunpack.c.h.b16 %v239
    %v1537 = vunpack.c.l.b16 %v240
    %v1538 = vunpack.c.l.b16 %v241
    %v1539 = vunpack.c.h.b16 %v241
    %v1540 = vunpack.c.l.b16 %v242
    %v1541 = vunpack.c.l.b16 %v243
    %v1542 = vunpack.c.h.b16 %v243
    %v1543 = vunpack.c.l.b16 %v244
    %v1544 = vunpack.c.l.b16 %v245
    %v1545 = vunpack.c.h.b16 %v245
    %v1546 = vunpack.c.l.b16 %v246
    %v1547 = vunpack.c.l.b16 %v247
    %v1548 = vunpack.c.h.b16 %v247
    %v1549 = vunpack.c.l.b16 %v248
    %v1550 = vunpack.c.l.b16 %v249
    %v1551 = vunpack.c.h.b16 %v249
    %v1552 = vunpack.c.l.b16 %v250
    %v1553 = vunpack.c.l.b16 %v251
    %v1554 = vunpack.c.h.b16 %v251
    %v1555 = vunpack.c.l.b16 %v252
    %v1556 = vunpack.c.l.b16 %v253
    %v1557 = vunpack.c.h.b16 %v253
    %v1558 = vunpack.c.l.b16 %v254
    %v1559 = vunpack.c.l.b16 %v255
    %v1560 = vunpack.c.h.b16 %v255
    %v1561 = vunpack.c.l.b16 %v256
    %v1562 = vunpack.c.l.b16 %v257
    %v1563 = vunpack.c.h.b16 %v257
    %v1564 = vunpack.c.l.b16 %v258
    %v1565 = vunpack.c.l.b16 %v259
    %v1566 = vunpack.c.h.b16 %v259
    %v1567 = vunpack.c.l.b16 %v260
    %v1568 = vunpack.c.l.b16 %v261
    %v1569 = vunpack.c.h.b16 %v261
    %v1570 = vunpack.c.l.b16 %v262
    %v1571 = vunpack.c.l.b16 %v263
    %v1572 = vunpack.c.h.b16 %v263
    %v1573 = vunpack.c.l.b16 %v264
    %v1574 = vunpack.c.l.b16 %v265
    %v1575 = vunpack.c.h.b16 %v265
    %v1576 = vunpack.c.l.b16 %v266
    %v1577 = vunpack.c.l.b16 %v267
    %v1578 = vunpack.c.h.b16 %v267
    %v1579 = vunpack.c.l.b16 %v268
    %v1580 = vunpack.c.l.b16 %v269
    %v1581 = vunpack.c.h.b16 %v269
    %v1582 = vunpack.c.l.b16 %v270
    %v1583 = vunpack.c.l.b16 %v271
    %v1584 = vunpack.c.h.b16 %v271
    %v1585 = vunpack.c.l.b16 %v272
    %v1586 = vunpack.c.l.b16 %v273
    %v1587 = vunpack.c.h.b16 %v273
    %v1588 = vunpack.c.l.b16 %v274
    %v1589 = vunpack.c.l.b16 %v275
    %v1590 = vunpack.c.h.b16 %v275
    %v1591 = vunpack.c.l.b16 %v276
    %v1592 = vunpack.c.l.b16 %v277
    %v1593 = vunpack.c.h.b16 %v277
    %v1594 = vunpack.c.l.b16 %v278
    %v1595 = vunpack.c.l.b16 %v279
    %v1596 = vunpack.c.h.b16 %v279
    %v1597 = vunpack.c.l.b16 %v280
    %v1598 = vunpack.c.l.b16 %v281
    %v1599 = vunpack.c.h.b16 %v281
    %v1600 = vunpack.c.l.b16 %v282
    %v1601 = vunpack.c.l.b16 %v283
    %v1602 = vunpack.c.h.b16 %v283
    %v1603 = vunpack.c.l.b16 %v284
    %v1604 = vunpack.c.l.b16 %v285
    %v1605 = vunpack.c.h.b16 %v285
    %v1606 = vunpack.c.l.b16 %v286
    %v1607 = vunpack.c.l.b16 %v287
    %v1608 = vunpack.c.h.b16 %v287
    %v1609 = vunpack.c.l.b16 %v288
    %v1610 = vunpack.c.l.b16 %v289
    %v1611 = vunpack.c.h.b16 %v289
    %v1612 = vunpack.c.l.b16 %v290
    %v1613 = vunpack.c.l.b16 %v291
    %v1614 = vunpack.c.h.b16 %v291
    %v1615 = vunpack.c.l.b16 %v292
    %v1616 = vunpack.c.l.b16 %v293
    %v1617 = vunpack.c.h.b16 %v293
    %v1618 = vunpack.c.l.b16 %v294
    %v1619 = vunpack.c.l.b16 %v295
    %v1620 = vunpack.c.h.b16 %v295
    %v1621 = vunpack.c.l.b16 %v296
    %v1622 = vunpack.c.l.b16 %v297
    %v1623 = vunpack.c.h.b16 %v297
    %v1624 = vunpack.c.l.b16 %v298
    %v1625 = vunpack.c.l.b16 %v299
    %v1626 = vunpack.c.h.b16 %v299
    %v1627 = vunpack.c.l.b16 %v300
    %v1628 = vunpack.c.l.b16 %v301
    %v1629 = vunpack.c.h.b16 %v301
    %v1630 = vunpack.c.l.b16 %v302
    %v1631 = vunpack.c.l.b16 %v303
    %v1632 = vunpack.c.h.b16 %v303
    %v1633 = vunpack.c.l.b16 %v304
    %v1634 = vunpack.c.l.b16 %v305
    %v1635 = vunpack.c.h.b16 %v305
    %v1636 = vunpack.c.l.b16 %v306
    %v1637 = vunpack.c.l.b16 %v307
    %v1638 = vunpack.c.h.b16 %v307
    %v1639 = vunpack.c.l.b16 %v308
    %v1640 = vunpack.c.l.b16 %v309
    %v1641 = vunpack.c.h.b16 %v309
    %v1642 = vunpack.c.l.b16 %v310
    %v1643 = vunpack.c.l.b16 %v311
    %v1644 = vunpack.c.h.b16 %v311
    %v1645 = vunpack.c.l.b16 %v312
    %v1646 = vunpack.c.l.b16 %v313
    %v1647 = vunpack.c.h.b16 %v313
    %v1648 = vunpack.c.l.b16 %v314
    %v1649 = vunpack.c.l.b16 %v315
    %v1650 = vunpack.c.h.b16 %v315
    %v1651 = vunpack.c.l.b16 %v316
    %v1652 = vunpack.c.l.b16 %v317
    %v1653 = vunpack.c.h.b16 %v317
    %v1654 = vunpack.c.l.b16 %v318
    %v1655 = vunpack.c.l.b16 %v319
    %v1656 = vunpack.c.h.b16 %v319
    %v1657 = vunpack.c.l.b16 %v320
    %v1658 = vunpack.c.l.b16 %v321
    %v1659 = vunpack.c.h.b16 %v321
    %v1660 = vunpack.c.l.b16 %v322
    %v1661 = vunpack.c.l.b16 %v323
    %v1662 = vunpack.c.h.b16 %v323
    %v1663 = vunpack.c.l.b16 %v324
    %v1664 = vunpack.c.l.b16 %v325
    %v1665 = vunpack.c.h.b16 %v325
    %v1666 = vunpack.c.l.b16 %v326
    %v1667 = vunpack.c.l.b16 %v327
    %v1668 = vunpack.c.h.b16 %v327
    %v1669 = vunpack.c.l.b16 %v328
    %v1670 = vunpack.c.l.b16 %v329
    %v1671 = vunpack.c.h.b16 %v329
    %v1672 = vunpack.c.l.b16 %v330
    %v1673 = vunpack.c.l.b16 %v331
    %v1674 = vunpack.c.h.b16 %v331
    %v1675 = vunpack.c.l.b16 %v332
    %v1676 = vunpack.c.l.b16 %v333
    %v1677 = vunpack.c.h.b16 %v333
    %v1678 = vunpack.c.l.b16 %v334
    %v1679 = vunpack.c.l.b16 %v335
    %v1680 = vunpack.c.h.b16 %v335
    %v1681 = vunpack.c.l.b16 %v336
    %v1682 = vunpack.c.l.b16 %v337
    %v1683 = vunpack.c.h.b16 %v337
    %v1684 = vunpack.c.l.b16 %v338
    %v1685 = vunpack.c.l.b16 %v339
    %v1686 = vunpack.c.h.b16 %v339
    %v1687 = vunpack.c.l.b16 %v340
    %v1688 = vunpack.c.l.b16 %v341
    %v1689 = vunpack.c.h.b16 %v341
    %v1690 = vunpack.c.l.b16 %v342
    %v1691 = vunpack.c.l.b16 %v343
    %v1692 = vunpack.c.h.b16 %v343
    %v1693 = vunpack.c.l.b16 %v344
    %v1694 = vunpack.c.l.b16 %v345
    %v1695 = vunpack.c.h.b16 %v345
    %v1696 = vunpack.c.l.b16 %v346
    %v1697 = vunpack.c.l.b16 %v347
    %v1698 = vunpack.c.h.b16 %v347
    %v1699 = vunpack.c.l.b16 %v348
    %v1700 = vunpack.c.l.b16 %v349
    %v1701 = vunpack.c.h.b16 %v349
    %v1702 = vunpack.c.l.b16 %v350
    %v1703 = vunpack.c.l.b16 %v351
    %v1704 = vunpack.c.h.b16 %v351
    %v1705 = vunpack.c.l.b16 %v352
    %v1706 = vunpack.c.l.b16 %v353
    %v1707 = vunpack.c.h.b16 %v353
    %v1708 = vunpack.c.l.b16 %v354
    %v1709 = vunpack.c.l.b16 %v355
    %v1710 = vunpack.c.h.b16 %v355
    %v1711 = vunpack.c.l.b16 %v356
    %v1712 = vunpack.c.l.b16 %v357
    %v1713 = vunpack.c.h.b16 %v357
    %v1714 = vunpack.c.l.b16 %v358
    %v1715 = vunpack.c.l.b16 %v359
    %v1716 = vunpack.c.h.b16 %v359
    %v1717 = vunpack.c.l.b16 %v360
    %v1718 = vunpack.c.l.b16 %v361
    %v1719 = vunpack.c.h.b16 %v361
    %v1720 = vunpack.c.l.b16 %v362
    %v1721 = vunpack.c.l.b16 %v363
    %v1722 = vunpack.c.h.b16 %v363
    %v1723 = vunpack.c.l.b16 %v364
    %v1724 = vunpack.c.l.b16 %v365
    %v1725 = vunpack.c.h.b16 %v365
    %v1726 = vunpack.c.l.b16 %v366
    %v1727 = vunpack.c.l.b16 %v367
    %v1728 = vunpack.c.h.b16 %v367
    %v1729 = vunpack.c.l.b16 %v368
    %v1730 = vunpack.c.l.b16 %v369
    %v1731 = vunpack.c.h.b16 %v369
    %v1732 = vunpack.c.l.b16 %v370
    %v1733 = vunpack.c.l.b16 %v371
    %v1734 = vunpack.c.h.b16 %v371
    %v1735 = vunpack.c.l.b16 %v372
    %v1736 = vunpack.c.l.b16 %v373
    %v1737 = vunpack.c.h.b16 %v373
    %v1738 = vunpack.c.l.b16 %v374
    %v1739 = vunpack.c.l.b16 %v375
    %v1740 = vunpack.c.h.b16 %v375
    %v1741 = vunpack.c.l.b16 %v376
    %v1742 = vunpack.c.l.b16 %v377
    %v1743 = vunpack.c.h.b16 %v377
    %v1744 = vunpack.c.l.b16 %v378
    %v1745 = vunpack.c.l.b16 %v379
    %v1746 = vunpack.c.h.b16 %v379
    %v1747 = vunpack.c.l.b16 %v380
    %v1748 = vunpack.c.l.b16 %v381
    %v1749 = vunpack.c.h.b16 %v381
    %v1750 = vunpack.c.l.b16 %v382
    %v1751 = vunpack.c.l.b16 %v383
    %v1752 = vunpack.c.h.b16 %v383
    %v1753 = vunpack.c.l.b16 %v384
    %v1754 = vunpack.c.l.b16 %v385
    %v1755 = vunpack.c.h.b16 %v385
    %v1756 = vunpack.c.l.b16 %v386
    %v1757 = vunpack.c.l.b16 %v387
    %v1758 = vunpack.c.h.b16 %v387
    %v1759 = vunpack.c.l.b16 %v388
    %v1760 = vunpack.c.l.b16 %v389
    %v1761 = vunpack.c.h.b16 %v389
    %v1762 = vunpack.c.l.b16 %v390
    %v1763 = vunpack.c.l.b16 %v391
    %v1764 = vunpack.c.h.b16 %v391
    %v1765 = vunpack.c.l.b16 %v392
    %v1766 = vunpack.c.l.b16 %v393
    %v1767 = vunpack.c.h.b16 %v393
    %v1768 = vunpack.c.l.b16 %v394
    %v1769 = vunpack.c.l.b16 %v395
    %v1770 = vunpack.c.h.b16 %v395
    %v1771 = vunpack.c.l.b16 %v396
    %v1772 = vunpack.c.l.b16 %v397
    %v1773 = vunpack.c.h.b16 %v397
    %v1774 = vunpack.c.l.b16 %v398
    %v1775 = vunpack.c.l.b16 %v399
    %v1776 = vunpack.c.h.b16 %v399
    %v1777 = vunpack.c.l.b16 %v400
    %v1778 = vunpack.c.l.b16 %v401
    %v1779 = vunpack.c.h.b16 %v401
    %v1780 = vunpack.c.l.b16 %v402
    %v1781 = vunpack.c.l.b16 %v403
    %v1782 = vunpack.c.h.b16 %v403
    %v1783 = vunpack.c.l.b16 %v404
    %v1784 = vunpack.c.l.b16 %v405
    %v1785 = vunpack.c.h.b16 %v405
    %v1786 = vunpack.c.l.b16 %v406
    %v1787 = vunpack.c.l.b16 %v407
    %v1788 = vunpack.c.h.b16 %v407
    %v1789 = vunpack.c.l.b16 %v408
    %v1790 = vunpack.c.l.b16 %v409
    %v1791 = vunpack.c.h.b16 %v409
    %v1792 = vunpack.c.l.b16 %v410
    %v1793 = vunpack.c.l.b16 %v411
    %v1794 = vunpack.c.h.b16 %v411
    %v1795 = vunpack.c.l.b16 %v412
    %v1796 = vunpack.c.l.b16 %v413
    %v1797 = vunpack.c.h.b16 %v413
    %v1798 = vunpack.c.l.b16 %v414
    %v1799 = vunpack.c.l.b16 %v415
    %v1800 = vunpack.c.h.b16 %v415
    %v1801 = vunpack.c.l.b16 %v416
    %v1802 = vunpack.c.l.b16 %v417
    %v1803 = vunpack.c.h.b16 %v417
    %v1804 = vunpack.c.l.b16 %v418
    %v1805 = vunpack.c.l.b16 %v419
    %v1806 = vunpack.c.h.b16 %v419
    %v1807 = vunpack.c.l.b16 %v420
    %v1808 = vunpack.c.l.b16 %v421
    %v1809 = vunpack.c.h.b16 %v421
    %v1810 = vunpack.c.l.b16 %v422
    %v1811 = vunpack.c.l.b16 %v423
    %v1812 = vunpack.c.h.b16 %v423
    %v1813 = vunpack.c.l.b16 %v424
    %v1814 = vunpack.c.l.b16 %v425
    %v1815 = vunpack.c.h.b16 %v425
    %v1816 = vunpack.c.l.b16 %v426
    %v1817 = vunpack.c.l.b16 %v427
    %v1818 = vunpack.c.h.b16 %v427
    %v1819 = vunpack.c.l.b16 %v428
    %v1820 = vunpack.c.l.b16 %v429
    %v1821 = vunpack.c.h.b16 %v429
    %v1822 = vunpack.c.l.b16 %v430
    %v1823 = vunpack.c.l.b16 %v431
    %v1824 = vunpack.c.h.b16 %v431
    %v1825 = vunpack.c.l.b16 %v432
    %v1826 = vunpack.c.l.b16 %v433
    %v1827 = vunpack.c.h.b16 %v433
    %v1828 = vunpack.c.l.b16 %v434
    %v1829 = vunpack.c.l.b16 %v435
    %v1830 = vunpack.c.h.b16 %v435
    %v1831 = vunpack.c.l.b16 %v436
    %v1832 = vunpack.c.l.b16 %v437
    %v1833 = vunpack.c.h.b16 %v437
    %v1834 = vunpack.c.l.b16 %v438
    %v1835 = vunpack.c.l.b16 %v439
    %v1836 = vunpack.c.h.b16 %v439
    %v1837 = vunpack.c.l.b16 %v440
    %v1838 = vunpack.c.l.b16 %v441
    %v1839 = vunpack.c.h.b16 %v441
    %v1840 = vunpack.c.l.b16 %v442
    %v1841 = vunpack.c.l.b16 %v443
    %v1842 = vunpack.c.h.b16 %v443
    %v1843 = vunpack.c.l.b16 %v444
    %v1844 = vunpack.c.l.b16 %v445
    %v1845 = vunpack.c.h.b16 %v445
    %v1846 = vunpack.c.l.b16 %v446
    %v1847 = vunpack.c.l.b16 %v447
    %v1848 = vunpack.c.h.b16 %v447
    %v1849 = vunpack.c.l.b16 %v448
    %v1850 = vunpack.c.l.b16 %v449
    %v1851 = vunpack.c.h.b16 %v449
    %v1852 = vunpack.c.l.b16 %v450
    %v1853 = vunpack.c.l.b16 %v451
    %v1854 = vunpack.c.h.b16 %v451
    %v1855 = vunpack.c.l.b16 %v452
    %v1856 = vunpack.c.l.b16 %v453
    %v1857 = vunpack.c.h.b16 %v453
    %v1858 = vunpack.c.l.b16 %v454
    %v1859 = vunpack.c.l.b16 %v455
    %v1860 = vunpack.c.h.b16 %v455
    %v1861 = vunpack.c.l.b16 %v456
    %v1862 = vunpack.c.l.b16 %v457
    %v1863 = vunpack.c.h.b16 %v457
    %v1864 = vunpack.c.l.b16 %v458
    %v1865 = vunpack.c.l.b16 %v459
    %v1866 = vunpack.c.h.b16 %v459
    %v1867 = vunpack.c.l.b16 %v460
    %v1868 = vunpack.c.l.b16 %v461
    %v1869 = vunpack.c.h.b16 %v461
    %v1870 = vunpack.c.l.b16 %v462
    %v1871 = vunpack.c.l.b16 %v463
    %v1872 = vunpack.c.h.b16 %v463
    %v1873 = vunpack.c.l.b16 %v464
    %v1874 = vunpack.c.l.b16 %v465
    %v1875 = vunpack.c.h.b16 %v465
    %v1876 = vunpack.c.l.b16 %v466
    %v1877 = vunpack.c.l.b16 %v467
    %v1878 = vunpack.c.h.b16 %v467
    %v1879 = vunpack.c.l.b16 %v468
    %v1880 = vunpack.c.l.b16 %v469
    %v1881 = vunpack.c.h.b16 %v469
    %v1882 = vunpack.c.l.b16 %v470
    %v1883 = vunpack.c.l.b16 %v471
    %v1884 = vunpack.c.h.b16 %v471
    %v1885 = vunpack.c.l.b16 %v472
    %v1886 = vunpack.c.l.b16 %v473
    %v1887 = vunpack.c.h.b16 %v473
    %v1888 = vunpack.c.l.b16 %v474
    %v1889 = vunpack.c.l.b16 %v475
    %v1890 = vunpack.c.h.b16 %v475
    %v1891 = vunpack.c.l.b16 %v476
    %v1892 = vunpack.c.l.b16 %v477
    %v1893 = vunpack.c.h.b16 %v477
    %v1894 = vunpack.c.l.b16 %v478
    %v1895 = vunpack.c.l.b16 %v479
    %v1896 = vunpack.c.h.b16 %v479
    %v1897 = vunpack.c.l.b16 %v480
    %v1898 = vunpack.c.l.b16 %v481
    %v1899 = vunpack.c.h.b16 %v481
    %v1900 = vunpack.c.l.b16 %v482
    %v1901 = vunpack.c.l.b16 %v483
    %v1902 = vunpack.c.h.b16 %v483
    %v1903 = vunpack.c.l.b16 %v484
    %v1904 = vunpack.c.l.b16 %v485
    %v1905 = vunpack.c.h.b16 %v485
    %v1906 = vunpack.c.l.b16 %v486
    %v1907 = vunpack.c.l.b16 %v487
    %v1908 = vunpack.c.h.b16 %v487
    %v1909 = vunpack.c.l.b16 %v488
    %v1910 = vunpack.c.l.b16 %v489
    %v1911 = vunpack.c.h.b16 %v489
    %v1912 = vunpack.c.l.b16 %v490
    %v1913 = vunpack.c.l.b16 %v491
    %v1914 = vunpack.c.h.b16 %v491
    %v1915 = vunpack.c.l.b16 %v492
    %v1916 = vunpack.c.l.b16 %v493
    %v1917 = vunpack.c.h.b16 %v493
    %v1918 = vunpack.c.l.b16 %v494
    %v1919 = vunpack.c.l.b16 %v495
    %v1920 = vunpack.c.h.b16 %v495
    %v1921 = vunpack.c.l.b16 %v496
    %v1922 = vunpack.c.l.b16 %v497
    %v1923 = vunpack.c.h.b16 %v497
    %v1924 = vunpack.c.l.b16 %v498
    %v1925 = vunpack.c.l.b16 %v499
    %v1926 = vunpack.c.h.b16 %v499
    %v1927 = vunpack.c.l.b16 %v500
    %v1928 = vunpack.c.l.b16 %v501
    %v1929 = vunpack.c.h.b16 %v501
    %v1930 = vunpack.c.l.b16 %v502
    %v1931 = vunpack.c.l.b16 %v503
    %v1932 = vunpack.c.h.b16 %v503
    %v1933 = vunpack.c.l.b16 %v504
    %v1934 = vunpack.c.l.b16 %v505
    %v1935 = vunpack.c.h.b16 %v505
    %v1936 = vunpack.c.l.b16 %v506
    %v1937 = vunpack.c.l.b16 %v507
    %v1938 = vunpack.c.h.b16 %v507
    %v1939 = vunpack.c.l.b16 %v508
    %v1940 = vunpack.c.l.b16 %v509
    %v1941 = vunpack.c.h.b16 %v509
    %v1942 = vunpack.c.l.b16 %v510
    %v1943 = vunpack.c.l.b16 %v511
    %v1944 = vunpack.c.h.b16 %v511
    %v1945 = vunpack.c.l.b16 %v512
    %v1946 = vunpack.c.l.b16 %v513
    %v1947 = vunpack.c.h.b16 %v513
    %v1948 = vunpack.c.l.b16 %v514
    %v1949 = vunpack.c.l.b16 %v515
    %v1950 = vunpack.c.h.b16 %v515
    %v1951 = vunpack.c.l.b16 %v516
    %v1952 = vunpack.c.l.b16 %v517
    %v1953 = vunpack.c.h.b16 %v517
    %v1954 = vunpack.c.l.b16 %v518
    %v1955 = vunpack.c.l.b16 %v519
    %v1956 = vunpack.c.h.b16 %v519
    %v1957 = vunpack.c.l.b16 %v520
    %v1958 = vunpack.c.l.b16 %v521
    %v1959 = vunpack.c.h.b16 %v521
    %v1960 = vunpack.c.l.b16 %v522
    %v1961 = vunpack.c.l.b16 %v523
    %v1962 = vunpack.c.h.b16 %v523
    %v1963 = vunpack.c.l.b16 %v524
    %v1964 = vunpack.c.l.b16 %v525
    %v1965 = vunpack.c.h.b16 %v525
    %v1966 = vunpack.c.l.b16 %v526
    %v1967 = vunpack.c.l.b16 %v527
    %v1968 = vunpack.c.h.b16 %v527
    %v1969 = vunpack.c.l.b16 %v528
    %v1970 = vunpack.c.l.b16 %v529
    %v1971 = vunpack.c.h.b16 %v529
    %v1972 = vunpack.c.l.b16 %v530
    %v1973 = vunpack.c.l.b16 %v531
    %v1974 = vunpack.c.h.b16 %v531
    %v1975 = vunpack.c.l.b16 %v532
    %v1976 = vunpack.c.l.b16 %v533
    %v1977 = vunpack.c.h.b16 %v533
    %v1978 = vunpack.c.l.b16 %v534
    %v1979 = vunpack.c.l.b16 %v535
    %v1980 = vunpack.c.h.b16 %v535
    %v1981 = vunpack.c.l.b16 %v536
    %v1982 = vunpack.c.l.b16 %v537
    %v1983 = vunpack.c.h.b16 %v537
    %v1984 = vunpack.c.l.b16 %v538
    %v1985 = vunpack.c.l.b16 %v539
    %v1986 = vunpack.c.h.b16 %v539
    %v1987 = vunpack.c.l.b16 %v540
    %v1988 = vunpack.c.l.b16 %v541
    %v1989 = vunpack.c.h.b16 %v541
    %v1990 = vunpack.c.l.b16 %v542
    %v1991 = vunpack.c.l.b16 %v543
    %v1992 = vunpack.c.h.b16 %v543
    %v1993 = vunpack.c.l.b16 %v544
    %v1994 = vunpack.c.l.b16 %v545
    %v1995 = vunpack.c.h.b16 %v545
    %v1996 = vunpack.c.l.b16 %v546
    %v1997 = vunpack.c.l.b16 %v547
    %v1998 = vunpack.c.h.b16 %v547
    %v1999 = vunpack.c.l.b16 %v548
    %v2000 = vunpack.c.l.b16 %v549
    %v2001 = vunpack.c.h.b16 %v549
    %v2002 = vunpack.c.l.b16 %v550
    %v2003 = vunpack.c.l.b16 %v551
    %v2004 = vunpack.c.h.b16 %v551
    %v2005 = vunpack.c.l.b16 %v552
    %v2006 = vunpack.c.l.b16 %v553
    %v2007 = vunpack.c.h.b16 %v553
    %v2008 = vunpack.c.l.b16 %v554
    %v2009 = vunpack.c.l.b16 %v555
    %v2010 = vunpack.c.h.b16 %v555
    %v2011 = vunpack.c.l.b16 %v556
    %v2012 = vunpack.c.l.b16 %v557
    %v2013 = vunpack.c.h.b16 %v557
    %v2014 = vunpack.c.l.b16 %v558
    %v2015 = vunpack.c.l.b16 %v559
    %v2016 = vunpack.c.h.b16 %v559
    %v2017 = vunpack.c.l.b16 %v560
    %v2018 = vunpack.c.l.b16 %v561
    %v2019 = vunpack.c.h.b16 %v561
    %v2020 = vunpack.c.l.b16 %v562
    %v2021 = vunpack.c.l.b16 %v563
    %v2022 = vunpack.c.h.b16 %v563
    %v2023 = vunpack.c.l.b16 %v564
    %v2024 = vunpack.c.l.b16 %v565
    %v2025 = vunpack.c.h.b16 %v565
    %v2026 = vunpack.c.l.b16 %v566
    %v2027 = vunpack.c.l.b16 %v567
    %v2028 = vunpack.c.h.b16 %v567
    %v2029 = vunpack.c.l.b16 %v568
    %v2030 = vunpack.c.l.b16 %v569
    %v2031 = vunpack.c.h.b16 %v569
    %v2032 = vunpack.c.l.b16 %v570
    %v2033 = vunpack.c.l.b16 %v571
    %v2034 = vunpack.c.h.b16 %v571
    %v2035 = vunpack.c.l.b16 %v572
    %v2036 = vunpack.c.l.b16 %v573
    %v2037 = vunpack.c.h.b16 %v573
    %v2038 = vunpack.c.l.b16 %v574
    %v2039 = vunpack.c.l.b16 %v575
    %v2040 = vunpack.c.h.b16 %v575
    %v2041 = vunpack.c.l.b16 %v576
    %v2042 = vunpack.c.l.b16 %v577
    %v2043 = vunpack.c.h.b16 %v577
    %v2044 = vunpack.c.l.b16 %v578
    %v2045 = vunpack.c.l.b16 %v579
    %v2046 = vunpack.c.h.b16 %v579
    %v2047 = vunpack.c.l.b16 %v580
    %v2048 = vunpack.c.l.b16 %v581
    %v2049 = vunpack.c.h.b16 %v581
    %v2050 = vunpack.c.l.b16 %v582
    %v2051 = vunpack.c.l.b16 %v583
    %v2052 = vunpack.c.h.b16 %v583
    %v2053 = vunpack.c.l.b16 %v584
    %v2054 = vunpack.c.l.b16 %v585
    %v2055 = vunpack.c.h.b16 %v585
    %v2056 = vunpack.c.l.b16 %v586
    %v2057 = vunpack.c.l.b16 %v587
    %v2058 = vunpack.c.h.b16 %v587
    %v2059 = vunpack.c.l.b16 %v588
    %v2060 = vunpack.c.l.b16 %v589
    %v2061 = vunpack.c.h.b16 %v589
    %v2062 = vunpack.c.l.b16 %v590
    %v2063 = vunpack.c.l.b16 %v591
    %v2064 = vunpack.c.h.b16 %v591
    %v2065 = vunpack.c.l.b16 %v592
    %v2066 = vunpack.c.l.b16 %v593
    %v2067 = vunpack.c.h.b16 %v593
    %v2068 = vunpack.c.l.b16 %v594
    %v2069 = vunpack.c.l.b16 %v595
    %v2070 = vunpack.c.h.b16 %v595
    %v2071 = vunpack.c.l.b16 %v596
    %v2072 = vunpack.c.l.b16 %v597
    %v2073 = vunpack.c.h.b16 %v597
    %v2074 = vunpack.c.l.b16 %v598
    %v2075 = vunpack.c.l.b16 %v599
    %v2076 = vunpack.c.h.b16 %v599
    %v2077 = vunpack.c.l.b16 %v600
    %v2078 = vunpack.c.l.b16 %v601
    %v2079 = vunpack.c.h.b16 %v601
    %v2080 = vunpack.c.l.b16 %v602
    %v2081 = vunpack.c.l.b16 %v603
    %v2082 = vunpack.c.h.b16 %v603
    %v2083 = vunpack.c.l.b16 %v604
    %v2084 = vunpack.c.l.b16 %v605
    %v2085 = vunpack.c.h.b16 %v605
    %v2086 = vunpack.c.l.b16 %v606
    %v2087 = vunpack.c.l.b16 %v607
    %v2088 = vunpack.c.h.b16 %v607
    %v2089 = vunpack.c.l.b16 %v608
    %v2090 = vunpack.c.l.b16 %v609
    %v2091 = vunpack.c.h.b16 %v609
    %v2092 = vunpack.c.l.b16 %v610
    %v2093 = vunpack.c.l.b16 %v611
    %v2094 = vunpack.c.h.b16 %v611
    %v2095 = vunpack.c.l.b16 %v612
    %v2096 = vunpack.c.l.b16 %v613
    %v2097 = vunpack.c.h.b16 %v613
    %v2098 = vunpack.c.l.b16 %v614
    %v2099 = vunpack.c.l.b16 %v615
    %v2100 = vunpack.c.h.b16 %v615
    %v2101 = vunpack.c.l.b16 %v616
    %v2102 = vunpack.c.l.b16 %v617
    %v2103 = vunpack.c.h.b16 %v617
    %v2104 = vunpack.c.l.b16 %v618
    %v2105 = vunpack.c.l.b16 %v619
    %v2106 = vunpack.c.h.b16 %v619
    %v2107 = vunpack.c.l.b16 %v620
    %v2108 = vunpack.c.l.b16 %v621
    %v2109 = vunpack.c.h.b16 %v621
    %v2110 = vunpack.c.l.b16 %v622
    %v2111 = vunpack.c.l.b16 %v623
    %v2112 = vunpack.c.h.b16 %v623
    %v2113 = vunpack.c.l.b16 %v624
    %v2114 = vunpack.c.l.b16 %v625
    %v2115 = vunpack.c.h.b16 %v625
    %v2116 = vunpack.c.l.b16 %v626
    %v2117 = vunpack.c.l.b16 %v627
    %v2118 = vunpack.c.h.b16 %v627
    %v2119 = vunpack.c.l.b16 %v628
    %v2120 = vunpack.c.l.b16 %v629
    %v2121 = vunpack.c.h.b16 %v629
    %v2122 = vunpack.c.l.b16 %v630
    %v2123 = vunpack.c.l.b16 %v631
    %v2124 = vunpack.c.h.b16 %v631
    %v2125 = vunpack.c.l.b16 %v632
    %v2126 = vunpack.c.l.b16 %v633
    %v2127 = vunpack.c.h.b16 %v633
    %v2128 = vunpack.c.l.b16 %v634
    %v2129 = vunpack.c.l.b16 %v635
    %v2130 = vunpack.c.h.b16 %v635
    %v2131 = vunpack.c.l.b16 %v636
    %v2132 = vunpack.c.l.b16 %v637
    %v2133 = vunpack.c.h.b16 %v637
    %v2134 = vunpack.c.l.b16 %v638
    %v2135 = vunpack.c.l.b16 %v639
    %v2136 = vunpack.c.h.b16 %v639
    %v2137 = vunpack.c.l.b16 %v640
    %v2138 = vunpack.c.l.b16 %v641
    %v2139 = vunpack.c.h.b16 %v641
    %v2140 = vunpack.c.l.b16 %v642
    %v2141 = vunpack.c.l.b16 %v643
    %v2142 = vunpack.c.h.b16 %v643
    %v2143 = vunpack.c.l.b16 %v644
    %v2144 = vunpack.c.l.b16 %v645
    %v2145 = vunpack.c.h.b16 %v645
    %v2146 = vunpack.c.l.b16 %v646
    %v2147 = vunpack.c.l.b16 %v647
    %v2148 = vunpack.c.h.b16 %v647
    %v2149 = vunpack.c.l.b16 %v648
    %v2150 = vunpack.c.l.b16 %v649
    %v2151 = vunpack.c.h.b16 %v649
    %v2152 = vunpack.c.l.b16 %v650
    %v2153 = vunpack.c.l.b16 %v651
    %v2154 = vunpack.c.h.b16 %v651
    %v2155 = vunpack.c.l.b16 %v652
    %v2156 = vunpack.c.l.b16 %v653
    %v2157 = vunpack.c.h.b16 %v653
    %v2158 = vunpack.c.l.b16 %v654
    %v2159 = vunpack.c.l.b16 %v655
    %v2160 = vunpack.c.h.b16 %v655
    %v2161 = vunpack.c.l.b16 %v656
    %v2162 = vunpack.c.l.b16 %v657
    %v2163 = vunpack.c.h.b16 %v657
    %v2164 = vunpack.c.l.b16 %v658
    %v2165 = vunpack.c.l.b16 %v659
    %v2166 = vunpack.c.h.b16 %v659
    %v2167 = vunpack.c.l.b16 %v660
    %v2168 = vunpack.c.l.b16 %v661
    %v2169 = vunpack.c.h.b16 %v661
    %v2170 = vunpack.c.l.b16 %v662
    %v2171 = vunpack.c.l.b16 %v663
    %v2172 = vunpack.c.h.b16 %v663
    %v2173 = vunpack.c.l.b16 %v664
    %v2174 = vunpack.c.l.b16 %v665
    %v2175 = vunpack.c.h.b16 %v665
    %v2176 = vunpack.c.l.b16 %v666
    %v2177 = vunpack.c.l.b16 %v667
    %v2178 = vunpack.c.h.b16 %v667
    %v2179 = vunpack.c.l.b16 %v668
    %v2180 = vunpack.c.l.b16 %v669
    %v2181 = vunpack.c.h.b16 %v669
    %v2182 = vunpack.c.l.b16 %v670
    %v2183 = vunpack.c.l.b16 %v671
    %v2184 = vunpack.c.h.b16 %v671
    %v2185 = vunpack.c.l.b16 %v672
    %v2186 = vunpack.c.l.b16 %v673
    %v2187 = vunpack.c.h.b16 %v673
    %v2188 = vunpack.c.l.b16 %v674
    %v2189 = vunpack.c.l.b16 %v675
    %v2190 = vunpack.c.h.b16 %v675
    %v2191 = vunpack.c.l.b16 %v676
    %v2192 = vunpack.c.l.b16 %v677
    %v2193 = vunpack.c.h.b16 %v677
    %v2194 = vunpack.c.l.b16 %v678
    %v2195 = vunpack.c.l.b16 %v679
    %v2196 = vunpack.c.h.b16 %v679
    %v2197 = vunpack.c.l.b16 %v680
    %v2198 = vunpack.c.l.b16 %v681
    %v2199 = vunpack.c.h.b16 %v681
    %v2200 = vunpack.c.l.b16 %v682
    %v2201 = vunpack.c.l.b16 %v683
    %v2202 = vunpack.c.h.b16 %v683
    %v2203 = vunpack.c.l.b16 %v684
    %v2204 = vunpack.c.l.b16 %v685
    %v2205 = vunpack.c.h.b16 %v685
    %v2206 = vunpack.c.l.b16 %v686
    %v2207 = vpack.c.b16 %v1346, %v1343
    %v2208 = vpack.c.b16 %v1347, %v1344
    %v2209 = vpack.c.b16 %v1348, %v1345
    %v2210 = vpack.c.b16 %v1352, %v1349
    %v2211 = vpack.c.b16 %v1353, %v1350
    %v2212 = vpack.c.b16 %v1354, %v1351
    %v2213 = vpack.c.b16 %v1358, %v1355
    %v2214 = vpack.c.b16 %v1359, %v1356
    %v2215 = vpack.c.b16 %v1360, %v1357
    %v2216 = vpack.c.b16 %v1364, %v1361
    %v2217 = vpack.c.b16 %v1365, %v1362
    %v2218 = vpack.c.b16 %v1366, %v1363
    %v2219 = vpack.c.b16 %v1370, %v1367
    %v2220 = vpack.c.b16 %v1371, %v1368
    %v2221 = vpack.c.b16 %v1372, %v1369
    %v2222 = vpack.c.b16 %v1376, %v1373
    %v2223 = vpack.c.b16 %v1377, %v1374
    %v2224 = vpack.c.b16 %v1378, %v1375
    %v2225 = vpack.c.b16 %v1382, %v1379
    %v2226 = vpack.c.b16 %v1383, %v1380
    %v2227 = vpack.c.b16 %v1384, %v1381
    %v2228 = vpack.c.b16 %v1388, %v1385
    %v2229 = vpack.c.b16 %v1389, %v1386
    %v2230 = vpack.c.b16 %v1390, %v1387
    %v2231 = vpack.c.b16 %v1394, %v1391
    %v2232 = vpack.c.b16 %v1395, %v1392
    %v2233 = vpack.c.b16 %v1396, %v1393
    %v2234 = vpack.c.b16 %v1400, %v1397
    %v2235 = vpack.c.b16 %v1401, %v1398
    %v2236 = vpack.c.b16 %v1402, %v1399
    %v2237 = vpack.c.b16 %v1406, %v1403
    %v2238 = vpack.c.b16 %v1407, %v1404
    %v2239 = vpack.c.b16 %v1408, %v1405
    %v2240 = vpack.c.b16 %v1412, %v1409
    %v2241 = vpack.c.b16 %v1413, %v1410
    %v2242 = vpack.c.b16 %v1414, %v1411
    %v2243 = vpack.c.b16 %v1418, %v1415
    %v2244 = vpack.c.b16 %v1419, %v1416
    %v2245 = vpack.c.b16 %v1420, %v1417
    %v2246 = vpack.c.b16 %v1424, %v1421
    %v2247 = vpack.c.b16 %v1425, %v1422
    %v2248 = vpack.c.b16 %v1426, %v1423
    %v2249 = vpack.c.b16 %v1430, %v1427
    %v2250 = vpack.c.b16 %v1431, %v1428
    %v2251 = vpack.c.b16 %v1432, %v1429
    %v2252 = vpack.c.b16 %v1436, %v1433
    %v2253 = vpack.c.b16 %v1437, %v1434
    %v2254 = vpack.c.b16 %v1438, %v1435
    %v2255 = vpack.c.b16 %v1442, %v1439
    %v2256 = vpack.c.b16 %v1443, %v1440
    %v2257 = vpack.c.b16 %v1444, %v1441
    %v2258 = vpack.c.b16 %v1448, %v1445
    %v2259 = vpack.c.b16 %v1449, %v1446
    %v2260 = vpack.c.b16 %v1450, %v1447
    %v2261 = vpack.c.b16 %v1454, %v1451
    %v2262 = vpack.c.b16 %v1455, %v1452
    %v2263 = vpack.c.b16 %v1456, %v1453
    %v2264 = vpack.c.b16 %v1460, %v1457
    %v2265 = vpack.c.b16 %v1461, %v1458
    %v2266 = vpack.c.b16 %v1462, %v1459
    %v2267 = vpack.c.b16 %v1466, %v1463
    %v2268 = vpack.c.b16 %v1467, %v1464
    %v2269 = vpack.c.b16 %v1468, %v1465
    %v2270 = vpack.c.b16 %v1472, %v1469
    %v2271 = vpack.c.b16 %v1473, %v1470
    %v2272 = vpack.c.b16 %v1474, %v1471
    %v2273 = vpack.c.b16 %v1478, %v1475
    %v2274 = vpack.c.b16 %v1479, %v1476
    %v2275 = vpack.c.b16 %v1480, %v1477
    %v2276 = vpack.c.b16 %v1484, %v1481
    %v2277 = vpack.c.b16 %v1485, %v1482
    %v2278 = vpack.c.b16 %v1486, %v1483
    %v2279 = vpack.c.b16 %v1490, %v1487
    %v2280 = vpack.c.b16 %v1491, %v1488
    %v2281 = vpack.c.b16 %v1492, %v1489
    %v2282 = vpack.c.b16 %v1496, %v1493
    %v2283 = vpack.c.b16 %v1497, %v1494
    %v2284 = vpack.c.b16 %v1498, %v1495
    %v2285 = vpack.c.b16 %v1502, %v1499
    %v2286 = vpack.c.b16 %v1503, %v1500
    %v2287 = vpack.c.b16 %v1504, %v1501
    %v2288 = vpack.c.b16 %v1508, %v1505
    %v2289 = vpack.c.b16 %v1509, %v1506
    %v2290 = vpack.c.b16 %v1510, %v1507
    %v2291 = vpack.c.b16 %v1514, %v1511
    %v2292 = vpack.c.b16 %v1515, %v1512
    %v2293 = vpack.c.b16 %v1516, %v1513
    %v2294 = vpack.c.b16 %v1520, %v1517
    %v2295 = vpack.c.b16 %v1521, %v1518
    %v2296 = vpack.c.b16 %v1522, %v1519
    %v2297 = vpack.c.b16 %v1526, %v1523
    %v2298 = vpack.c.b16 %v1527, %v1524
    %v2299 = vpack.c.b16 %v1528, %v1525
    %v2300 = vpack.c.b16 %v1532, %v1529
    %v2301 = vpack.c.b16 %v1533, %v1530
    %v2302 = vpack.c.b16 %v1534, %v1531
    %v2303 = vpack.c.b16 %v1538, %v1535
    %v2304 = vpack.c.b16 %v1539, %v1536
    %v2305 = vpack.c.b16 %v1540, %v1537
    %v2306 = vpack.c.b16 %v1544, %v1541
    %v2307 = vpack.c.b16 %v1545, %v1542
    %v2308 = vpack.c.b16 %v1546, %v1543
    %v2309 = vpack.c.b16 %v1550, %v1547
    %v2310 = vpack.c.b16 %v1551, %v1548
    %v2311 = vpack.c.b16 %v1552, %v1549
    %v2312 = vpack.c.b16 %v1556, %v1553
    %v2313 = vpack.c.b16 %v1557, %v1554
    %v2314 = vpack.c.b16 %v1558, %v1555
    %v2315 = vpack.c.b16 %v1562, %v1559
    %v2316 = vpack.c.b16 %v1563, %v1560
    %v2317 = vpack.c.b16 %v1564, %v1561
    %v2318 = vpack.c.b16 %v1568, %v1565
    %v2319 = vpack.c.b16 %v1569, %v1566
    %v2320 = vpack.c.b16 %v1570, %v1567
    %v2321 = vpack.c.b16 %v1574, %v1571
    %v2322 = vpack.c.b16 %v1575, %v1572
    %v2323 = vpack.c.b16 %v1576, %v1573
    %v2324 = vpack.c.b16 %v1580, %v1577
    %v2325 = vpack.c.b16 %v1581, %v1578
    %v2326 = vpack.c.b16 %v1582, %v1579
    %v2327 = vpack.c.b16 %v1586, %v1583
    %v2328 = vpack.c.b16 %v1587, %v1584
    %v2329 = vpack.c.b16 %v1588, %v1585
    %v2330 = vpack.c.b16 %v1592, %v1589
    %v2331 = vpack.c.b16 %v1593, %v1590
    %v2332 = vpack.c.b16 %v1594, %v1591
    %v2333 = vpack.c.b16 %v1598, %v1595
    %v2334 = vpack.c.b16 %v1599, %v1596
    %v2335 = vpack.c.b16 %v1600, %v1597
    %v2336 = vpack.c.b16 %v1604, %v1601
    %v2337 = vpack.c.b16 %v1605, %v1602
    %v2338 = vpack.c.b16 %v1606, %v1603
    %v2339 = vpack.c.b16 %v1610, %v1607
    %v2340 = vpack.c.b16 %v1611, %v1608
    %v2341 = vpack.c.b16 %v1612, %v1609
    %v2342 = vpack.c.b16 %v1616, %v1613
    %v2343 = vpack.c.b16 %v1617, %v1614
    %v2344 = vpack.c.b16 %v1618, %v1615
    %v2345 = vpack.c.b16 %v1622, %v1619
    %v2346 = vpack.c.b16 %v1623, %v1620
    %v2347 = vpack.c.b16 %v1624, %v1621
    %v2348 = vpack.c.b16 %v1628, %v1625
    %v2349 = vpack.c.b16 %v1629, %v1626
    %v2350 = vpack.c.b16 %v1630, %v1627
    %v2351 = vpack.c.b16 %v1634, %v1631
    %v2352 = vpack.c.b16 %v1635, %v1632
    %v2353 = vpack.c.b16 %v1636, %v1633
    %v2354 = vpack.c.b16 %v1640, %v1637
    %v2355 = vpack.c.b16 %v1641, %v1638
    %v2356 = vpack.c.b16 %v1642, %v1639
    %v2357 = vpack.c.b16 %v1646, %v1643
    %v2358 = vpack.c.b16 %v1647, %v1644
    %v2359 = vpack.c.b16 %v1648, %v1645
    %v2360 = vpack.c.b16 %v1652, %v1649
    %v2361 = vpack.c.b16 %v1653, %v1650
    %v2362 = vpack.c.b16 %v1654, %v1651
    %v2363 = vpack.c.b16 %v1658, %v1655
    %v2364 = vpack.c.b16 %v1659, %v1656
    %v2365 = vpack.c.b16 %v1660, %v1657
    %v2366 = vpack.c.b16 %v1664, %v1661
    %v2367 = vpack.c.b16 %v1665, %v1662
    %v2368 = vpack.c.b16 %v1666, %v1663
    %v2369 = vpack.c.b16 %v1670, %v1667
    %v2370 = vpack.c.b16 %v1671, %v1668
    %v2371 = vpack.c.b16 %v1672, %v1669
    %v2372 = vpack.c.b16 %v1676, %v1673
    %v2373 = vpack.c.b16 %v1677, %v1674
    %v2374 = vpack.c.b16 %v1678, %v1675
    %v2375 = vpack.c.b16 %v1682, %v1679
    %v2376 = vpack.c.b16 %v1683, %v1680
    %v2377 = vpack.c.b16 %v1684, %v1681
    %v2378 = vpack.c.b16 %v1688, %v1685
    %v2379 = vpack.c.b16 %v1689, %v1686
    %v2380 = vpack.c.b16 %v1690, %v1687
    %v2381 = vpack.c.b16 %v1694, %v1691
    %v2382 = vpack.c.b16 %v1695, %v1692
    %v2383 = vpack.c.b16 %v1696, %v1693
    %v2384 = vpack.c.b16 %v1700, %v1697
    %v2385 = vpack.c.b16 %v1701, %v1698
    %v2386 = vpack.c.b16 %v1702, %v1699
    %v2387 = vpack.c.b16 %v1706, %v1703
    %v2388 = vpack.c.b16 %v1707, %v1704
    %v2389 = vpack.c.b16 %v1708, %v1705
    %v2390 = vpack.c.b16 %v1712, %v1709
    %v2391 = vpack.c.b16 %v1713, %v1710
    %v2392 = vpack.c.b16 %v1714, %v1711
    %v2393 = vpack.c.b16 %v1718, %v1715
    %v2394 = vpack.c.b16 %v1719, %v1716
    %v2395 = vpack.c.b16 %v1720, %v1717
    %v2396 = vpack.c.b16 %v1724, %v1721
    %v2397 = vpack.c.b16 %v1725, %v1722
    %v2398 = vpack.c.b16 %v1726, %v1723
    %v2399 = vpack.c.b16 %v1730, %v1727
    %v2400 = vpack.c.b16 %v1731, %v1728
    %v2401 = vpack.c.b16 %v1732, %v1729
    %v2402 = vpack.c.b16 %v1736, %v1733
    %v2403 = vpack.c.b16 %v1737, %v1734
    %v2404 = vpack.c.b16 %v1738, %v1735
    %v2405 = vpack.c.b16 %v1742, %v1739
    %v2406 = vpack.c.b16 %v1743, %v1740
    %v2407 = vpack.c.b16 %v1744, %v1741
    %v2408 = vpack.c.b16 %v1748, %v1745
    %v2409 = vpack.c.b16 %v1749, %v1746
    %v2410 = vpack.c.b16 %v1750, %v1747
    %v2411 = vpack.c.b16 %v1754, %v1751
    %v2412 = vpack.c.b16 %v1755, %v1752
    %v2413 = vpack.c.b16 %v1756, %v1753
    %v2414 = vpack.c.b16 %v1760, %v1757
    %v2415 = vpack.c.b16 %v1761, %v1758
    %v2416 = vpack.c.b16 %v1762, %v1759
    %v2417 = vpack.c.b16 %v1766, %v1763
    %v2418 = vpack.c.b16 %v1767, %v1764
    %v2419 = vpack.c.b16 %v1768, %v1765
    %v2420 = vpack.c.b16 %v1772, %v1769
    %v2421 = vpack.c.b16 %v1773, %v1770
    %v2422 = vpack.c.b16 %v1774, %v1771
    %v2423 = vpack.c.b16 %v1778, %v1775
    %v2424 = vpack.c.b16 %v1779, %v1776
    %v2425 = vpack.c.b16 %v1780, %v1777
    %v2426 = vpack.c.b16 %v1784, %v1781
    %v2427 = vpack.c.b16 %v1785, %v1782
    %v2428 = vpack.c.b16 %v1786, %v1783
    %v2429 = vpack.c.b16 %v1790, %v1787
    %v2430 = vpack.c.b16 %v1791, %v1788
    %v2431 = vpack.c.b16 %v1792, %v1789
    %v2432 = vpack.c.b16 %v1796, %v1793
    %v2433 = vpack.c.b16 %v1797, %v1794
    %v2434 = vpack.c.b16 %v1798, %v1795
    %v2435 = vpack.c.b16 %v1802, %v1799
    %v2436 = vpack.c.b16 %v1803, %v1800
    %v2437 = vpack.c.b16 %v1804, %v1801
    %v2438 = vpack.c.b16 %v1808, %v1805
    %v2439 = vpack.c.b16 %v1809, %v1806
    %v2440 = vpack.c.b16 %v1810, %v1807
    %v2441 = vpack.c.b16 %v1814, %v1811
    %v2442 = vpack.c.b16 %v1815, %v1812
    %v2443 = vpack.c.b16 %v1816, %v1813
    %v2444 = vpack.c.b16 %v1820, %v1817
    %v2445 = vpack.c.b16 %v1821, %v1818
    %v2446 = vpack.c.b16 %v1822, %v1819
    %v2447 = vpack.c.b16 %v1826, %v1823
    %v2448 = vpack.c.b16 %v1827, %v1824
    %v2449 = vpack.c.b16 %v1828, %v1825
    %v2450 = vpack.c.b16 %v1832, %v1829
    %v2451 = vpack.c.b16 %v1833, %v1830
    %v2452 = vpack.c.b16 %v1834, %v1831
    %v2453 = vpack.c.b16 %v1838, %v1835
    %v2454 = vpack.c.b16 %v1839, %v1836
    %v2455 = vpack.c.b16 %v1840, %v1837
    %v2456 = vpack.c.b16 %v1844, %v1841
    %v2457 = vpack.c.b16 %v1845, %v1842
    %v2458 = vpack.c.b16 %v1846, %v1843
    %v2459 = vpack.c.b16 %v1850, %v1847
    %v2460 = vpack.c.b16 %v1851, %v1848
    %v2461 = vpack.c.b16 %v1852, %v1849
    %v2462 = vpack.c.b16 %v1856, %v1853
    %v2463 = vpack.c.b16 %v1857, %v1854
    %v2464 = vpack.c.b16 %v1858, %v1855
    %v2465 = vpack.c.b16 %v1862, %v1859
    %v2466 = vpack.c.b16 %v1863, %v1860
    %v2467 = vpack.c.b16 %v1864, %v1861
    %v2468 = vpack.c.b16 %v1868, %v1865
    %v2469 = vpack.c.b16 %v1869, %v1866
    %v2470 = vpack.c.b16 %v1870, %v1867
    %v2471 = vpack.c.b16 %v1874, %v1871
    %v2472 = vpack.c.b16 %v1875, %v1872
    %v2473 = vpack.c.b16 %v1876, %v1873
    %v2474 = vpack.c.b16 %v1880, %v1877
    %v2475 = vpack.c.b16 %v1881, %v1878
    %v2476 = vpack.c.b16 %v1882, %v1879
    %v2477 = vpack.c.b16 %v1886, %v1883
    %v2478 = vpack.c.b16 %v1887, %v1884
    %v2479 = vpack.c.b16 %v1888, %v1885
    %v2480 = vpack.c.b16 %v1892, %v1889
    %v2481 = vpack.c.b16 %v1893, %v1890
    %v2482 = vpack.c.b16 %v1894, %v1891
    %v2483 = vpack.c.b16 %v1898, %v1895
    %v2484 = vpack.c.b16 %v1899, %v1896
    %v2485 = vpack.c.b16 %v1900, %v1897
    %v2486 = vpack.c.b16 %v1904, %v1901
    %v2487 = vpack.c.b16 %v1905, %v1902
    %v2488 = vpack.c.b16 %v1906, %v1903
    %v2489 = vpack.c.b16 %v1910, %v1907
    %v2490 = vpack.c.b16 %v1911, %v1908
    %v2491 = vpack.c.b16 %v1912, %v1909
    %v2492 = vpack.c.b16 %v1916, %v1913
    %v2493 = vpack.c.b16 %v1917, %v1914
    %v2494 = vpack.c.b16 %v1918, %v1915
    %v2495 = vpack.c.b16 %v1922, %v1919
    %v2496 = vpack.c.b16 %v1923, %v1920
    %v2497 = vpack.c.b16 %v1924, %v1921
    %v2498 = vpack.c.b16 %v1928, %v1925
    %v2499 = vpack.c.b16 %v1929, %v1926
    %v2500 = vpack.c.b16 %v1930, %v1927
    %v2501 = vpack.c.b16 %v1934, %v1931
    %v2502 = vpack.c.b16 %v1935, %v1932
    %v2503 = vpack.c.b16 %v1936, %v1933
    %v2504 = vpack.c.b16 %v1940, %v1937
    %v2505 = vpack.c.b16 %v1941, %v1938
    %v2506 = vpack.c.b16 %v1942, %v1939
    %v2507 = vpack.c.b16 %v1946, %v1943
    %v2508 = vpack.c.b16 %v1947, %v1944
    %v2509 = vpack.c.b16 %v1948, %v1945
    %v2510 = vpack.c.b16 %v1952, %v1949
    %v2511 = vpack.c.b16 %v1953, %v1950
    %v2512 = vpack.c.b16 %v1954, %v1951
    %v2513 = vpack.c.b16 %v1958, %v1955
    %v2514 = vpack.c.b16 %v1959, %v1956
    %v2515 = vpack.c.b16 %v1960, %v1957
    %v2516 = vpack.c.b16 %v1964, %v1961
    %v2517 = vpack.c.b16 %v1965, %v1962
    %v2518 = vpack.c.b16 %v1966, %v1963
    %v2519 = vpack.c.b16 %v1970, %v1967
    %v2520 = vpack.c.b16 %v1971, %v1968
    %v2521 = vpack.c.b16 %v1972, %v1969
    %v2522 = vpack.c.b16 %v1976, %v1973
    %v2523 = vpack.c.b16 %v1977, %v1974
    %v2524 = vpack.c.b16 %v1978, %v1975
    %v2525 = vpack.c.b16 %v1982, %v1979
    %v2526 = vpack.c.b16 %v1983, %v1980
    %v2527 = vpack.c.b16 %v1984, %v1981
    %v2528 = vpack.c.b16 %v1988, %v1985
    %v2529 = vpack.c.b16 %v1989, %v1986
    %v2530 = vpack.c.b16 %v1990, %v1987
    %v2531 = vpack.c.b16 %v1994, %v1991
    %v2532 = vpack.c.b16 %v1995, %v1992
    %v2533 = vpack.c.b16 %v1996, %v1993
    %v2534 = vpack.c.b16 %v2000, %v1997
    %v2535 = vpack.c.b16 %v2001, %v1998
    %v2536 = vpack.c.b16 %v2002, %v1999
    %v2537 = vpack.c.b16 %v2006, %v2003
    %v2538 = vpack.c.b16 %v2007, %v2004
    %v2539 = vpack.c.b16 %v2008, %v2005
    %v2540 = vpack.c.b16 %v2012, %v2009
    %v2541 = vpack.c.b16 %v2013, %v2010
    %v2542 = vpack.c.b16 %v2014, %v2011
    %v2543 = vpack.c.b16 %v2018, %v2015
    %v2544 = vpack.c.b16 %v2019, %v2016
    %v2545 = vpack.c.b16 %v2020, %v2017
    %v2546 = vpack.c.b16 %v2024, %v2021
    %v2547 = vpack.c.b16 %v2025, %v2022
    %v2548 = vpack.c.b16 %v2026, %v2023
    %v2549 = vpack.c.b16 %v2030, %v2027
    %v2550 = vpack.c.b16 %v2031, %v2028
    %v2551 = vpack.c.b16 %v2032, %v2029
    %v2552 = vpack.c.b16 %v2036, %v2033
    %v2553 = vpack.c.b16 %v2037, %v2034
    %v2554 = vpack.c.b16 %v2038, %v2035
    %v2555 = vpack.c.b16 %v2042, %v2039
    %v2556 = vpack.c.b16 %v2043, %v2040
    %v2557 = vpack.c.b16 %v2044, %v2041
    %v2558 = vpack.c.b16 %v2048, %v2045
    %v2559 = vpack.c.b16 %v2049, %v2046
    %v2560 = vpack.c.b16 %v2050, %v2047
    %v2561 = vpack.c.b16 %v2054, %v2051
    %v2562 = vpack.c.b16 %v2055, %v2052
    %v2563 = vpack.c.b16 %v2056, %v2053
    %v2564 = vpack.c.b16 %v2060, %v2057
    %v2565 = vpack.c.b16 %v2061, %v2058
    %v2566 = vpack.c.b16 %v2062, %v2059
    %v2567 = vpack.c.b16 %v2066, %v2063
    %v2568 = vpack.c.b16 %v2067, %v2064
    %v2569 = vpack.c.b16 %v2068, %v2065
    %v2570 = vpack.c.b16 %v2072, %v2069
    %v2571 = vpack.c.b16 %v2073, %v2070
    %v2572 = vpack.c.b16 %v2074, %v2071
    %v2573 = vpack.c.b16 %v2078, %v2075
    %v2574 = vpack.c.b16 %v2079, %v2076
    %v2575 = vpack.c.b16 %v2080, %v2077
    %v2576 = vpack.c.b16 %v2084, %v2081
    %v2577 = vpack.c.b16 %v2085, %v2082
    %v2578 = vpack.c.b16 %v2086, %v2083
    %v2579 = vpack.c.b16 %v2090, %v2087
    %v2580 = vpack.c.b16 %v2091, %v2088
    %v2581 = vpack.c.b16 %v2092, %v2089
    %v2582 = vpack.c.b16 %v2096, %v2093
    %v2583 = vpack.c.b16 %v2097, %v2094
    %v2584 = vpack.c.b16 %v2098, %v2095
    %v2585 = vpack.c.b16 %v2102, %v2099
    %v2586 = vpack.c.b16 %v2103, %v2100
    %v2587 = vpack.c.b16 %v2104, %v2101
    %v2588 = vpack.c.b16 %v2108, %v2105
    %v2589 = vpack.c.b16 %v2109, %v2106
    %v2590 = vpack.c.b16 %v2110, %v2107
    %v2591 = vpack.c.b16 %v2114, %v2111
    %v2592 = vpack.c.b16 %v2115, %v2112
    %v2593 = vpack.c.b16 %v2116, %v2113
    %v2594 = vpack.c.b16 %v2120, %v2117
    %v2595 = vpack.c.b16 %v2121, %v2118
    %v2596 = vpack.c.b16 %v2122, %v2119
    %v2597 = vpack.c.b16 %v2126, %v2123
    %v2598 = vpack.c.b16 %v2127, %v2124
    %v2599 = vpack.c.b16 %v2128, %v2125
    %v2600 = vpack.c.b16 %v2132, %v2129
    %v2601 = vpack.c.b16 %v2133, %v2130
    %v2602 = vpack.c.b16 %v2134, %v2131
    %v2603 = vpack.c.b16 %v2138, %v2135
    %v2604 = vpack.c.b16 %v2139, %v2136
    %v2605 = vpack.c.b16 %v2140, %v2137
    %v2606 = vpack.c.b16 %v2144, %v2141
    %v2607 = vpack.c.b16 %v2145, %v2142
    %v2608 = vpack.c.b16 %v2146, %v2143
    %v2609 = vpack.c.b16 %v2150, %v2147
    %v2610 = vpack.c.b16 %v2151, %v2148
    %v2611 = vpack.c.b16 %v2152, %v2149
    %v2612 = vpack.c.b16 %v2156, %v2153
    %v2613 = vpack.c.b16 %v2157, %v2154
    %v2614 = vpack.c.b16 %v2158, %v2155
    %v2615 = vpack.c.b16 %v2162, %v2159
    %v2616 = vpack.c.b16 %v2163, %v2160
    %v2617 = vpack.c.b16 %v2164, %v2161
    %v2618 = vpack.c.b16 %v2168, %v2165
    %v2619 = vpack.c.b16 %v2169, %v2166
    %v2620 = vpack.c.b16 %v2170, %v2167
    %v2621 = vpack.c.b16 %v2174, %v2171
    %v2622 = vpack.c.b16 %v2175, %v2172
    %v2623 = vpack.c.b16 %v2176, %v2173
    %v2624 = vpack.c.b16 %v2180, %v2177
    %v2625 = vpack.c.b16 %v2181, %v2178
    %v2626 = vpack.c.b16 %v2182, %v2179
    %v2627 = vpack.c.b16 %v2186, %v2183
    %v2628 = vpack.c.b16 %v2187, %v2184
    %v2629 = vpack.c.b16 %v2188, %v2185
    %v2630 = vpack.c.b16 %v2192, %v2189
    %v2631 = vpack.c.b16 %v2193, %v2190
    %v2632 = vpack.c.b16 %v2194, %v2191
    %v2633 = vpack.c.b16 %v2198, %v2195
    %v2634 = vpack.c.b16 %v2199, %v2196
    %v2635 = vpack.c.b16 %v2200, %v2197
    %v2636 = vpack.c.b16 %v2204, %v2201
    %v2637 = vpack.c.b16 %v2205, %v2202
    %v2638 = vpack.c.b16 %v2206, %v2203
    %3071 = vmatprep.subr.bf16.mxu0 %v2208
    %3072 = vmatpush1.bf16.msra.mxu0 %v2207
    %3073 = vmatprep.subr.bf16.mxu0 %v2211
    %3074 = vmatpush1.bf16.msra.mxu0 %v2210
    %3075 = vmatprep.subr.bf16.mxu0 %v2214
    %3076 = vmatpush1.bf16.msra.mxu0 %v2213
    %3077 = vmatprep.subr.bf16.mxu0 %v2217
    %3078 = vmatpush1.bf16.msra.mxu0 %v2216
    %3079 = vmatprep.subr.bf16.mxu0 %v2220
    %3080 = vmatpush1.bf16.msra.mxu0 %v2219
    %3081 = vmatprep.subr.bf16.mxu0 %v2223
    %3082 = vmatpush1.bf16.msra.mxu0 %v2222
    %3083 = vmatprep.subr.bf16.mxu0 %v2226
    %3084 = vmatpush1.bf16.msra.mxu0 %v2225
    %3085 = vmatprep.subr.bf16.mxu0 %v2229
    %3086 = vmatpush1.bf16.msra.mxu0 %v2228
    %3087 = vmatprep.subr.bf16.mxu0 %v2232
    %3088 = vmatpush1.bf16.msra.mxu0 %v2231
    %3089 = vmatprep.subr.bf16.mxu0 %v2235
    %3090 = vmatpush1.bf16.msra.mxu0 %v2234
    %3091 = vmatprep.subr.bf16.mxu0 %v2238
    %3092 = vmatpush1.bf16.msra.mxu0 %v2237
    %3093 = vmatprep.subr.bf16.mxu0 %v2241
    %3094 = vmatpush1.bf16.msra.mxu0 %v2240
    %3095 = vmatprep.subr.bf16.mxu0 %v2244
    %3096 = vmatpush1.bf16.msra.mxu0 %v2243
    %3097 = vmatprep.subr.bf16.mxu0 %v2247
    %3098 = vmatpush1.bf16.msra.mxu0 %v2246
    %3099 = vmatprep.subr.bf16.mxu0 %v2250
    %3100 = vmatpush1.bf16.msra.mxu0 %v2249
    %3101 = vmatprep.subr.bf16.mxu0 %v2253
    %3102 = vmatpush1.bf16.msra.mxu0 %v2252
    %3103 = vmatprep.mubr.bf16.mxu0 %v732
    %3104 = vmatmul.mubr.bf16.gmra.mrb[0].mxu0 %v731
    %v3105 = vpop.f32.mrb[0].mxu0
    %v3106 = vadd.f32 %v692, %v3105
    %v3107 = vpop.f32.mrb[0].mxu0
    %v3108 = vadd.f32 %v696, %v3107
    %v3109 = vpop.f32.mrb[0].mxu0
    %v3110 = vpop.f32.mrb[0].mxu0
    %3111 = vdwg.mxu0
    %3112 = vmatprep.subr.bf16.mxu0 %v2256
    %3113 = vmatpush1.bf16.msra.mxu0 %v2255
    %3114 = vmatprep.subr.bf16.mxu0 %v2259
    %3115 = vmatpush1.bf16.msra.mxu0 %v2258
    %3116 = vmatprep.subr.bf16.mxu0 %v2262
    %3117 = vmatpush1.bf16.msra.mxu0 %v2261
    %3118 = vmatprep.subr.bf16.mxu0 %v2265
    %3119 = vmatpush1.bf16.msra.mxu0 %v2264
    %3120 = vmatprep.subr.bf16.mxu0 %v2268
    %3121 = vmatpush1.bf16.msra.mxu0 %v2267
    %3122 = vmatprep.subr.bf16.mxu0 %v2271
    %3123 = vmatpush1.bf16.msra.mxu0 %v2270
    %3124 = vmatprep.subr.bf16.mxu0 %v2274
    %3125 = vmatpush1.bf16.msra.mxu0 %v2273
    %3126 = vmatprep.subr.bf16.mxu0 %v2277
    %3127 = vmatpush1.bf16.msra.mxu0 %v2276
    %3128 = vmatprep.subr.bf16.mxu0 %v2280
    %3129 = vmatpush1.bf16.msra.mxu0 %v2279
    %3130 = vmatprep.subr.bf16.mxu0 %v2283
    %3131 = vmatpush1.bf16.msra.mxu0 %v2282
    %3132 = vmatprep.subr.bf16.mxu0 %v2286
    %3133 = vmatpush1.bf16.msra.mxu0 %v2285
    %3134 = vmatprep.subr.bf16.mxu0 %v2289
    %3135 = vmatpush1.bf16.msra.mxu0 %v2288
    %3136 = vmatprep.subr.bf16.mxu0 %v2292
    %3137 = vmatpush1.bf16.msra.mxu0 %v2291
    %3138 = vmatprep.subr.bf16.mxu0 %v2295
    %3139 = vmatpush1.bf16.msra.mxu0 %v2294
    %3140 = vmatprep.subr.bf16.mxu0 %v2298
    %3141 = vmatpush1.bf16.msra.mxu0 %v2297
    %3142 = vmatprep.subr.bf16.mxu0 %v2301
    %3143 = vmatpush1.bf16.msra.mxu0 %v2300
    %3144 = vmatprep.mubr.bf16.mxu0 %v734
    %3145 = vmatmul.mubr.bf16.gmra.mrb[0].mxu0 %v733
    %v3146 = vpop.f32.mrb[0].mxu0
    %v3147 = vadd.f32 %v3106, %v3146
    %v3148 = vpop.f32.mrb[0].mxu0
    %v3149 = vadd.f32 %v3108, %v3148
    %v3150 = vpop.f32.mrb[0].mxu0
    %v3151 = vpop.f32.mrb[0].mxu0
    %3152 = vdwg.mxu0
    %3153 = vmatprep.subr.bf16.mxu0 %v2304
    %3154 = vmatpush1.bf16.msra.mxu0 %v2303
    %3155 = vmatprep.subr.bf16.mxu0 %v2307
    %3156 = vmatpush1.bf16.msra.mxu0 %v2306
    %3157 = vmatprep.subr.bf16.mxu0 %v2310
    %3158 = vmatpush1.bf16.msra.mxu0 %v2309
    %3159 = vmatprep.subr.bf16.mxu0 %v2313
    %3160 = vmatpush1.bf16.msra.mxu0 %v2312
    %3161 = vmatprep.subr.bf16.mxu0 %v2316
    %3162 = vmatpush1.bf16.msra.mxu0 %v2315
    %3163 = vmatprep.subr.bf16.mxu0 %v2319
    %3164 = vmatpush1.bf16.msra.mxu0 %v2318
    %3165 = vmatprep.subr.bf16.mxu0 %v2322
    %3166 = vmatpush1.bf16.msra.mxu0 %v2321
    %3167 = vmatprep.subr.bf16.mxu0 %v2325
    %3168 = vmatpush1.bf16.msra.mxu0 %v2324
    %3169 = vmatprep.subr.bf16.mxu0 %v2328
    %3170 = vmatpush1.bf16.msra.mxu0 %v2327
    %3171 = vmatprep.subr.bf16.mxu0 %v2331
    %3172 = vmatpush1.bf16.msra.mxu0 %v2330
    %3173 = vmatprep.subr.bf16.mxu0 %v2334
    %3174 = vmatpush1.bf16.msra.mxu0 %v2333
    %3175 = vmatprep.subr.bf16.mxu0 %v2337
    %3176 = vmatpush1.bf16.msra.mxu0 %v2336
    %3177 = vmatprep.subr.bf16.mxu0 %v2340
    %3178 = vmatpush1.bf16.msra.mxu0 %v2339
    %3179 = vmatprep.subr.bf16.mxu0 %v2343
    %3180 = vmatpush1.bf16.msra.mxu0 %v2342
    %3181 = vmatprep.subr.bf16.mxu0 %v2346
    %3182 = vmatpush1.bf16.msra.mxu0 %v2345
    %3183 = vmatprep.subr.bf16.mxu0 %v2349
    %3184 = vmatpush1.bf16.msra.mxu0 %v2348
    %3185 = vmatprep.mubr.bf16.mxu0 %v736
    %3186 = vmatmul.mubr.bf16.gmra.mrb[0].mxu0 %v735
    %v3187 = vpop.f32.mrb[0].mxu0
    %v3188 = vadd.f32 %v3147, %v3187
    %v3189 = vpop.f32.mrb[0].mxu0
    %v3190 = vadd.f32 %v3149, %v3189
    %v3191 = vpop.f32.mrb[0].mxu0
    %v3192 = vpop.f32.mrb[0].mxu0
    %3193 = vdwg.mxu0
    %3194 = vmatprep.subr.bf16.mxu0 %v2352
    %3195 = vmatpush1.bf16.msra.mxu0 %v2351
    %3196 = vmatprep.subr.bf16.mxu0 %v2355
    %3197 = vmatpush1.bf16.msra.mxu0 %v2354
    %3198 = vmatprep.subr.bf16.mxu0 %v2358
    %3199 = vmatpush1.bf16.msra.mxu0 %v2357
    %3200 = vmatprep.subr.bf16.mxu0 %v2361
    %3201 = vmatpush1.bf16.msra.mxu0 %v2360
    %3202 = vmatprep.subr.bf16.mxu0 %v2364
    %3203 = vmatpush1.bf16.msra.mxu0 %v2363
    %3204 = vmatprep.subr.bf16.mxu0 %v2367
    %3205 = vmatpush1.bf16.msra.mxu0 %v2366
    %3206 = vmatprep.subr.bf16.mxu0 %v2370
    %3207 = vmatpush1.bf16.msra.mxu0 %v2369
    %3208 = vmatprep.subr.bf16.mxu0 %v2373
    %3209 = vmatpush1.bf16.msra.mxu0 %v2372
    %3210 = vmatprep.subr.bf16.mxu0 %v2376
    %3211 = vmatpush1.bf16.msra.mxu0 %v2375
    %3212 = vmatprep.subr.bf16.mxu0 %v2379
    %3213 = vmatpush1.bf16.msra.mxu0 %v2378
    %3214 = vmatprep.subr.bf16.mxu0 %v2382
    %3215 = vmatpush1.bf16.msra.mxu0 %v2381
    %3216 = vmatprep.subr.bf16.mxu0 %v2385
    %3217 = vmatpush1.bf16.msra.mxu0 %v2384
    %3218 = vmatprep.subr.bf16.mxu0 %v2388
    %3219 = vmatpush1.bf16.msra.mxu0 %v2387
    %3220 = vmatprep.subr.bf16.mxu0 %v2391
    %3221 = vmatpush1.bf16.msra.mxu0 %v2390
    %3222 = vmatprep.subr.bf16.mxu0 %v2394
    %3223 = vmatpush1.bf16.msra.mxu0 %v2393
    %3224 = vmatprep.subr.bf16.mxu0 %v2397
    %3225 = vmatpush1.bf16.msra.mxu0 %v2396
    %3226 = vmatprep.mubr.bf16.mxu0 %v738
    %3227 = vmatmul.mubr.bf16.gmra.mrb[0].mxu0 %v737
    %v3228 = vpop.f32.mrb[0].mxu0
    %v3229 = vadd.f32 %v3188, %v3228
    %v3230 = vpop.f32.mrb[0].mxu0
    %v3231 = vadd.f32 %v3190, %v3230
    %v3232 = vpop.f32.mrb[0].mxu0
    %v3233 = vpop.f32.mrb[0].mxu0
    %3234 = vdwg.mxu0
    %3235 = vmatprep.subr.bf16.mxu0 %v2400
    %3236 = vmatpush1.bf16.msra.mxu0 %v2399
    %3237 = vmatprep.subr.bf16.mxu0 %v2403
    %3238 = vmatpush1.bf16.msra.mxu0 %v2402
    %3239 = vmatprep.subr.bf16.mxu0 %v2406
    %3240 = vmatpush1.bf16.msra.mxu0 %v2405
    %3241 = vmatprep.subr.bf16.mxu0 %v2409
    %3242 = vmatpush1.bf16.msra.mxu0 %v2408
    %3243 = vmatprep.subr.bf16.mxu0 %v2412
    %3244 = vmatpush1.bf16.msra.mxu0 %v2411
    %3245 = vmatprep.subr.bf16.mxu0 %v2415
    %3246 = vmatpush1.bf16.msra.mxu0 %v2414
    %3247 = vmatprep.subr.bf16.mxu0 %v2418
    %3248 = vmatpush1.bf16.msra.mxu0 %v2417
    %3249 = vmatprep.subr.bf16.mxu0 %v2421
    %3250 = vmatpush1.bf16.msra.mxu0 %v2420
    %3251 = vmatprep.subr.bf16.mxu0 %v2424
    %3252 = vmatpush1.bf16.msra.mxu0 %v2423
    %3253 = vmatprep.subr.bf16.mxu0 %v2427
    %3254 = vmatpush1.bf16.msra.mxu0 %v2426
    %3255 = vmatprep.subr.bf16.mxu0 %v2430
    %3256 = vmatpush1.bf16.msra.mxu0 %v2429
    %3257 = vmatprep.subr.bf16.mxu0 %v2433
    %3258 = vmatpush1.bf16.msra.mxu0 %v2432
    %3259 = vmatprep.subr.bf16.mxu0 %v2436
    %3260 = vmatpush1.bf16.msra.mxu0 %v2435
    %3261 = vmatprep.subr.bf16.mxu0 %v2439
    %3262 = vmatpush1.bf16.msra.mxu0 %v2438
    %3263 = vmatprep.subr.bf16.mxu0 %v2442
    %3264 = vmatpush1.bf16.msra.mxu0 %v2441
    %3265 = vmatprep.subr.bf16.mxu0 %v2445
    %3266 = vmatpush1.bf16.msra.mxu0 %v2444
    %3267 = vmatprep.mubr.bf16.mxu0 %v740
    %3268 = vmatmul.mubr.bf16.gmra.mrb[0].mxu0 %v739
    %v3269 = vpop.f32.mrb[0].mxu0
    %v3270 = vadd.f32 %v3229, %v3269
    %v3271 = vpop.f32.mrb[0].mxu0
    %v3272 = vadd.f32 %v3231, %v3271
    %v3273 = vpop.f32.mrb[0].mxu0
    %v3274 = vpop.f32.mrb[0].mxu0
    %3275 = vdwg.mxu0
    %3276 = vmatprep.subr.bf16.mxu0 %v2448
    %3277 = vmatpush1.bf16.msra.mxu0 %v2447
    %3278 = vmatprep.subr.bf16.mxu0 %v2451
    %3279 = vmatpush1.bf16.msra.mxu0 %v2450
    %3280 = vmatprep.subr.bf16.mxu0 %v2454
    %3281 = vmatpush1.bf16.msra.mxu0 %v2453
    %3282 = vmatprep.subr.bf16.mxu0 %v2457
    %3283 = vmatpush1.bf16.msra.mxu0 %v2456
    %3284 = vmatprep.subr.bf16.mxu0 %v2460
    %3285 = vmatpush1.bf16.msra.mxu0 %v2459
    %3286 = vmatprep.subr.bf16.mxu0 %v2463
    %3287 = vmatpush1.bf16.msra.mxu0 %v2462
    %3288 = vmatprep.subr.bf16.mxu0 %v2466
    %3289 = vmatpush1.bf16.msra.mxu0 %v2465
    %3290 = vmatprep.subr.bf16.mxu0 %v2469
    %3291 = vmatpush1.bf16.msra.mxu0 %v2468
    %3292 = vmatprep.subr.bf16.mxu0 %v2472
    %3293 = vmatpush1.bf16.msra.mxu0 %v2471
    %3294 = vmatprep.subr.bf16.mxu0 %v2475
    %3295 = vmatpush1.bf16.msra.mxu0 %v2474
    %3296 = vmatprep.subr.bf16.mxu0 %v2478
    %3297 = vmatpush1.bf16.msra.mxu0 %v2477
    %3298 = vmatprep.subr.bf16.mxu0 %v2481
    %3299 = vmatpush1.bf16.msra.mxu0 %v2480
    %3300 = vmatprep.subr.bf16.mxu0 %v2484
    %3301 = vmatpush1.bf16.msra.mxu0 %v2483
    %3302 = vmatprep.subr.bf16.mxu0 %v2487
    %3303 = vmatpush1.bf16.msra.mxu0 %v2486
    %3304 = vmatprep.subr.bf16.mxu0 %v2490
    %3305 = vmatpush1.bf16.msra.mxu0 %v2489
    %3306 = vmatprep.subr.bf16.mxu0 %v2493
    %3307 = vmatpush1.bf16.msra.mxu0 %v2492
    %3308 = vmatprep.mubr.bf16.mxu0 %v742
    %3309 = vmatmul.mubr.bf16.gmra.mrb[0].mxu0 %v741
    %v3310 = vpop.f32.mrb[0].mxu0
    %v3311 = vadd.f32 %v3270, %v3310
    %v3312 = vpop.f32.mrb[0].mxu0
    %v3313 = vadd.f32 %v3272, %v3312
    %v3314 = vpop.f32.mrb[0].mxu0
    %v3315 = vpop.f32.mrb[0].mxu0
    %3316 = vdwg.mxu0
    %3317 = vmatprep.subr.bf16.mxu0 %v2496
    %3318 = vmatpush1.bf16.msra.mxu0 %v2495
    %3319 = vmatprep.subr.bf16.mxu0 %v2499
    %3320 = vmatpush1.bf16.msra.mxu0 %v2498
    %3321 = vmatprep.subr.bf16.mxu0 %v2502
    %3322 = vmatpush1.bf16.msra.mxu0 %v2501
    %3323 = vmatprep.subr.bf16.mxu0 %v2505
    %3324 = vmatpush1.bf16.msra.mxu0 %v2504
    %3325 = vmatprep.subr.bf16.mxu0 %v2508
    %3326 = vmatpush1.bf16.msra.mxu0 %v2507
    %3327 = vmatprep.subr.bf16.mxu0 %v2511
    %3328 = vmatpush1.bf16.msra.mxu0 %v2510
    %3329 = vmatprep.subr.bf16.mxu0 %v2514
    %3330 = vmatpush1.bf16.msra.mxu0 %v2513
    %3331 = vmatprep.subr.bf16.mxu0 %v2517
    %3332 = vmatpush1.bf16.msra.mxu0 %v2516
    %3333 = vmatprep.subr.bf16.mxu0 %v2520
    %3334 = vmatpush1.bf16.msra.mxu0 %v2519
    %3335 = vmatprep.subr.bf16.mxu0 %v2523
    %3336 = vmatpush1.bf16.msra.mxu0 %v2522
    %3337 = vmatprep.subr.bf16.mxu0 %v2526
    %3338 = vmatpush1.bf16.msra.mxu0 %v2525
    %3339 = vmatprep.subr.bf16.mxu0 %v2529
    %3340 = vmatpush1.bf16.msra.mxu0 %v2528
    %3341 = vmatprep.subr.bf16.mxu0 %v2532
    %3342 = vmatpush1.bf16.msra.mxu0 %v2531
    %3343 = vmatprep.subr.bf16.mxu0 %v2535
    %3344 = vmatpush1.bf16.msra.mxu0 %v2534
    %3345 = vmatprep.subr.bf16.mxu0 %v2538
    %3346 = vmatpush1.bf16.msra.mxu0 %v2537
    %3347 = vmatprep.subr.bf16.mxu0 %v2541
    %3348 = vmatpush1.bf16.msra.mxu0 %v2540
    %3349 = vmatprep.mubr.bf16.mxu0 %v744
    %3350 = vmatmul.mubr.bf16.gmra.mrb[0].mxu0 %v743
    %v3351 = vpop.f32.mrb[0].mxu0
    %v3352 = vadd.f32 %v3311, %v3351
    %v3353 = vpop.f32.mrb[0].mxu0
    %v3354 = vadd.f32 %v3313, %v3353
    %v3355 = vpop.f32.mrb[0].mxu0
    %v3356 = vpop.f32.mrb[0].mxu0
    %3357 = vdwg.mxu0
    %3358 = vmatprep.subr.bf16.mxu0 %v2544
    %3359 = vmatpush1.bf16.msra.mxu0 %v2543
    %3360 = vmatprep.subr.bf16.mxu0 %v2547
    %3361 = vmatpush1.bf16.msra.mxu0 %v2546
    %3362 = vmatprep.subr.bf16.mxu0 %v2550
    %3363 = vmatpush1.bf16.msra.mxu0 %v2549
    %3364 = vmatprep.subr.bf16.mxu0 %v2553
    %3365 = vmatpush1.bf16.msra.mxu0 %v2552
    %3366 = vmatprep.subr.bf16.mxu0 %v2556
    %3367 = vmatpush1.bf16.msra.mxu0 %v2555
    %3368 = vmatprep.subr.bf16.mxu0 %v2559
    %3369 = vmatpush1.bf16.msra.mxu0 %v2558
    %3370 = vmatprep.subr.bf16.mxu0 %v2562
    %3371 = vmatpush1.bf16.msra.mxu0 %v2561
    %3372 = vmatprep.subr.bf16.mxu0 %v2565
    %3373 = vmatpush1.bf16.msra.mxu0 %v2564
    %3374 = vmatprep.subr.bf16.mxu0 %v2568
    %3375 = vmatpush1.bf16.msra.mxu0 %v2567
    %3376 = vmatprep.subr.bf16.mxu0 %v2571
    %3377 = vmatpush1.bf16.msra.mxu0 %v2570
    %3378 = vmatprep.subr.bf16.mxu0 %v2574
    %3379 = vmatpush1.bf16.msra.mxu0 %v2573
    %3380 = vmatprep.subr.bf16.mxu0 %v2577
    %3381 = vmatpush1.bf16.msra.mxu0 %v2576
    %3382 = vmatprep.subr.bf16.mxu0 %v2580
    %3383 = vmatpush1.bf16.msra.mxu0 %v2579
    %3384 = vmatprep.subr.bf16.mxu0 %v2583
    %3385 = vmatpush1.bf16.msra.mxu0 %v2582
    %3386 = vmatprep.subr.bf16.mxu0 %v2586
    %3387 = vmatpush1.bf16.msra.mxu0 %v2585
    %3388 = vmatprep.subr.bf16.mxu0 %v2589
    %3389 = vmatpush1.bf16.msra.mxu0 %v2588
    %3390 = vmatprep.mubr.bf16.mxu0 %v746
    %3391 = vmatmul.mubr.bf16.gmra.mrb[0].mxu0 %v745
    %v3392 = vpop.f32.mrb[0].mxu0
    %v3393 = vadd.f32 %v3352, %v3392
    %v3394 = vpop.f32.mrb[0].mxu0
    %v3395 = vadd.f32 %v3354, %v3394
    %v3396 = vpop.f32.mrb[0].mxu0
    %v3397 = vpop.f32.mrb[0].mxu0
    %3398 = vdwg.mxu0
    %3399 = vmatprep.subr.bf16.mxu0 %v2592
    %3400 = vmatpush1.bf16.msra.mxu0 %v2591
    %3401 = vmatprep.subr.bf16.mxu0 %v2595
    %3402 = vmatpush1.bf16.msra.mxu0 %v2594
    %3403 = vmatprep.subr.bf16.mxu0 %v2598
    %3404 = vmatpush1.bf16.msra.mxu0 %v2597
    %3405 = vmatprep.subr.bf16.mxu0 %v2601
    %3406 = vmatpush1.bf16.msra.mxu0 %v2600
    %3407 = vmatprep.subr.bf16.mxu0 %v2604
    %3408 = vmatpush1.bf16.msra.mxu0 %v2603
    %3409 = vmatprep.subr.bf16.mxu0 %v2607
    %3410 = vmatpush1.bf16.msra.mxu0 %v2606
    %3411 = vmatprep.subr.bf16.mxu0 %v2610
    %3412 = vmatpush1.bf16.msra.mxu0 %v2609
    %3413 = vmatprep.subr.bf16.mxu0 %v2613
    %3414 = vmatpush1.bf16.msra.mxu0 %v2612
    %3415 = vmatprep.subr.bf16.mxu0 %v2616
    %3416 = vmatpush1.bf16.msra.mxu0 %v2615
    %3417 = vmatprep.subr.bf16.mxu0 %v2619
    %3418 = vmatpush1.bf16.msra.mxu0 %v2618
    %3419 = vmatprep.subr.bf16.mxu0 %v2622
    %3420 = vmatpush1.bf16.msra.mxu0 %v2621
    %3421 = vmatprep.subr.bf16.mxu0 %v2625
    %3422 = vmatpush1.bf16.msra.mxu0 %v2624
    %3423 = vmatprep.subr.bf16.mxu0 %v2628
    %3424 = vmatpush1.bf16.msra.mxu0 %v2627
    %3425 = vmatprep.subr.bf16.mxu0 %v2631
    %3426 = vmatpush1.bf16.msra.mxu0 %v2630
    %3427 = vmatprep.subr.bf16.mxu0 %v2634
    %3428 = vmatpush1.bf16.msra.mxu0 %v2633
    %3429 = vmatprep.subr.bf16.mxu0 %v2637
    %3430 = vmatpush1.bf16.msra.mxu0 %v2636
    %3431 = vmatprep.mubr.bf16.mxu0 %v748
    %3432 = vmatmul.mubr.bf16.gmra.mrb[0].mxu0 %v747
    %v3433 = vpop.f32.mrb[0].mxu0
    %v3434 = vadd.f32 %v3393, %v3433
    %v3435 = vpop.f32.mrb[0].mxu0
    %v3436 = vadd.f32 %v3395, %v3435
    %v3437 = vpop.f32.mrb[0].mxu0
    %v3438 = vpop.f32.mrb[0].mxu0
    %3439 = vdwg.mxu0
    %3440 = vmatprep.subr.bf16.mxu0 0
    %3441 = vmatpush1.bf16.msra.mxu0 %v2209
    %3442 = vmatprep.subr.bf16.mxu0 0
    %3443 = vmatpush1.bf16.msra.mxu0 %v2212
    %3444 = vmatprep.subr.bf16.mxu0 0
    %3445 = vmatpush1.bf16.msra.mxu0 %v2215
    %3446 = vmatprep.subr.bf16.mxu0 0
    %3447 = vmatpush1.bf16.msra.mxu0 %v2218
    %3448 = vmatprep.subr.bf16.mxu0 0
    %3449 = vmatpush1.bf16.msra.mxu0 %v2221
    %3450 = vmatprep.subr.bf16.mxu0 0
    %3451 = vmatpush1.bf16.msra.mxu0 %v2224
    %3452 = vmatprep.subr.bf16.mxu0 0
    %3453 = vmatpush1.bf16.msra.mxu0 %v2227
    %3454 = vmatprep.subr.bf16.mxu0 0
    %3455 = vmatpush1.bf16.msra.mxu0 %v2230
    %3456 = vmatprep.subr.bf16.mxu0 0
    %3457 = vmatpush1.bf16.msra.mxu0 %v2233
    %3458 = vmatprep.subr.bf16.mxu0 0
    %3459 = vmatpush1.bf16.msra.mxu0 %v2236
    %3460 = vmatprep.subr.bf16.mxu0 0
    %3461 = vmatpush1.bf16.msra.mxu0 %v2239
    %3462 = vmatprep.subr.bf16.mxu0 0
    %3463 = vmatpush1.bf16.msra.mxu0 %v2242
    %3464 = vmatprep.subr.bf16.mxu0 0
    %3465 = vmatpush1.bf16.msra.mxu0 %v2245
    %3466 = vmatprep.subr.bf16.mxu0 0
    %3467 = vmatpush1.bf16.msra.mxu0 %v2248
    %3468 = vmatprep.subr.bf16.mxu0 0
    %3469 = vmatpush1.bf16.msra.mxu0 %v2251
    %3470 = vmatprep.subr.bf16.mxu0 0
    %3471 = vmatpush1.bf16.msra.mxu0 %v2254
    %3472 = vmatprep.mubr.bf16.mxu0 %v732
    %3473 = vmatmul.mubr.bf16.gmra.mrb[0].mxu0 %v731
    %v3474 = vpop.f32.mrb[0].mxu0
    %v3475 = vadd.f32 %v700, %v3474
    %v3476 = vpop.f32.mrb[0].mxu0
    %v3477 = vpop.f32.mrb[0].mxu0
    %v3478 = vpop.f32.mrb[0].mxu0
    %3479 = vdwg.mxu0
    %3480 = vmatprep.subr.bf16.mxu0 0
    %3481 = vmatpush1.bf16.msra.mxu0 %v2257
    %3482 = vmatprep.subr.bf16.mxu0 0
    %3483 = vmatpush1.bf16.msra.mxu0 %v2260
    %3484 = vmatprep.subr.bf16.mxu0 0
    %3485 = vmatpush1.bf16.msra.mxu0 %v2263
    %3486 = vmatprep.subr.bf16.mxu0 0
    %3487 = vmatpush1.bf16.msra.mxu0 %v2266
    %3488 = vmatprep.subr.bf16.mxu0 0
    %3489 = vmatpush1.bf16.msra.mxu0 %v2269
    %3490 = vmatprep.subr.bf16.mxu0 0
    %3491 = vmatpush1.bf16.msra.mxu0 %v2272
    %3492 = vmatprep.subr.bf16.mxu0 0
    %3493 = vmatpush1.bf16.msra.mxu0 %v2275
    %3494 = vmatprep.subr.bf16.mxu0 0
    %3495 = vmatpush1.bf16.msra.mxu0 %v2278
    %3496 = vmatprep.subr.bf16.mxu0 0
    %3497 = vmatpush1.bf16.msra.mxu0 %v2281
    %3498 = vmatprep.subr.bf16.mxu0 0
    %3499 = vmatpush1.bf16.msra.mxu0 %v2284
    %3500 = vmatprep.subr.bf16.mxu0 0
    %3501 = vmatpush1.bf16.msra.mxu0 %v2287
    %3502 = vmatprep.subr.bf16.mxu0 0
    %3503 = vmatpush1.bf16.msra.mxu0 %v2290
    %3504 = vmatprep.subr.bf16.mxu0 0
    %3505 = vmatpush1.bf16.msra.mxu0 %v2293
    %3506 = vmatprep.subr.bf16.mxu0 0
    %3507 = vmatpush1.bf16.msra.mxu0 %v2296
    %3508 = vmatprep.subr.bf16.mxu0 0
    %3509 = vmatpush1.bf16.msra.mxu0 %v2299
    %3510 = vmatprep.subr.bf16.mxu0 0
    %3511 = vmatpush1.bf16.msra.mxu0 %v2302
    %3512 = vmatprep.mubr.bf16.mxu0 %v734
    %3513 = vmatmul.mubr.bf16.gmra.mrb[0].mxu0 %v733
    %v3514 = vpop.f32.mrb[0].mxu0
    %v3515 = vadd.f32 %v3475, %v3514
    %v3516 = vpop.f32.mrb[0].mxu0
    %v3517 = vpop.f32.mrb[0].mxu0
    %v3518 = vpop.f32.mrb[0].mxu0
    %3519 = vdwg.mxu0
    %3520 = vmatprep.subr.bf16.mxu0 0
    %3521 = vmatpush1.bf16.msra.mxu0 %v2305
    %3522 = vmatprep.subr.bf16.mxu0 0
    %3523 = vmatpush1.bf16.msra.mxu0 %v2308
    %3524 = vmatprep.subr.bf16.mxu0 0
    %3525 = vmatpush1.bf16.msra.mxu0 %v2311
    %3526 = vmatprep.subr.bf16.mxu0 0
    %3527 = vmatpush1.bf16.msra.mxu0 %v2314
    %3528 = vmatprep.subr.bf16.mxu0 0
    %3529 = vmatpush1.bf16.msra.mxu0 %v2317
    %3530 = vmatprep.subr.bf16.mxu0 0
    %3531 = vmatpush1.bf16.msra.mxu0 %v2320
    %3532 = vmatprep.subr.bf16.mxu0 0
    %3533 = vmatpush1.bf16.msra.mxu0 %v2323
    %3534 = vmatprep.subr.bf16.mxu0 0
    %3535 = vmatpush1.bf16.msra.mxu0 %v2326
    %3536 = vmatprep.subr.bf16.mxu0 0
    %3537 = vmatpush1.bf16.msra.mxu0 %v2329
    %3538 = vmatprep.subr.bf16.mxu0 0
    %3539 = vmatpush1.bf16.msra.mxu0 %v2332
    %3540 = vmatprep.subr.bf16.mxu0 0
    %3541 = vmatpush1.bf16.msra.mxu0 %v2335
    %3542 = vmatprep.subr.bf16.mxu0 0
    %3543 = vmatpush1.bf16.msra.mxu0 %v2338
    %3544 = vmatprep.subr.bf16.mxu0 0
    %3545 = vmatpush1.bf16.msra.mxu0 %v2341
    %3546 = vmatprep.subr.bf16.mxu0 0
    %3547 = vmatpush1.bf16.msra.mxu0 %v2344
    %3548 = vmatprep.subr.bf16.mxu0 0
    %3549 = vmatpush1.bf16.msra.mxu0 %v2347
    %3550 = vmatprep.subr.bf16.mxu0 0
    %3551 = vmatpush1.bf16.msra.mxu0 %v2350
    %3552 = vmatprep.mubr.bf16.mxu0 %v736
    %3553 = vmatmul.mubr.bf16.gmra.mrb[0].mxu0 %v735
    %v3554 = vpop.f32.mrb[0].mxu0
    %v3555 = vadd.f32 %v3515, %v3554
    %v3556 = vpop.f32.mrb[0].mxu0
    %v3557 = vpop.f32.mrb[0].mxu0
    %v3558 = vpop.f32.mrb[0].mxu0
    %3559 = vdwg.mxu0
    %3560 = vmatprep.subr.bf16.mxu0 0
    %3561 = vmatpush1.bf16.msra.mxu0 %v2353
    %3562 = vmatprep.subr.bf16.mxu0 0
    %3563 = vmatpush1.bf16.msra.mxu0 %v2356
    %3564 = vmatprep.subr.bf16.mxu0 0
    %3565 = vmatpush1.bf16.msra.mxu0 %v2359
    %3566 = vmatprep.subr.bf16.mxu0 0
    %3567 = vmatpush1.bf16.msra.mxu0 %v2362
    %3568 = vmatprep.subr.bf16.mxu0 0
    %3569 = vmatpush1.bf16.msra.mxu0 %v2365
    %3570 = vmatprep.subr.bf16.mxu0 0
    %3571 = vmatpush1.bf16.msra.mxu0 %v2368
    %3572 = vmatprep.subr.bf16.mxu0 0
    %3573 = vmatpush1.bf16.msra.mxu0 %v2371
    %3574 = vmatprep.subr.bf16.mxu0 0
    %3575 = vmatpush1.bf16.msra.mxu0 %v2374
    %3576 = vmatprep.subr.bf16.mxu0 0
    %3577 = vmatpush1.bf16.msra.mxu0 %v2377
    %3578 = vmatprep.subr.bf16.mxu0 0
    %3579 = vmatpush1.bf16.msra.mxu0 %v2380
    %3580 = vmatprep.subr.bf16.mxu0 0
    %3581 = vmatpush1.bf16.msra.mxu0 %v2383
    %3582 = vmatprep.subr.bf16.mxu0 0
    %3583 = vmatpush1.bf16.msra.mxu0 %v2386
    %3584 = vmatprep.subr.bf16.mxu0 0
    %3585 = vmatpush1.bf16.msra.mxu0 %v2389
    %3586 = vmatprep.subr.bf16.mxu0 0
    %3587 = vmatpush1.bf16.msra.mxu0 %v2392
    %3588 = vmatprep.subr.bf16.mxu0 0
    %3589 = vmatpush1.bf16.msra.mxu0 %v2395
    %3590 = vmatprep.subr.bf16.mxu0 0
    %3591 = vmatpush1.bf16.msra.mxu0 %v2398
    %3592 = vmatprep.mubr.bf16.mxu0 %v738
    %3593 = vmatmul.mubr.bf16.gmra.mrb[0].mxu0 %v737
    %v3594 = vpop.f32.mrb[0].mxu0
    %v3595 = vadd.f32 %v3555, %v3594
    %v3596 = vpop.f32.mrb[0].mxu0
    %v3597 = vpop.f32.mrb[0].mxu0
    %v3598 = vpop.f32.mrb[0].mxu0
    %3599 = vdwg.mxu0
    %3600 = vmatprep.subr.bf16.mxu0 0
    %3601 = vmatpush1.bf16.msra.mxu0 %v2401
    %3602 = vmatprep.subr.bf16.mxu0 0
    %3603 = vmatpush1.bf16.msra.mxu0 %v2404
    %3604 = vmatprep.subr.bf16.mxu0 0
    %3605 = vmatpush1.bf16.msra.mxu0 %v2407
    %3606 = vmatprep.subr.bf16.mxu0 0
    %3607 = vmatpush1.bf16.msra.mxu0 %v2410
    %3608 = vmatprep.subr.bf16.mxu0 0
    %3609 = vmatpush1.bf16.msra.mxu0 %v2413
    %3610 = vmatprep.subr.bf16.mxu0 0
    %3611 = vmatpush1.bf16.msra.mxu0 %v2416
    %3612 = vmatprep.subr.bf16.mxu0 0
    %3613 = vmatpush1.bf16.msra.mxu0 %v2419
    %3614 = vmatprep.subr.bf16.mxu0 0
    %3615 = vmatpush1.bf16.msra.mxu0 %v2422
    %3616 = vmatprep.subr.bf16.mxu0 0
    %3617 = vmatpush1.bf16.msra.mxu0 %v2425
    %3618 = vmatprep.subr.bf16.mxu0 0
    %3619 = vmatpush1.bf16.msra.mxu0 %v2428
    %3620 = vmatprep.subr.bf16.mxu0 0
    %3621 = vmatpush1.bf16.msra.mxu0 %v2431
    %3622 = vmatprep.subr.bf16.mxu0 0
    %3623 = vmatpush1.bf16.msra.mxu0 %v2434
    %3624 = vmatprep.subr.bf16.mxu0 0
    %3625 = vmatpush1.bf16.msra.mxu0 %v2437
    %3626 = vmatprep.subr.bf16.mxu0 0
    %3627 = vmatpush1.bf16.msra.mxu0 %v2440
    %3628 = vmatprep.subr.bf16.mxu0 0
    %3629 = vmatpush1.bf16.msra.mxu0 %v2443
    %3630 = vmatprep.subr.bf16.mxu0 0
    %3631 = vmatpush1.bf16.msra.mxu0 %v2446
    %3632 = vmatprep.mubr.bf16.mxu0 %v740
    %3633 = vmatmul.mubr.bf16.gmra.mrb[0].mxu0 %v739
    %v3634 = vpop.f32.mrb[0].mxu0
    %v3635 = vadd.f32 %v3595, %v3634
    %v3636 = vpop.f32.mrb[0].mxu0
    %v3637 = vpop.f32.mrb[0].mxu0
    %v3638 = vpop.f32.mrb[0].mxu0
    %3639 = vdwg.mxu0
    %3640 = vmatprep.subr.bf16.mxu0 0
    %3641 = vmatpush1.bf16.msra.mxu0 %v2449
    %3642 = vmatprep.subr.bf16.mxu0 0
    %3643 = vmatpush1.bf16.msra.mxu0 %v2452
    %3644 = vmatprep.subr.bf16.mxu0 0
    %3645 = vmatpush1.bf16.msra.mxu0 %v2455
    %3646 = vmatprep.subr.bf16.mxu0 0
    %3647 = vmatpush1.bf16.msra.mxu0 %v2458
    %3648 = vmatprep.subr.bf16.mxu0 0
    %3649 = vmatpush1.bf16.msra.mxu0 %v2461
    %3650 = vmatprep.subr.bf16.mxu0 0
    %3651 = vmatpush1.bf16.msra.mxu0 %v2464
    %3652 = vmatprep.subr.bf16.mxu0 0
    %3653 = vmatpush1.bf16.msra.mxu0 %v2467
    %3654 = vmatprep.subr.bf16.mxu0 0
    %3655 = vmatpush1.bf16.msra.mxu0 %v2470
    %3656 = vmatprep.subr.bf16.mxu0 0
    %3657 = vmatpush1.bf16.msra.mxu0 %v2473
    %3658 = vmatprep.subr.bf16.mxu0 0
    %3659 = vmatpush1.bf16.msra.mxu0 %v2476
    %3660 = vmatprep.subr.bf16.mxu0 0
    %3661 = vmatpush1.bf16.msra.mxu0 %v2479
    %3662 = vmatprep.subr.bf16.mxu0 0
    %3663 = vmatpush1.bf16.msra.mxu0 %v2482
    %3664 = vmatprep.subr.bf16.mxu0 0
    %3665 = vmatpush1.bf16.msra.mxu0 %v2485
    %3666 = vmatprep.subr.bf16.mxu0 0
    %3667 = vmatpush1.bf16.msra.mxu0 %v2488
    %3668 = vmatprep.subr.bf16.mxu0 0
    %3669 = vmatpush1.bf16.msra.mxu0 %v2491
    %3670 = vmatprep.subr.bf16.mxu0 0
    %3671 = vmatpush1.bf16.msra.mxu0 %v2494
    %3672 = vmatprep.mubr.bf16.mxu0 %v742
    %3673 = vmatmul.mubr.bf16.gmra.mrb[0].mxu0 %v741
    %v3674 = vpop.f32.mrb[0].mxu0
    %v3675 = vadd.f32 %v3635, %v3674
    %v3676 = vpop.f32.mrb[0].mxu0
    %v3677 = vpop.f32.mrb[0].mxu0
    %v3678 = vpop.f32.mrb[0].mxu0
    %3679 = vdwg.mxu0
    %3680 = vmatprep.subr.bf16.mxu0 0
    %3681 = vmatpush1.bf16.msra.mxu0 %v2497
    %3682 = vmatprep.subr.bf16.mxu0 0
    %3683 = vmatpush1.bf16.msra.mxu0 %v2500
    %3684 = vmatprep.subr.bf16.mxu0 0
    %3685 = vmatpush1.bf16.msra.mxu0 %v2503
    %3686 = vmatprep.subr.bf16.mxu0 0
    %3687 = vmatpush1.bf16.msra.mxu0 %v2506
    %3688 = vmatprep.subr.bf16.mxu0 0
    %3689 = vmatpush1.bf16.msra.mxu0 %v2509
    %3690 = vmatprep.subr.bf16.mxu0 0
    %3691 = vmatpush1.bf16.msra.mxu0 %v2512
    %3692 = vmatprep.subr.bf16.mxu0 0
    %3693 = vmatpush1.bf16.msra.mxu0 %v2515
    %3694 = vmatprep.subr.bf16.mxu0 0
    %3695 = vmatpush1.bf16.msra.mxu0 %v2518
    %3696 = vmatprep.subr.bf16.mxu0 0
    %3697 = vmatpush1.bf16.msra.mxu0 %v2521
    %3698 = vmatprep.subr.bf16.mxu0 0
    %3699 = vmatpush1.bf16.msra.mxu0 %v2524
    %3700 = vmatprep.subr.bf16.mxu0 0
    %3701 = vmatpush1.bf16.msra.mxu0 %v2527
    %3702 = vmatprep.subr.bf16.mxu0 0
    %3703 = vmatpush1.bf16.msra.mxu0 %v2530
    %3704 = vmatprep.subr.bf16.mxu0 0
    %3705 = vmatpush1.bf16.msra.mxu0 %v2533
    %3706 = vmatprep.subr.bf16.mxu0 0
    %3707 = vmatpush1.bf16.msra.mxu0 %v2536
    %3708 = vmatprep.subr.bf16.mxu0 0
    %3709 = vmatpush1.bf16.msra.mxu0 %v2539
    %3710 = vmatprep.subr.bf16.mxu0 0
    %3711 = vmatpush1.bf16.msra.mxu0 %v2542
    %3712 = vmatprep.mubr.bf16.mxu0 %v744
    %3713 = vmatmul.mubr.bf16.gmra.mrb[0].mxu0 %v743
    %v3714 = vpop.f32.mrb[0].mxu0
    %v3715 = vadd.f32 %v3675, %v3714
    %v3716 = vpop.f32.mrb[0].mxu0
    %v3717 = vpop.f32.mrb[0].mxu0
    %v3718 = vpop.f32.mrb[0].mxu0
    %3719 = vdwg.mxu0
    %3720 = vmatprep.subr.bf16.mxu0 0
    %3721 = vmatpush1.bf16.msra.mxu0 %v2545
    %3722 = vmatprep.subr.bf16.mxu0 0
    %3723 = vmatpush1.bf16.msra.mxu0 %v2548
    %3724 = vmatprep.subr.bf16.mxu0 0
    %3725 = vmatpush1.bf16.msra.mxu0 %v2551
    %3726 = vmatprep.subr.bf16.mxu0 0
    %3727 = vmatpush1.bf16.msra.mxu0 %v2554
    %3728 = vmatprep.subr.bf16.mxu0 0
    %3729 = vmatpush1.bf16.msra.mxu0 %v2557
    %3730 = vmatprep.subr.bf16.mxu0 0
    %3731 = vmatpush1.bf16.msra.mxu0 %v2560
    %3732 = vmatprep.subr.bf16.mxu0 0
    %3733 = vmatpush1.bf16.msra.mxu0 %v2563
    %3734 = vmatprep.subr.bf16.mxu0 0
    %3735 = vmatpush1.bf16.msra.mxu0 %v2566
    %3736 = vmatprep.subr.bf16.mxu0 0
    %3737 = vmatpush1.bf16.msra.mxu0 %v2569
    %3738 = vmatprep.subr.bf16.mxu0 0
    %3739 = vmatpush1.bf16.msra.mxu0 %v2572
    %3740 = vmatprep.subr.bf16.mxu0 0
    %3741 = vmatpush1.bf16.msra.mxu0 %v2575
    %3742 = vmatprep.subr.bf16.mxu0 0
    %3743 = vmatpush1.bf16.msra.mxu0 %v2578
    %3744 = vmatprep.subr.bf16.mxu0 0
    %3745 = vmatpush1.bf16.msra.mxu0 %v2581
    %3746 = vmatprep.subr.bf16.mxu0 0
    %3747 = vmatpush1.bf16.msra.mxu0 %v2584
    %3748 = vmatprep.subr.bf16.mxu0 0
    %3749 = vmatpush1.bf16.msra.mxu0 %v2587
    %3750 = vmatprep.subr.bf16.mxu0 0
    %3751 = vmatpush1.bf16.msra.mxu0 %v2590
    %3752 = vmatprep.mubr.bf16.mxu0 %v746
    %3753 = vmatmul.mubr.bf16.gmra.mrb[0].mxu0 %v745
    %v3754 = vpop.f32.mrb[0].mxu0
    %v3755 = vadd.f32 %v3715, %v3754
    %v3756 = vpop.f32.mrb[0].mxu0
    %v3757 = vpop.f32.mrb[0].mxu0
    %v3758 = vpop.f32.mrb[0].mxu0
    %3759 = vdwg.mxu0
    %3760 = vmatprep.subr.bf16.mxu0 0
    %3761 = vmatpush1.bf16.msra.mxu0 %v2593
    %3762 = vmatprep.subr.bf16.mxu0 0
    %3763 = vmatpush1.bf16.msra.mxu0 %v2596
    %3764 = vmatprep.subr.bf16.mxu0 0
    %3765 = vmatpush1.bf16.msra.mxu0 %v2599
    %3766 = vmatprep.subr.bf16.mxu0 0
    %3767 = vmatpush1.bf16.msra.mxu0 %v2602
    %3768 = vmatprep.subr.bf16.mxu0 0
    %3769 = vmatpush1.bf16.msra.mxu0 %v2605
    %3770 = vmatprep.subr.bf16.mxu0 0
    %3771 = vmatpush1.bf16.msra.mxu0 %v2608
    %3772 = vmatprep.subr.bf16.mxu0 0
    %3773 = vmatpush1.bf16.msra.mxu0 %v2611
    %3774 = vmatprep.subr.bf16.mxu0 0
    %3775 = vmatpush1.bf16.msra.mxu0 %v2614
    %3776 = vmatprep.subr.bf16.mxu0 0
    %3777 = vmatpush1.bf16.msra.mxu0 %v2617
    %3778 = vmatprep.subr.bf16.mxu0 0
    %3779 = vmatpush1.bf16.msra.mxu0 %v2620
    %3780 = vmatprep.subr.bf16.mxu0 0
    %3781 = vmatpush1.bf16.msra.mxu0 %v2623
    %3782 = vmatprep.subr.bf16.mxu0 0
    %3783 = vmatpush1.bf16.msra.mxu0 %v2626
    %3784 = vmatprep.subr.bf16.mxu0 0
    %3785 = vmatpush1.bf16.msra.mxu0 %v2629
    %3786 = vmatprep.subr.bf16.mxu0 0
    %3787 = vmatpush1.bf16.msra.mxu0 %v2632
    %3788 = vmatprep.subr.bf16.mxu0 0
    %3789 = vmatpush1.bf16.msra.mxu0 %v2635
    %3790 = vmatprep.subr.bf16.mxu0 0
    %3791 = vmatpush1.bf16.msra.mxu0 %v2638
    %3792 = vmatprep.mubr.bf16.mxu0 %v748
    %3793 = vmatmul.mubr.bf16.gmra.mrb[0].mxu0 %v747
    %v3794 = vpop.f32.mrb[0].mxu0
    %v3795 = vadd.f32 %v3755, %v3794
    %v3796 = vpop.f32.mrb[0].mxu0
    %v3797 = vpop.f32.mrb[0].mxu0
    %v3798 = vpop.f32.mrb[0].mxu0
    %3799 = vdwg.mxu0
    %v3800 = vtanh.pop %v3434
    %v3801 = vtanh.pop %v3436
    %v3802 = vtanh.pop %v3795
    %v3803 = vpack.c.bf16 %v3800, %v3800
    %v3804 = vpack.c.bf16 %v3801, %v3801
    %v3805 = vpack.c.bf16 %v3802, %v3802
    %v3806 = vld [vmem:[#allocation8] sm:$0xf]
    %v3807 = vld [vmem:[#allocation8 + $0x4] sm:$0xf]
    %v3808 = vld [vmem:[#allocation8 + $0x8] sm:$0xf]
    %v3809 = vld [vmem:[#allocation8 + $0xc] sm:$0xf]
    %v3810 = vld [vmem:[#allocation8 + $0x10] sm:$0xf]
    %v3811 = vld [vmem:[#allocation8 + $0x14] sm:$0xf]
    %v3812 = vld [vmem:[#allocation8 + $0x18] sm:$0xf]
    %v3813 = vld [vmem:[#allocation8 + $0x1c] sm:$0xf]
    %v3814 = vld [vmem:[#allocation8 + $0x20] sm:$0xf]
    %v3815 = vld [vmem:[#allocation8 + $0x24] sm:$0xf]
    %v3816 = vld [vmem:[#allocation8 + $0x28] sm:$0xf]
    %v3817 = vld [vmem:[#allocation8 + $0x2c] sm:$0xf]
    %v3818 = vld [vmem:[#allocation8 + $0x30] sm:$0xf]
    %v3819 = vld [vmem:[#allocation8 + $0x34] sm:$0xf]
    %v3820 = vld [vmem:[#allocation8 + $0x38] sm:$0xf]
    %v3821 = vld [vmem:[#allocation8 + $0x3c] sm:$0xf]
    %v3822 = vld [vmem:[#allocation8 + $0x40] sm:$0xf]
    %v3823 = vld [vmem:[#allocation8 + $0x44] sm:$0xf]
    %v3824 = vld [vmem:[#allocation8 + $0x48] sm:$0xf]
    %v3825 = vld [vmem:[#allocation8 + $0x4c] sm:$0xf]
    %v3826 = vld [vmem:[#allocation8 + $0x50] sm:$0xf]
    %v3827 = vld [vmem:[#allocation8 + $0x54] sm:$0xf]
    %v3828 = vld [vmem:[#allocation8 + $0x58] sm:$0xf]
    %v3829 = vld [vmem:[#allocation8 + $0x5c] sm:$0xf]
    %v3830 = vld [vmem:[#allocation8 + $0x60] sm:$0xf]
    %v3831 = vld [vmem:[#allocation8 + $0x64] sm:$0xf]
    %v3832 = vld [vmem:[#allocation8 + $0x68] sm:$0xf]
    %v3833 = vld [vmem:[#allocation8 + $0x6c] sm:$0xf]
    %v3834 = vld [vmem:[#allocation8 + $0x70] sm:$0xf]
    %v3835 = vld [vmem:[#allocation8 + $0x74] sm:$0xf]
    %v3836 = vld [vmem:[#allocation8 + $0x78] sm:$0xf]
    %v3837 = vld [vmem:[#allocation8 + $0x7c] sm:$0xf]
    %v3838 = vld [vmem:[#allocation8 + $0x80] sm:$0xf]
    %v3839 = vld [vmem:[#allocation8 + $0x84] sm:$0xf]
    %v3840 = vld [vmem:[#allocation8 + $0x88] sm:$0xf]
    %v3841 = vld [vmem:[#allocation8 + $0x8c] sm:$0xf]
    %v3842 = vld [vmem:[#allocation8 + $0x90] sm:$0xf]
    %v3843 = vld [vmem:[#allocation8 + $0x94] sm:$0xf]
    %v3844 = vld [vmem:[#allocation8 + $0x98] sm:$0xf]
    %v3845 = vld [vmem:[#allocation8 + $0x9c] sm:$0xf]
    %v3846 = vld [vmem:[#allocation8 + $0xa0] sm:$0xf]
    %v3847 = vld [vmem:[#allocation8 + $0xa4] sm:$0xf]
    %v3848 = vld [vmem:[#allocation8 + $0xa8] sm:$0xf]
    %v3849 = vld [vmem:[#allocation8 + $0xac] sm:$0xf]
    %v3850 = vld [vmem:[#allocation8 + $0xb0] sm:$0xf]
    %v3851 = vld [vmem:[#allocation8 + $0xb4] sm:$0xf]
    %v3852 = vld [vmem:[#allocation8 + $0xb8] sm:$0xf]
    %v3853 = vld [vmem:[#allocation8 + $0xbc] sm:$0xf]
    %v3854 = vld [vmem:[#allocation10] sm:$0x1]
    %v3856 = vlaneseq
    %v3857 = vshrl.u32 %v3856, 7
    %v3858 = vsub.s32 0, %v3857
    %v3859 = vrot.slane %v3854, %v3858
    %v3909 = vunpack.c.l.b16 %v3806
    %v3910 = vunpack.c.l.b16 %v3807
    %v3911 = vunpack.c.l.b16 %v3808
    %v3912 = vunpack.c.l.b16 %v3809
    %v3913 = vunpack.c.l.b16 %v3810
    %v3914 = vunpack.c.l.b16 %v3811
    %v3915 = vunpack.c.l.b16 %v3812
    %v3916 = vunpack.c.l.b16 %v3813
    %v3917 = vunpack.c.l.b16 %v3814
    %v3918 = vunpack.c.l.b16 %v3815
    %v3919 = vunpack.c.l.b16 %v3816
    %v3920 = vunpack.c.l.b16 %v3817
    %v3921 = vunpack.c.l.b16 %v3818
    %v3922 = vunpack.c.l.b16 %v3819
    %v3923 = vunpack.c.l.b16 %v3820
    %v3924 = vunpack.c.l.b16 %v3821
    %v3925 = vunpack.c.l.b16 %v3822
    %v3926 = vunpack.c.l.b16 %v3823
    %v3927 = vunpack.c.l.b16 %v3824
    %v3928 = vunpack.c.l.b16 %v3825
    %v3929 = vunpack.c.l.b16 %v3826
    %v3930 = vunpack.c.l.b16 %v3827
    %v3931 = vunpack.c.l.b16 %v3828
    %v3932 = vunpack.c.l.b16 %v3829
    %v3933 = vunpack.c.l.b16 %v3830
    %v3934 = vunpack.c.l.b16 %v3831
    %v3935 = vunpack.c.l.b16 %v3832
    %v3936 = vunpack.c.l.b16 %v3833
    %v3937 = vunpack.c.l.b16 %v3834
    %v3938 = vunpack.c.l.b16 %v3835
    %v3939 = vunpack.c.l.b16 %v3836
    %v3940 = vunpack.c.l.b16 %v3837
    %v3941 = vunpack.c.l.b16 %v3838
    %v3942 = vunpack.c.l.b16 %v3839
    %v3943 = vunpack.c.l.b16 %v3840
    %v3944 = vunpack.c.l.b16 %v3841
    %v3945 = vunpack.c.l.b16 %v3842
    %v3946 = vunpack.c.l.b16 %v3843
    %v3947 = vunpack.c.l.b16 %v3844
    %v3948 = vunpack.c.l.b16 %v3845
    %v3949 = vunpack.c.l.b16 %v3846
    %v3950 = vunpack.c.l.b16 %v3847
    %v3951 = vunpack.c.l.b16 %v3848
    %v3952 = vunpack.c.l.b16 %v3849
    %v3953 = vunpack.c.l.b16 %v3850
    %v3954 = vunpack.c.l.b16 %v3851
    %v3955 = vunpack.c.l.b16 %v3852
    %v3956 = vunpack.c.l.b16 %v3853
    %v3957 = vpack.c.b16 %v3910, %v3909
    %v3958 = vpack.c.b16 %v3912, %v3911
    %v3959 = vpack.c.b16 %v3914, %v3913
    %v3960 = vpack.c.b16 %v3916, %v3915
    %v3961 = vpack.c.b16 %v3918, %v3917
    %v3962 = vpack.c.b16 %v3920, %v3919
    %v3963 = vpack.c.b16 %v3922, %v3921
    %v3964 = vpack.c.b16 %v3924, %v3923
    %v3965 = vpack.c.b16 %v3926, %v3925
    %v3966 = vpack.c.b16 %v3928, %v3927
    %v3967 = vpack.c.b16 %v3930, %v3929
    %v3968 = vpack.c.b16 %v3932, %v3931
    %v3969 = vpack.c.b16 %v3934, %v3933
    %v3970 = vpack.c.b16 %v3936, %v3935
    %v3971 = vpack.c.b16 %v3938, %v3937
    %v3972 = vpack.c.b16 %v3940, %v3939
    %v3973 = vpack.c.b16 %v3942, %v3941
    %v3974 = vpack.c.b16 %v3944, %v3943
    %v3975 = vpack.c.b16 %v3946, %v3945
    %v3976 = vpack.c.b16 %v3948, %v3947
    %v3977 = vpack.c.b16 %v3950, %v3949
    %v3978 = vpack.c.b16 %v3952, %v3951
    %v3979 = vpack.c.b16 %v3954, %v3953
    %v3980 = vpack.c.b16 %v3956, %v3955
    %4005 = vmatprep.subr.bf16.mxu0 0
    %4006 = vmatpush1.bf16.msra.mxu0 %v3957
    %4007 = vmatprep.subr.bf16.mxu0 0
    %4008 = vmatpush1.bf16.msra.mxu0 %v3958
    %4009 = vmatprep.subr.bf16.mxu0 0
    %4010 = vmatpush1.bf16.msra.mxu0 %v3959
    %4011 = vmatprep.subr.bf16.mxu0 0
    %4012 = vmatpush1.bf16.msra.mxu0 %v3960
    %4013 = vmatprep.subr.bf16.mxu0 0
    %4014 = vmatpush1.bf16.msra.mxu0 %v3961
    %4015 = vmatprep.subr.bf16.mxu0 0
    %4016 = vmatpush1.bf16.msra.mxu0 %v3962
    %4017 = vmatprep.subr.bf16.mxu0 0
    %4018 = vmatpush1.bf16.msra.mxu0 %v3963
    %4019 = vmatprep.subr.bf16.mxu0 0
    %4020 = vmatpush1.bf16.msra.mxu0 %v3964
    %4021 = vmatprep.subr.bf16.mxu0 0
    %4022 = vmatpush1.bf16.msra.mxu0 %v3965
    %4023 = vmatprep.subr.bf16.mxu0 0
    %4024 = vmatpush1.bf16.msra.mxu0 %v3966
    %4025 = vmatprep.subr.bf16.mxu0 0
    %4026 = vmatpush1.bf16.msra.mxu0 %v3967
    %4027 = vmatprep.subr.bf16.mxu0 0
    %4028 = vmatpush1.bf16.msra.mxu0 %v3968
    %4029 = vmatprep.subr.bf16.mxu0 0
    %4030 = vmatpush1.bf16.msra.mxu0 %v3969
    %4031 = vmatprep.subr.bf16.mxu0 0
    %4032 = vmatpush1.bf16.msra.mxu0 %v3970
    %4033 = vmatprep.subr.bf16.mxu0 0
    %4034 = vmatpush1.bf16.msra.mxu0 %v3971
    %4035 = vmatprep.subr.bf16.mxu0 0
    %4036 = vmatpush1.bf16.msra.mxu0 %v3972
    %4037 = vmatprep.mubr.bf16.mxu0 %v3804
    %4038 = vmatmul.mubr.bf16.gmra.mrb[0].mxu0 %v3803
    %v4039 = vpop.f32.mrb[0].mxu0
    %v4040 = vadd.f32 %v3859, %v4039
    %v4041 = vpop.f32.mrb[0].mxu0
    %v4042 = vpop.f32.mrb[0].mxu0
    %v4043 = vpop.f32.mrb[0].mxu0
    %4044 = vdwg.mxu0
    %4045 = vmatprep.subr.bf16.mxu0 0
    %4046 = vmatpush1.bf16.msra.mxu0 %v3973
    %4047 = vmatprep.subr.bf16.mxu0 0
    %4048 = vmatpush1.bf16.msra.mxu0 %v3974
    %4049 = vmatprep.subr.bf16.mxu0 0
    %4050 = vmatpush1.bf16.msra.mxu0 %v3975
    %4051 = vmatprep.subr.bf16.mxu0 0
    %4052 = vmatpush1.bf16.msra.mxu0 %v3976
    %4053 = vmatprep.subr.bf16.mxu0 0
    %4054 = vmatpush1.bf16.msra.mxu0 %v3977
    %4055 = vmatprep.subr.bf16.mxu0 0
    %4056 = vmatpush1.bf16.msra.mxu0 %v3978
    %4057 = vmatprep.subr.bf16.mxu0 0
    %4058 = vmatpush1.bf16.msra.mxu0 %v3979
    %4059 = vmatprep.subr.bf16.mxu0 0
    %4060 = vmatpush1.bf16.msra.mxu0 %v3980
    %4061 = vmatprep.subr.bf16.mxu0 0
    %4062 = vmatpush1.bf16.msra.mxu0 0
    %4063 = vmatprep.subr.bf16.mxu0 0
    %4064 = vmatpush1.bf16.msra.mxu0 0
    %4065 = vmatprep.subr.bf16.mxu0 0
    %4066 = vmatpush1.bf16.msra.mxu0 0
    %4067 = vmatprep.subr.bf16.mxu0 0
    %4068 = vmatpush1.bf16.msra.mxu0 0
    %4069 = vmatprep.subr.bf16.mxu0 0
    %4070 = vmatpush1.bf16.msra.mxu0 0
    %4071 = vmatprep.subr.bf16.mxu0 0
    %4072 = vmatpush1.bf16.msra.mxu0 0
    %4073 = vmatprep.subr.bf16.mxu0 0
    %4074 = vmatpush1.bf16.msra.mxu0 0
    %4075 = vmatprep.subr.bf16.mxu0 0
    %4076 = vmatpush1.bf16.msra.mxu0 0
    %4077 = vmatprep.mubr.bf16.mxu0 0
    %4078 = vmatmul.mubr.bf16.gmra.mrb[0].mxu0 %v3805
    %v4079 = vpop.f32.mrb[0].mxu0
    %v4080 = vadd.f32 %v4040, %v4079
    %v4081 = vpop.f32.mrb[0].mxu0
    %v4082 = vpop.f32.mrb[0].mxu0
    %v4083 = vpop.f32.mrb[0].mxu0
    %4084 = vdwg.mxu0
    %4085 = vst [vmem:[#allocation13] sm:$0xff] %v4080
    %v4086 = vld [vmem:[#allocation11] sm:$0xff]
    %4087 = vmax.xlane.f32.xlu0 %v4080
    %v4088 = vpop.xlane.xlu0 %4087
    %v4089 = vsub.f32 %v4080, %v4088
    %v4090 = vmul.f32 %v4089, 1.442695
    %v4091 = vpow.pop %v4090
    %4092 = vadd.xlane.f32.xlu0 %v4091
    %v4093 = vpop.xlane.xlu0 %4092
    %v4094 = vlog2.pop %v4093
    %v4095 = vmul.f32 %v4094, 0.6931472
    %v4096 = vadd.f32 %v4088, %v4095
    %v4097 = vmul.f32 %v4086, %v4080
    %4098 = vadd.xlane.f32.xlu0 %v4097
    %v4099 = vpop.xlane.xlu0 %4098
    %4100 = vadd.xlane.f32.xlu0 %v4086
    %v4101 = vpop.xlane.xlu0 %4100
    %v4102 = vsub.f32 %v4096, %v4099
    %v4103 = vmul.f32 %v4101, %v4102
    %4104 = vst [vmem:[#allocation14] sm:$0xff] %v4103
    // Predicated region
    $region50: #{tpu_custom_call.1} parent=1 // pred_check
      _
    $region51: #{tpu_custom_call.1} parent=1 // pred_check_branch
      %4106 = sbr.rel (0) target = $region53
    $region52: #{tpu_custom_call.1} parent=1 // pred_region
      %s4108 = ssub.s32 128, 128
      %4109 = vsyncadd [#allocation4], %s4108
      %s4111 = sshll.u32 [#allocation13], 4
      %s4112 = int_to_ptr.vmem [resolvable:$true] %s4111
      %4114 = dma.vmem_to_hbm [thread:$0]  %s4112, 128, %s6, [#allocation4]
    $region53: #{tpu_custom_call.1} parent=1 // pred_fallthru
      _
    // Predicated region
    $region54: #{tpu_custom_call.1} parent=1 // pred_check
      _
    $region55: #{tpu_custom_call.1} parent=1 // pred_check_branch
      %4116 = sbr.rel (0) target = $region57
    $region56: #{tpu_custom_call.1} parent=1 // pred_region
      %s4118 = ssub.s32 128, 128
      %4119 = vsyncadd [#allocation15], %s4118
      %s4121 = sshll.u32 [#allocation14], 4
      %s4122 = int_to_ptr.vmem [resolvable:$true] %s4121
      %4124 = dma.vmem_to_hbm [thread:$0]  %s4122, 128, %s7, [#allocation15]
    $region57: #{tpu_custom_call.1} parent=1 // pred_fallthru
      _
    // Predicated region
    $region58: #{tpu_custom_call.1} parent=1 // pred_check
      _
    $region59: #{tpu_custom_call.1} parent=1 // pred_check_branch
      %4126 = sbr.rel (0) target = $region61
    $region60: #{tpu_custom_call.1} parent=1 // pred_region
      %4127 = dma.done [#allocation4], 128
    $region61: #{tpu_custom_call.1} parent=1 // pred_fallthru
      _
    // Predicated region
    $region62: #{tpu_custom_call.1} parent=1 // pred_check
      _
    $region63: #{tpu_custom_call.1} parent=1 // pred_check_branch
      %4129 = sbr.rel (0) target = $region65
    $region64: #{tpu_custom_call.1} parent=1 // pred_region
      %4130 = dma.done [#allocation15], 128
    $region65: #{tpu_custom_call.1} parent=1 // pred_fallthru
      _
    %4131 = vsyncpa [#allocation3], 1
    %4132 = vsyncpa [#allocation6], 1
    %4133 = vsyncpa [#allocation9], 1
    %4134 = vsyncpa [#allocation12], 1
    %4135 = vsyncpa [#allocation4], 1
    %4136 = vsyncpa [#allocation15], 1

</llo_original>
